<compile_context>
chip_gen: v6e
topology: v6e:2x2x1
jax: 0.10.0
libtpu: 0.0.40
codegen_flags: <defaults>
</compile_context>

<pallas_src>
import jax
import jax.numpy as jnp
from jax.experimental import pallas as pl
from jax.experimental.pallas import tpu as pltpu


def _round_up(v, m):
    return ((v + m - 1) // m) * m


def _tpu_vmem_bytes():
    """Physical VMEM per core (generation aware); conservative fallback = v7x 64 MiB."""
    try:
        return int(pltpu.get_tpu_info().vmem_capacity_bytes)
    except Exception:
        return 64 * 1024 * 1024


# ----------------------------------------------------------------------------
# Host glue: dense adjacency operands (single bf16 scatter, no N^2 normalize pass)
# ----------------------------------------------------------------------------
def _build_adj(edge_index, n, n_row_pad, n_col_pad):
    """Un-normalized A+I (bf16, built directly at padded shape) and dinv = deg^-1/2.

    The GCN normalization is applied inside the kernels as O(N*32) row scalings of
    XW / the aggregation, so the only O(N^2) host work is this one scatter."""
    src, dst = edge_index[0], edge_index[1]
    keep = src != dst                                           # remove_self_loops
    a = jnp.zeros((n_row_pad, n_col_pad), jnp.bfloat16)
    a = a.at[dst, src].add(keep.astype(jnp.bfloat16))           # message j -> i at A[i, j]
    diag = jnp.arange(n)
    a = a.at[diag, diag].add(jnp.ones((n,), jnp.bfloat16))      # GCNConv re-adds self loops
    deg = jnp.ones((n,), jnp.float32).at[dst].add(keep.astype(jnp.float32))   # O(E)
    dinv = jax.lax.rsqrt(deg)
    return a, dinv


# ----------------------------------------------------------------------------
# Kernel 1a: fused 4-layer GCN stack with A+I resident in VMEM (fetched once)
# ----------------------------------------------------------------------------
def _gcn_resident_kernel(xw0_ref, dinv_ref, w_ref, b_ref, a_hbm,
                         o_ref, a_scr, xw_scr, sem):
    # Grid = (4,) over layers ("arbitrary": state carried in o_ref / scratch).
    # o_ref is the lane-dense [n_pad, 128] slab [x1 | x2 | x3 | x4 | 0]; constant
    # block index -> stays VMEM-resident across layers, written back to HBM once.
    l = pl.program_id(0)

    @pl.when(l == 0)
    def _():
        cp = pltpu.make_async_copy(a_hbm, a_scr, sem)   # single copy, no double buffer
        cp.start()
        cp.wait()

    d = dinv_ref[...]                                   # (n_pad, 1) f32

    # XW for the current layer, pre-scaled by the right D^-1/2, parked as bf16 so
    # the O(N^2) aggregation runs on the bf16 MXU path with f32 accumulation.
    @pl.when(l == 0)
    def _():
        xw_scr[...] = (xw0_ref[...] * d).astype(jnp.bfloat16)

    @pl.when(l == 1)
    def _():
        xw_scr[...] = (jnp.dot(o_ref[:, 0:32], w_ref[0],
                               preferred_element_type=jnp.float32) * d).astype(jnp.bfloat16)

    @pl.when(l == 2)
    def _():
        xw_scr[...] = (jnp.dot(o_ref[:, 32:64], w_ref[0],
                               preferred_element_type=jnp.float32) * d).astype(jnp.bfloat16)

    @pl.when(l == 3)
    def _():
        xw_scr[...] = (jnp.dot(o_ref[:, 64:96], w_ref[0],
                               preferred_element_type=jnp.float32) * d).astype(jnp.bfloat16)

    agg = jnp.dot(a_scr[...], xw_scr[...], preferred_element_type=jnp.float32)
    new = jnp.tanh(d * agg + b_ref[0])                  # left D^-1/2 + bias + tanh

    @pl.when(l == 0)
    def _():
        o_ref[:, 0:32] = new

    @pl.when(l == 1)
    def _():
        o_ref[:, 32:64] = new

    @pl.when(l == 2)
    def _():
        o_ref[:, 64:96] = new

    @pl.when(l == 3)
    def _():
        o_ref[:, 96:128] = new


def _gcn_resident(x, edge_index, ws, bs, n, vmem_limit):
    n_pad = _round_up(n, 128)
    a_p, dinv = _build_adj(edge_index, n, n_pad, n_pad)

    # Layer-1 XW is a tiny (n, F) @ (F, 32) matmul; doing it on the host removes any
    # restriction on num_features and shrinks the kernel's resident inputs.
    xw0 = x.astype(jnp.float32) @ ws[0].astype(jnp.float32)
    xw0_p = jnp.zeros((n_pad, 32), jnp.float32).at[:n].set(xw0)
    dinv_p = jnp.zeros((n_pad, 1), jnp.float32).at[:n, 0].set(dinv)

    w_stack = jnp.zeros((4, 32, 32), jnp.float32)       # slot 0 unused (XW0 precomputed)
    b_stack = jnp.zeros((4, 1, 32), jnp.float32)
    for i, (w, b) in enumerate(zip(ws, bs)):
        if i > 0:
            w_stack = w_stack.at[i, :w.shape[0], :w.shape[1]].set(w.astype(jnp.float32))
        b_stack = b_stack.at[i, 0, :b.shape[0]].set(b.astype(jnp.float32))

    out = pl.pallas_call(
        _gcn_resident_kernel,
        out_shape=jax.ShapeDtypeStruct((n_pad, 128), jnp.float32),
        grid=(4,),
        in_specs=[
            pl.BlockSpec((n_pad, 32), lambda l: (0, 0)),      # XW of layer 1 (fetched once)
            pl.BlockSpec((n_pad, 1), lambda l: (0, 0)),       # dinv (fetched once)
            pl.BlockSpec((1, 32, 32), lambda l: (l, 0, 0)),   # W_l
            pl.BlockSpec((1, 1, 32), lambda l: (l, 0, 0)),    # b_l
            pl.BlockSpec(memory_space=pl.ANY),                # A+I in HBM; manual single DMA
        ],
        out_specs=pl.BlockSpec((n_pad, 128), lambda l: (0, 0)),
        scratch_shapes=[
            pltpu.VMEM((n_pad, n_pad), jnp.bfloat16),         # resident A+I (single copy)
            pltpu.VMEM((n_pad, 32), jnp.bfloat16),            # XW of the current layer
            pltpu.SemaphoreType.DMA,
        ],
        compiler_params=pltpu.CompilerParams(
            dimension_semantics=("arbitrary",),
            vmem_limit_bytes=vmem_limit),
    )(xw0_p, dinv_p, w_stack, b_stack, a_p)
    return out[:n]


# ----------------------------------------------------------------------------
# Kernel 1b: streamed per-layer aggregation (large graphs), row tiles "parallel"
# ----------------------------------------------------------------------------
def _gcn_layer_kernel(a_ref, xw_ref, dinv_ref, b_ref, o_ref):
    agg = jnp.dot(a_ref[...], xw_ref[...], preferred_element_type=jnp.float32)
    o_ref[...] = jnp.tanh(dinv_ref[...] * agg + b_ref[...])


def _gcn_streamed(x, edge_index, ws, bs, n, tm, vmem_limit):
    n_col = _round_up(n, 128)
    n_row = _round_up(n, tm)
    a_p, dinv = _build_adj(edge_index, n, n_row, n_col)
    dinv_row = jnp.zeros((n_row, 1), jnp.float32).at[:n, 0].set(dinv)

    agg_layer = pl.pallas_call(
        _gcn_layer_kernel,
        out_shape=jax.ShapeDtypeStruct((n_row, 32), jnp.float32),
        grid=(n_row // tm,),
        in_specs=[
            pl.BlockSpec((tm, n_col), lambda r: (r, 0)),     # A+I row tile (streamed once/layer)
            pl.BlockSpec((n_col, 32), lambda r: (0, 0)),     # scaled XW (resident)
            pl.BlockSpec((tm, 1), lambda r: (r, 0)),         # left D^-1/2 for this tile
            pl.BlockSpec((1, 32), lambda r: (0, 0)),
        ],
        out_specs=pl.BlockSpec((tm, 32), lambda r: (r, 0)),
        compiler_params=pltpu.CompilerParams(
            dimension_semantics=("parallel",),               # megacore-shard row tiles (v7x)
            vmem_limit_bytes=vmem_limit),
    )

    prev = x.astype(jnp.float32)                             # (n, F)
    outs = []
    for l in range(4):
        w = ws[l].astype(jnp.float32)
        b = bs[l].astype(jnp.float32)
        wp = jnp.zeros((w.shape[0], 32), jnp.float32).at[:, :w.shape[1]].set(w)
        bp = jnp.zeros((1, 32), jnp.float32).at[0, :b.shape[0]].set(b)
        # Per-layer XW is a tiny (n, 32) matmul -> plain JAX; scale by right D^-1/2,
        # cast to bf16 (HBM/MXU bandwidth) and feed the O(N^2) aggregation kernel.
        xw = (prev @ wp) * dinv[:, None]
        xw_p = jnp.zeros((n_col, 32), jnp.bfloat16).at[:n].set(xw.astype(jnp.bfloat16))
        xl = agg_layer(a_p, xw_p, dinv_row, bp)              # (n_row, 32) f32
        outs.append(xl[:n])
        prev = xl[:n]
    return jnp.concatenate(outs, axis=1)                     # (n, 128)


def gcn_forward(x, edge_index, ws, bs):
    """x -> lane-dense [n, 128] slab [x1 | x2 | x3 | x4 @ col 96 | zeros]."""
    n = x.shape[0]
    cap = _tpu_vmem_bytes()
    vmem_limit = int(cap * 0.8)              # explicit: v5e's default scoped VMEM is 16 MiB

    # Resident path: A+I (bf16) + activations fit VMEM -> A fetched once for all
    # 4 layers (single biggest HBM-traffic win from the perf review).
    n_res = _round_up(n, 128)
    resident_need = 2 * n_res * n_res + 4096 * n_res + (2 << 20)
    if resident_need <= int(vmem_limit * 0.85):
        return _gcn_resident(x, edge_index, ws, bs, n, vmem_limit)

    # Streaming path (large graphs). Generation-aware row tile: biggest of
    # {1024, 512, 256} whose double-buffered bf16 A tile (+ XW / out) fits.
    n_col = _round_up(n, 128)
    tm = 256
    for cand in (1024, 512):
        if 2 * cand * n_col * 2 + n_col * 192 + cand * 256 + (4 << 20) <= vmem_limit:
            tm = cand
            break
    return _gcn_streamed(x, edge_index, ws, bs, n, tm, vmem_limit)


# ----------------------------------------------------------------------------
# Kernel 2: fused conv5 + ReLU + MaxPool(2,2) + conv6 + ReLU + flatten + MLP
# ----------------------------------------------------------------------------
def _head_kernel(s_ref, w5_ref, b5_ref, w6_ref, b6_ref,
                 w1_ref, b1_ref, w2_ref, b2_ref, o_ref,
                 h5_scr, pool_scr, h6_scr):
    gb32 = s_ref.shape[0]              # GB * 32 rows (30 sorted nodes + 2 pad per graph)
    gb16 = gb32 // 2
    gb = gb32 // 32

    # conv5: Conv1d(1, 16, 97, 97) == one (GB*32, 128) @ (128, 16) matmul + ReLU.
    h5 = jnp.dot(s_ref[...], w5_ref[...], preferred_element_type=jnp.float32) + b5_ref[...]
    h5_scr[...] = jnp.maximum(h5, 0.0)

    # MaxPool1d(2, 2): the per-graph stride-32 row layout makes one stride-2 read valid.
    pool_scr[pl.ds(0, gb16), :] = jnp.maximum(h5_scr[pl.ds(0, gb16, stride=2), :],
                                              h5_scr[pl.ds(1, gb16, stride=2), :])
    pool_scr[pl.ds(gb16, 8), :] = jnp.zeros((8, 16), jnp.float32)   # deterministic overhang

    # conv6: Conv1d(16, 32, 5, 1) + ReLU as 5 MXU-accumulated (GB*16, 16) @ (16, 32)
    # matmuls (perf review: no 80-lane im2col concat / XLU lane relayout).
    h6 = jnp.dot(pool_scr[pl.ds(0, gb16), :], w6_ref[0],
                 preferred_element_type=jnp.float32)
    for k in range(1, 5):
        h6 = h6 + jnp.dot(pool_scr[pl.ds(k, gb16), :], w6_ref[k],
                          preferred_element_type=jnp.float32)
    h6_scr[...] = jnp.maximum(h6 + b6_ref[...], 0.0)

    # PyTorch channel-major flatten + classifier_1 + ReLU as 11 accumulated
    # (GB, 32) @ (32, 128) matmuls over valid conv6 positions t = 0..10
    # (classifier_1's weight was host-permuted to (position, channel) order).
    h1 = jnp.dot(h6_scr[pl.ds(0, gb, stride=16), :], w1_ref[0],
                 preferred_element_type=jnp.float32)
    for t in range(1, 11):
        h1 = h1 + jnp.dot(h6_scr[pl.ds(t, gb, stride=16), :], w1_ref[t],
                          preferred_element_type=jnp.float32)
    h1 = jnp.maximum(h1 + b1_ref[...], 0.0)

    # TODO(synk): Dropout(0.5) is identity in eval mode; training-mode dropout not implemented.
    o_ref[...] = jnp.dot(h1, w2_ref[...], preferred_element_type=jnp.float32) + b2_ref[...]


def head_forward(s, w5, b5, w6, b6, w1, b1, w2, b2):
    bsz = s.shape[0]
    num_classes = w2.shape[1]
    gb = min(64, bsz)                 # graphs per grid step (raised from 8 per perf review)
    b_pad = _round_up(bsz, gb)

    # [B, 32, 128] -> 2D [B*32, 128]; rows 30,31 of each graph are zero stride-padding.
    s_p = jnp.zeros((b_pad, 32, 128), jnp.float32).at[:bsz].set(s)
    s2 = s_p.reshape(b_pad * 32, 128)

    # Host-side weight prep (done once, outside the kernel).
    w5p = jnp.zeros((128, 16), jnp.float32).at[:97, :].set(w5.astype(jnp.float32))
    w6p = w6.astype(jnp.float32)                                   # (5, 16, 32) [k, c_in, c_out]
    w1p = jnp.transpose(w1.astype(jnp.float32).reshape(32, 11, 128),
                        (1, 0, 2))                                 # (11, 32, 128): t-major
    w2p = jnp.zeros((128, 128), jnp.float32).at[:, :num_classes].set(w2.astype(jnp.float32))
    b2p = jnp.zeros((1, 128), jnp.float32).at[0, :num_classes].set(b2.astype(jnp.float32))

    out = pl.pallas_call(
        _head_kernel,
        out_shape=jax.ShapeDtypeStruct((b_pad, 128), jnp.float32),
        grid=(b_pad // gb,),
        in_specs=[
            pl.BlockSpec((gb * 32, 128), lambda i: (i, 0)),      # sorted node features
            pl.BlockSpec((128, 16), lambda i: (0, 0)),           # conv5 weight (resident)
            pl.BlockSpec((1, 16), lambda i: (0, 0)),
            pl.BlockSpec((5, 16, 32), lambda i: (0, 0, 0)),      # conv6 weight per-tap
            pl.BlockSpec((1, 32), lambda i: (0, 0)),
            pl.BlockSpec((11, 32, 128), lambda i: (0, 0, 0)),    # classifier_1 per-position
            pl.BlockSpec((1, 128), lambda i: (0, 0)),
            pl.BlockSpec((128, 128), lambda i: (0, 0)),          # classifier_2 (lane-padded)
            pl.BlockSpec((1, 128), lambda i: (0, 0)),
        ],
        out_specs=pl.BlockSpec((gb, 128), lambda i: (i, 0)),
        scratch_shapes=[
            pltpu.VMEM((gb * 32, 16), jnp.float32),              # conv5 activations
            pltpu.VMEM((gb * 16 + 8, 16), jnp.float32),          # pooled (+overhang rows)
            pltpu.VMEM((gb * 16, 32), jnp.float32),              # conv6 activations
        ],
        compiler_params=pltpu.CompilerParams(dimension_semantics=("parallel",)),
    )(s2, w5p, b5.reshape(1, 16).astype(jnp.float32), w6p,
      b6.reshape(1, 32).astype(jnp.float32), w1p,
      b1.reshape(1, 128).astype(jnp.float32), w2p, b2p)
    return out[:bsz, :num_classes]


# ----------------------------------------------------------------------------
# Plain-JAX glue: global_sort_pool
# ----------------------------------------------------------------------------
def global_sort_pool_padded(xc, batch, num_graphs, k=30, rows_pad=32):
    """PyG global_sort_pool on the [N, 128] slab: per graph, sort nodes by channel 96
    (= x4, the last real GCN feature) descending, keep top-k, zero-pad, and emit
    [B, rows_pad, 128] (rows 30..31 are stride padding for the conv head)."""
    # TODO(synk): per-graph top-k/argsort has no clean Pallas equivalent; JAX glue.
    n = xc.shape[0]
    kk = min(k, n)
    key_all = xc[:, 96]

    def per_graph(g):
        m = batch == g
        key = jnp.where(m, key_all, -jnp.inf)
        order = jnp.argsort(-key)[:kk]
        rows = xc[order]                                             # (kk, 128)
        n_g = jnp.sum(m)
        rows = jnp.where(jnp.arange(kk)[:, None] < n_g, rows, 0.0)   # zero padding rows
        return jnp.pad(rows, ((0, rows_pad - kk), (0, 0)))           # (rows_pad, 128)

    return jax.vmap(per_graph)(jnp.arange(num_graphs))


def dgcnn_forward(params, x, edge_index, batch, num_graphs):
    xc = gcn_forward(
        x, edge_index,
        [params["w_g1"], params["w_g2"], params["w_g3"], params["w_g4"]],
        [params["b_g1"], params["b_g2"], params["b_g3"], params["b_g4"]])   # [N, 128]
    s = global_sort_pool_padded(xc, batch, num_graphs)                       # [B, 32, 128]
    return head_forward(s, params["w5"], params["b5"], params["w6"], params["b6"],
                        params["w1"], params["b1"], params["w2"], params["b2"])


# ----------------------------------------------------------------------------
# Demo
# ----------------------------------------------------------------------------
def make_edge_index(num_graphs, nodes_per_graph):
    src, dst = [], []
    for g in range(num_graphs):
        off = g * nodes_per_graph
        for i in range(nodes_per_graph):
            j = (i + 1) % nodes_per_graph
            src += [off + i, off + j]
            dst += [off + j, off + i]
        src.append(off)           # a self loop (exercises remove_self_loops)
        dst.append(off)
    return jnp.array([src, dst], dtype=jnp.int32)


if __name__ == "__main__":
    num_features, num_classes = 4, 3
    num_graphs, nodes_per_graph = 2, 12
    n_nodes = num_graphs * nodes_per_graph

    key = jax.random.PRNGKey(0)
    keys = jax.random.split(key, 17)

    def init(k, shape, scale=0.1):
        return (scale * jax.random.normal(k, shape)).astype(jnp.float32)

    params = dict(
        w_g1=init(keys[0], (num_features, 32)), b_g1=init(keys[1], (32,)),
        w_g2=init(keys[2], (32, 32)),           b_g2=init(keys[3], (32,)),
        w_g3=init(keys[4], (32, 32)),           b_g3=init(keys[5], (32,)),
        w_g4=init(keys[6], (32, 1)),            b_g4=init(keys[7], (1,)),
        # conv5: Conv1d(1, 16, 97, 97) -> weight laid out as [97, 16]
        w5=init(keys[8], (97, 16)),             b5=init(keys[9], (16,)),
        # conv6: Conv1d(16, 32, 5, 1) -> weight laid out as [5, 16, 32] (kernel, in, out)
        w6=init(keys[10], (5, 16, 32)),         b6=init(keys[11], (32,)),
        # classifier_1: Linear(352, 128); classifier_2: Linear(128, num_classes)
        w1=init(keys[12], (352, 128)),          b1=init(keys[13], (128,)),
        w2=init(keys[14], (128, num_classes)),  b2=init(keys[15], (num_classes,)),
    )

    x = jax.random.normal(keys[16], (n_nodes, num_features), dtype=jnp.float32)
    edge_index = make_edge_index(num_graphs, nodes_per_graph)
    batch = jnp.repeat(jnp.arange(num_graphs, dtype=jnp.int32), nodes_per_graph)

    forward = jax.jit(dgcnn_forward, static_argnums=(4,))
    out = forward(params, x, edge_index, batch, num_graphs)
    out = jax.block_until_ready(out)
    assert out.shape == (num_graphs, num_classes), out.shape
    print("KERNEL_OK")
</pallas_src>

<mosaic_0001>
module attributes {stable_mosaic.version = 11 : i64} {
  func.func @_gcn_resident_kernel(%arg0: i32, %arg1: memref<128x32xf32, #tpu.memory_space<vmem>>, %arg2: memref<128x1xf32, #tpu.memory_space<vmem>>, %arg3: memref<1x32x32xf32, #tpu.memory_space<vmem>>, %arg4: memref<1x1x32xf32, #tpu.memory_space<vmem>>, %arg5: memref<128x128xbf16, #tpu.memory_space<any>>, %arg6: memref<128x128xf32, #tpu.memory_space<vmem>>, %arg7: memref<128x128xbf16, #tpu.memory_space<vmem>>, %arg8: memref<128x32xbf16, #tpu.memory_space<vmem>>, %arg9: memref<!tpu.dma_semaphore, #tpu.memory_space<semaphore_mem>>) attributes {dimension_semantics = [#tpu.dimension_semantics<arbitrary>], iteration_bounds = array<i64: 4>, scalar_prefetch = 0 : i64, scratch_operands = 3 : i64, tpu.core_type = #tpu.core_type<tc>, window_params = [{pipeline_mode = #tpu.pipeline_mode<synchronous>, transform_indices = @transform_0, window_bounds = array<i64: 128, 32>}, {pipeline_mode = #tpu.pipeline_mode<synchronous>, transform_indices = @transform_1, window_bounds = array<i64: 128, 1>}, {transform_indices = @transform_2, window_bounds = array<i64: 1, 32, 32>}, {transform_indices = @transform_3, window_bounds = array<i64: 1, 1, 32>}, {}, {pipeline_mode = #tpu.pipeline_mode<synchronous>, transform_indices = @transform_5, window_bounds = array<i64: 128, 128>}]} {
    %c0_i32 = arith.constant 0 : i32
    %0 = arith.cmpi eq, %arg0, %c0_i32 : i32
    %1 = arith.extui %0 : i1 to i32
    %c0_i32_0 = arith.constant 0 : i32
    %2 = arith.cmpi ne, %1, %c0_i32_0 : i32
    scf.if %2 {
      tpu.enqueue_dma source(%arg5 : memref<128x128xbf16, #tpu.memory_space<any>>) target(%arg7 : memref<128x128xbf16, #tpu.memory_space<vmem>>) target_semaphore(%arg9 : memref<!tpu.dma_semaphore, #tpu.memory_space<semaphore_mem>>)
      tpu.wait_dma2 semaphore(%arg9 : memref<!tpu.dma_semaphore, #tpu.memory_space<semaphore_mem>>) src(%arg5 : memref<128x128xbf16, #tpu.memory_space<any>>) dst(%arg7 : memref<128x128xbf16, #tpu.memory_space<vmem>>)
    } else {
    }
    %c0 = arith.constant 0 : index
    %c0_1 = arith.constant 0 : index
    %3 = vector.load %arg2[%c0, %c0_1] : memref<128x1xf32, #tpu.memory_space<vmem>>, vector<128x1xf32>
    %c0_i32_2 = arith.constant 0 : i32
    %4 = arith.cmpi eq, %arg0, %c0_i32_2 : i32
    %5 = arith.extui %4 : i1 to i32
    %c0_i32_3 = arith.constant 0 : i32
    %6 = arith.cmpi ne, %5, %c0_i32_3 : i32
    scf.if %6 {
      %c0_22 = arith.constant 0 : index
      %c0_23 = arith.constant 0 : index
      %38 = vector.load %arg1[%c0_22, %c0_23] : memref<128x32xf32, #tpu.memory_space<vmem>>, vector<128x32xf32>
      %39 = vector.broadcast %3 : vector<128x1xf32> to vector<128x32xf32>
      %40 = arith.mulf %38, %39 : vector<128x32xf32>
      %41 = arith.truncf %40 : vector<128x32xf32> to vector<128x32xbf16>
      %c0_24 = arith.constant 0 : index
      %c0_25 = arith.constant 0 : index
      %42 = vector.load %arg8[%c0_24, %c0_25] : memref<128x32xbf16, #tpu.memory_space<vmem>>, vector<128x32xbf16>
      tpu.vector_store %arg8[%c0_24, %c0_25], %41 {strides = array<i32>} : memref<128x32xbf16, #tpu.memory_space<vmem>>, vector<128x32xbf16>,
    } else {
    }
    %c1_i32 = arith.constant 1 : i32
    %7 = arith.cmpi eq, %arg0, %c1_i32 : i32
    %8 = arith.extui %7 : i1 to i32
    %c0_i32_4 = arith.constant 0 : i32
    %9 = arith.cmpi ne, %8, %c0_i32_4 : i32
    scf.if %9 {
      %c0_22 = arith.constant 0 : index
      %c0_23 = arith.constant 0 : index
      %38 = vector.load %arg6[%c0_22, %c0_23] : memref<128x128xf32, #tpu.memory_space<vmem>>, vector<128x32xf32>
      %c0_24 = arith.constant 0 : index
      %c0_25 = arith.constant 0 : index
      %c0_26 = arith.constant 0 : index
      %39 = vector.load %arg3[%c0_24, %c0_25, %c0_26] : memref<1x32x32xf32, #tpu.memory_space<vmem>>, vector<1x32x32xf32>
      %40 = vector.shape_cast %39 : vector<1x32x32xf32> to vector<32x32xf32>
      %cst_27 = arith.constant dense<0.000000e+00> : vector<128x32xf32>
      %41 = tpu.matmul %38, %40, %cst_27 {dimension_numbers = #tpu.dot_dimension_numbers<[1], [0], [0], [1], [0, 0, 1, 1], [], []>} : vector<128x32xf32>, vector<32x32xf32>, vector<128x32xf32> -> vector<128x32xf32>
      %42 = vector.broadcast %3 : vector<128x1xf32> to vector<128x32xf32>
      %43 = arith.mulf %41, %42 : vector<128x32xf32>
      %44 = arith.truncf %43 : vector<128x32xf32> to vector<128x32xbf16>
      %c0_28 = arith.constant 0 : index
      %c0_29 = arith.constant 0 : index
      %45 = vector.load %arg8[%c0_28, %c0_29] : memref<128x32xbf16, #tpu.memory_space<vmem>>, vector<128x32xbf16>
      tpu.vector_store %arg8[%c0_28, %c0_29], %44 {strides = array<i32>} : memref<128x32xbf16, #tpu.memory_space<vmem>>, vector<128x32xbf16>,
    } else {
    }
    %c2_i32 = arith.constant 2 : i32
    %10 = arith.cmpi eq, %arg0, %c2_i32 : i32
    %11 = arith.extui %10 : i1 to i32
    %c0_i32_5 = arith.constant 0 : i32
    %12 = arith.cmpi ne, %11, %c0_i32_5 : i32
    scf.if %12 {
      %c0_22 = arith.constant 0 : index
      %c32 = arith.constant 32 : index
      %38 = vector.load %arg6[%c0_22, %c32] : memref<128x128xf32, #tpu.memory_space<vmem>>, vector<128x32xf32>
      %c0_23 = arith.constant 0 : index
      %c0_24 = arith.constant 0 : index
      %c0_25 = arith.constant 0 : index
      %39 = vector.load %arg3[%c0_23, %c0_24, %c0_25] : memref<1x32x32xf32, #tpu.memory_space<vmem>>, vector<1x32x32xf32>
      %40 = vector.shape_cast %39 : vector<1x32x32xf32> to vector<32x32xf32>
      %cst_26 = arith.constant dense<0.000000e+00> : vector<128x32xf32>
      %41 = tpu.matmul %38, %40, %cst_26 {dimension_numbers = #tpu.dot_dimension_numbers<[1], [0], [0], [1], [0, 0, 1, 1], [], []>} : vector<128x32xf32>, vector<32x32xf32>, vector<128x32xf32> -> vector<128x32xf32>
      %42 = vector.broadcast %3 : vector<128x1xf32> to vector<128x32xf32>
      %43 = arith.mulf %41, %42 : vector<128x32xf32>
      %44 = arith.truncf %43 : vector<128x32xf32> to vector<128x32xbf16>
      %c0_27 = arith.constant 0 : index
      %c0_28 = arith.constant 0 : index
      %45 = vector.load %arg8[%c0_27, %c0_28] : memref<128x32xbf16, #tpu.memory_space<vmem>>, vector<128x32xbf16>
      tpu.vector_store %arg8[%c0_27, %c0_28], %44 {strides = array<i32>} : memref<128x32xbf16, #tpu.memory_space<vmem>>, vector<128x32xbf16>,
    } else {
    }
    %c3_i32 = arith.constant 3 : i32
    %13 = arith.cmpi eq, %arg0, %c3_i32 : i32
    %14 = arith.extui %13 : i1 to i32
    %c0_i32_6 = arith.constant 0 : i32
    %15 = arith.cmpi ne, %14, %c0_i32_6 : i32
    scf.if %15 {
      %c0_22 = arith.constant 0 : index
      %c64 = arith.constant 64 : index
      %38 = vector.load %arg6[%c0_22, %c64] : memref<128x128xf32, #tpu.memory_space<vmem>>, vector<128x32xf32>
      %c0_23 = arith.constant 0 : index
      %c0_24 = arith.constant 0 : index
      %c0_25 = arith.constant 0 : index
      %39 = vector.load %arg3[%c0_23, %c0_24, %c0_25] : memref<1x32x32xf32, #tpu.memory_space<vmem>>, vector<1x32x32xf32>
      %40 = vector.shape_cast %39 : vector<1x32x32xf32> to vector<32x32xf32>
      %cst_26 = arith.constant dense<0.000000e+00> : vector<128x32xf32>
      %41 = tpu.matmul %38, %40, %cst_26 {dimension_numbers = #tpu.dot_dimension_numbers<[1], [0], [0], [1], [0, 0, 1, 1], [], []>} : vector<128x32xf32>, vector<32x32xf32>, vector<128x32xf32> -> vector<128x32xf32>
      %42 = vector.broadcast %3 : vector<128x1xf32> to vector<128x32xf32>
      %43 = arith.mulf %41, %42 : vector<128x32xf32>
      %44 = arith.truncf %43 : vector<128x32xf32> to vector<128x32xbf16>
      %c0_27 = arith.constant 0 : index
      %c0_28 = arith.constant 0 : index
      %45 = vector.load %arg8[%c0_27, %c0_28] : memref<128x32xbf16, #tpu.memory_space<vmem>>, vector<128x32xbf16>
      tpu.vector_store %arg8[%c0_27, %c0_28], %44 {strides = array<i32>} : memref<128x32xbf16, #tpu.memory_space<vmem>>, vector<128x32xbf16>,
    } else {
    }
    %c0_7 = arith.constant 0 : index
    %c0_8 = arith.constant 0 : index
    %16 = vector.load %arg7[%c0_7, %c0_8] : memref<128x128xbf16, #tpu.memory_space<vmem>>, vector<128x128xbf16>
    %c0_9 = arith.constant 0 : index
    %c0_10 = arith.constant 0 : index
    %17 = vector.load %arg8[%c0_9, %c0_10] : memref<128x32xbf16, #tpu.memory_space<vmem>>, vector<128x32xbf16>
    %cst = arith.constant dense<0.000000e+00> : vector<128x32xf32>
    %18 = tpu.matmul %16, %17, %cst {dimension_numbers = #tpu.dot_dimension_numbers<[1], [0], [0], [1], [0, 0, 1, 1], [], []>} : vector<128x128xbf16>, vector<128x32xbf16>, vector<128x32xf32> -> vector<128x32xf32>
    %19 = vector.broadcast %3 : vector<128x1xf32> to vector<128x32xf32>
    %20 = arith.mulf %19, %18 : vector<128x32xf32>
    %c0_11 = arith.constant 0 : index
    %c0_12 = arith.constant 0 : index
    %c0_13 = arith.constant 0 : index
    %21 = vector.load %arg4[%c0_11, %c0_12, %c0_13] : memref<1x1x32xf32, #tpu.memory_space<vmem>>, vector<1x1x32xf32>
    %22 = vector.shape_cast %21 : vector<1x1x32xf32> to vector<1x32xf32>
    %23 = vector.broadcast %22 : vector<1x32xf32> to vector<128x32xf32>
    %24 = arith.addf %20, %23 : vector<128x32xf32>
    %25 = math.tanh %24 : vector<128x32xf32>
    %c0_i32_14 = arith.constant 0 : i32
    %26 = arith.cmpi eq, %arg0, %c0_i32_14 : i32
    %27 = arith.extui %26 : i1 to i32
    %c0_i32_15 = arith.constant 0 : i32
    %28 = arith.cmpi ne, %27, %c0_i32_15 : i32
    scf.if %28 {
      %c0_22 = arith.constant 0 : index
      %c0_23 = arith.constant 0 : index
      %38 = vector.load %arg6[%c0_22, %c0_23] : memref<128x128xf32, #tpu.memory_space<vmem>>, vector<128x32xf32>
      tpu.vector_store %arg6[%c0_22, %c0_23], %25 {strides = array<i32>} : memref<128x128xf32, #tpu.memory_space<vmem>>, vector<128x32xf32>,
    } else {
    }
    %c1_i32_16 = arith.constant 1 : i32
    %29 = arith.cmpi eq, %arg0, %c1_i32_16 : i32
    %30 = arith.extui %29 : i1 to i32
    %c0_i32_17 = arith.constant 0 : i32
    %31 = arith.cmpi ne, %30, %c0_i32_17 : i32
    scf.if %31 {
      %c0_22 = arith.constant 0 : index
      %c32 = arith.constant 32 : index
      %38 = vector.load %arg6[%c0_22, %c32] : memref<128x128xf32, #tpu.memory_space<vmem>>, vector<128x32xf32>
      tpu.vector_store %arg6[%c0_22, %c32], %25 {strides = array<i32>} : memref<128x128xf32, #tpu.memory_space<vmem>>, vector<128x32xf32>,
    } else {
    }
    %c2_i32_18 = arith.constant 2 : i32
    %32 = arith.cmpi eq, %arg0, %c2_i32_18 : i32
    %33 = arith.extui %32 : i1 to i32
    %c0_i32_19 = arith.constant 0 : i32
    %34 = arith.cmpi ne, %33, %c0_i32_19 : i32
    scf.if %34 {
      %c0_22 = arith.constant 0 : index
      %c64 = arith.constant 64 : index
      %38 = vector.load %arg6[%c0_22, %c64] : memref<128x128xf32, #tpu.memory_space<vmem>>, vector<128x32xf32>
      tpu.vector_store %arg6[%c0_22, %c64], %25 {strides = array<i32>} : memref<128x128xf32, #tpu.memory_space<vmem>>, vector<128x32xf32>,
    } else {
    }
    %c3_i32_20 = arith.constant 3 : i32
    %35 = arith.cmpi eq, %arg0, %c3_i32_20 : i32
    %36 = arith.extui %35 : i1 to i32
    %c0_i32_21 = arith.constant 0 : i32
    %37 = arith.cmpi ne, %36, %c0_i32_21 : i32
    scf.if %37 {
      %c0_22 = arith.constant 0 : index
      %c96 = arith.constant 96 : index
      %38 = vector.load %arg6[%c0_22, %c96] : memref<128x128xf32, #tpu.memory_space<vmem>>, vector<128x32xf32>
      tpu.vector_store %arg6[%c0_22, %c96], %25 {strides = array<i32>} : memref<128x128xf32, #tpu.memory_space<vmem>>, vector<128x32xf32>,
    } else {
    }
    return
  }
  func.func @transform_0(%arg0: i32) -> (i32, i32) {
    %c0_i32 = arith.constant 0 : i32
    %c0_i32_0 = arith.constant 0 : i32
    %c0_i32_1 = arith.constant 0 : i32
    return %c0_i32, %c0_i32_0 : i32, i32
  }
  func.func @transform_1(%arg0: i32) -> (i32, i32) {
    %c0_i32 = arith.constant 0 : i32
    %c0_i32_0 = arith.constant 0 : i32
    %c0_i32_1 = arith.constant 0 : i32
    return %c0_i32, %c0_i32_0 : i32, i32
  }
  func.func @transform_2(%arg0: i32) -> (i32, i32, i32) {
    %c0_i32 = arith.constant 0 : i32
    %c0_i32_0 = arith.constant 0 : i32
    %c0_i32_1 = arith.constant 0 : i32
    return %arg0, %c0_i32, %c0_i32_0 : i32, i32, i32
  }
  func.func @transform_3(%arg0: i32) -> (i32, i32, i32) {
    %c0_i32 = arith.constant 0 : i32
    %c0_i32_0 = arith.constant 0 : i32
    %c0_i32_1 = arith.constant 0 : i32
    return %arg0, %c0_i32, %c0_i32_0 : i32, i32, i32
  }
  func.func @transform_5(%arg0: i32) -> (i32, i32) {
    %c0_i32 = arith.constant 0 : i32
    %c0_i32_0 = arith.constant 0 : i32
    %c0_i32_1 = arith.constant 0 : i32
    return %c0_i32, %c0_i32_0 : i32, i32
  }
}

module attributes {stable_mosaic.version = 11 : i64} {
  func.func @_head_kernel(%arg0: i32, %arg1: memref<64x128xf32, #tpu.memory_space<vmem>>, %arg2: memref<128x16xf32, #tpu.memory_space<vmem>>, %arg3: memref<1x16xf32, #tpu.memory_space<vmem>>, %arg4: memref<5x16x32xf32, #tpu.memory_space<vmem>>, %arg5: memref<1x32xf32, #tpu.memory_space<vmem>>, %arg6: memref<11x32x128xf32, #tpu.memory_space<vmem>>, %arg7: memref<1x128xf32, #tpu.memory_space<vmem>>, %arg8: memref<128x128xf32, #tpu.memory_space<vmem>>, %arg9: memref<1x128xf32, #tpu.memory_space<vmem>>, %arg10: memref<2x128xf32, #tpu.memory_space<vmem>>, %arg11: memref<64x16xf32, #tpu.memory_space<vmem>>, %arg12: memref<40x16xf32, #tpu.memory_space<vmem>>, %arg13: memref<32x32xf32, #tpu.memory_space<vmem>>) attributes {dimension_semantics = [#tpu.dimension_semantics<parallel>], iteration_bounds = array<i64: 1>, scalar_prefetch = 0 : i64, scratch_operands = 3 : i64, tpu.core_type = #tpu.core_type<tc>, window_params = [{transform_indices = @transform_0, window_bounds = array<i64: 64, 128>}, {pipeline_mode = #tpu.pipeline_mode<synchronous>, transform_indices = @transform_1, window_bounds = array<i64: 128, 16>}, {pipeline_mode = #tpu.pipeline_mode<synchronous>, transform_indices = @transform_2, window_bounds = array<i64: 1, 16>}, {pipeline_mode = #tpu.pipeline_mode<synchronous>, transform_indices = @transform_3, window_bounds = array<i64: 5, 16, 32>}, {pipeline_mode = #tpu.pipeline_mode<synchronous>, transform_indices = @transform_4, window_bounds = array<i64: 1, 32>}, {pipeline_mode = #tpu.pipeline_mode<synchronous>, transform_indices = @transform_5, window_bounds = array<i64: 11, 32, 128>}, {pipeline_mode = #tpu.pipeline_mode<synchronous>, transform_indices = @transform_6, window_bounds = array<i64: 1, 128>}, {pipeline_mode = #tpu.pipeline_mode<synchronous>, transform_indices = @transform_7, window_bounds = array<i64: 128, 128>}, {pipeline_mode = #tpu.pipeline_mode<synchronous>, transform_indices = @transform_8, window_bounds = array<i64: 1, 128>}, {transform_indices = @transform_9, window_bounds = array<i64: 2, 128>}]} {
    %c0 = arith.constant 0 : index
    %c0_0 = arith.constant 0 : index
    %0 = vector.load %arg1[%c0, %c0_0] : memref<64x128xf32, #tpu.memory_space<vmem>>, vector<64x128xf32>
    %c0_1 = arith.constant 0 : index
    %c0_2 = arith.constant 0 : index
    %1 = vector.load %arg2[%c0_1, %c0_2] : memref<128x16xf32, #tpu.memory_space<vmem>>, vector<128x16xf32>
    %cst = arith.constant dense<0.000000e+00> : vector<64x16xf32>
    %2 = tpu.matmul %0, %1, %cst {dimension_numbers = #tpu.dot_dimension_numbers<[1], [0], [0], [1], [0, 0, 1, 1], [], []>} : vector<64x128xf32>, vector<128x16xf32>, vector<64x16xf32> -> vector<64x16xf32>
    %c0_3 = arith.constant 0 : index
    %c0_4 = arith.constant 0 : index
    %3 = vector.load %arg3[%c0_3, %c0_4] : memref<1x16xf32, #tpu.memory_space<vmem>>, vector<1x16xf32>
    %4 = vector.broadcast %3 : vector<1x16xf32> to vector<64x16xf32>
    %5 = arith.addf %2, %4 : vector<64x16xf32>
    %cst_5 = arith.constant 0.000000e+00 : f32
    %6 = vector.broadcast %cst_5 : f32 to vector<64x16xf32>
    %7 = arith.maximumf %5, %6 : vector<64x16xf32>
    %c0_6 = arith.constant 0 : index
    %c0_7 = arith.constant 0 : index
    %8 = vector.load %arg11[%c0_6, %c0_7] : memref<64x16xf32, #tpu.memory_space<vmem>>, vector<64x16xf32>
    tpu.vector_store %arg11[%c0_6, %c0_7], %7 {strides = array<i32>} : memref<64x16xf32, #tpu.memory_space<vmem>>, vector<64x16xf32>,
    %c0_8 = arith.constant 0 : index
    %c0_9 = arith.constant 0 : index
    %9 = tpu.strided_load %arg11[%c0_8, %c0_9] {strides = array<i32: 2, 1>} : memref<64x16xf32, #tpu.memory_space<vmem>>, vector<32x16xf32>
    %c1 = arith.constant 1 : index
    %c0_10 = arith.constant 0 : index
    %10 = tpu.strided_load %arg11[%c1, %c0_10] {strides = array<i32: 2, 1>} : memref<64x16xf32, #tpu.memory_space<vmem>>, vector<32x16xf32>
    %11 = arith.maximumf %9, %10 : vector<32x16xf32>
    %c0_11 = arith.constant 0 : index
    %c0_12 = arith.constant 0 : index
    %12 = vector.load %arg12[%c0_11, %c0_12] : memref<40x16xf32, #tpu.memory_space<vmem>>, vector<32x16xf32>
    tpu.vector_store %arg12[%c0_11, %c0_12], %11 {strides = array<i32>} : memref<40x16xf32, #tpu.memory_space<vmem>>, vector<32x16xf32>,
    %cst_13 = arith.constant 0.000000e+00 : f32
    %13 = vector.broadcast %cst_13 : f32 to vector<8x16xf32>
    %c32 = arith.constant 32 : index
    %c0_14 = arith.constant 0 : index
    %14 = vector.load %arg12[%c32, %c0_14] : memref<40x16xf32, #tpu.memory_space<vmem>>, vector<8x16xf32>
    tpu.vector_store %arg12[%c32, %c0_14], %13 {strides = array<i32>} : memref<40x16xf32, #tpu.memory_space<vmem>>, vector<8x16xf32>,
    %c0_15 = arith.constant 0 : index
    %c0_16 = arith.constant 0 : index
    %15 = vector.load %arg12[%c0_15, %c0_16] : memref<40x16xf32, #tpu.memory_space<vmem>>, vector<32x16xf32>
    %c0_17 = arith.constant 0 : index
    %c0_18 = arith.constant 0 : index
    %c0_19 = arith.constant 0 : index
    %16 = vector.load %arg4[%c0_17, %c0_18, %c0_19] : memref<5x16x32xf32, #tpu.memory_space<vmem>>, vector<1x16x32xf32>
    %17 = vector.shape_cast %16 : vector<1x16x32xf32> to vector<16x32xf32>
    %cst_20 = arith.constant dense<0.000000e+00> : vector<32x32xf32>
    %18 = tpu.matmul %15, %17, %cst_20 {dimension_numbers = #tpu.dot_dimension_numbers<[1], [0], [0], [1], [0, 0, 1, 1], [], []>} : vector<32x16xf32>, vector<16x32xf32>, vector<32x32xf32> -> vector<32x32xf32>
    %c1_21 = arith.constant 1 : index
    %c0_22 = arith.constant 0 : index
    %19 = vector.load %arg12[%c1_21, %c0_22] : memref<40x16xf32, #tpu.memory_space<vmem>>, vector<32x16xf32>
    %c1_23 = arith.constant 1 : index
    %c0_24 = arith.constant 0 : index
    %c0_25 = arith.constant 0 : index
    %20 = vector.load %arg4[%c1_23, %c0_24, %c0_25] : memref<5x16x32xf32, #tpu.memory_space<vmem>>, vector<1x16x32xf32>
    %21 = vector.shape_cast %20 : vector<1x16x32xf32> to vector<16x32xf32>
    %cst_26 = arith.constant dense<0.000000e+00> : vector<32x32xf32>
    %22 = tpu.matmul %19, %21, %cst_26 {dimension_numbers = #tpu.dot_dimension_numbers<[1], [0], [0], [1], [0, 0, 1, 1], [], []>} : vector<32x16xf32>, vector<16x32xf32>, vector<32x32xf32> -> vector<32x32xf32>
    %23 = arith.addf %18, %22 : vector<32x32xf32>
    %c2 = arith.constant 2 : index
    %c0_27 = arith.constant 0 : index
    %24 = vector.load %arg12[%c2, %c0_27] : memref<40x16xf32, #tpu.memory_space<vmem>>, vector<32x16xf32>
    %c2_28 = arith.constant 2 : index
    %c0_29 = arith.constant 0 : index
    %c0_30 = arith.constant 0 : index
    %25 = vector.load %arg4[%c2_28, %c0_29, %c0_30] : memref<5x16x32xf32, #tpu.memory_space<vmem>>, vector<1x16x32xf32>
    %26 = vector.shape_cast %25 : vector<1x16x32xf32> to vector<16x32xf32>
    %cst_31 = arith.constant dense<0.000000e+00> : vector<32x32xf32>
    %27 = tpu.matmul %24, %26, %cst_31 {dimension_numbers = #tpu.dot_dimension_numbers<[1], [0], [0], [1], [0, 0, 1, 1], [], []>} : vector<32x16xf32>, vector<16x32xf32>, vector<32x32xf32> -> vector<32x32xf32>
    %28 = arith.addf %23, %27 : vector<32x32xf32>
    %c3 = arith.constant 3 : index
    %c0_32 = arith.constant 0 : index
    %29 = vector.load %arg12[%c3, %c0_32] : memref<40x16xf32, #tpu.memory_space<vmem>>, vector<32x16xf32>
    %c3_33 = arith.constant 3 : index
    %c0_34 = arith.constant 0 : index
    %c0_35 = arith.constant 0 : index
    %30 = vector.load %arg4[%c3_33, %c0_34, %c0_35] : memref<5x16x32xf32, #tpu.memory_space<vmem>>, vector<1x16x32xf32>
    %31 = vector.shape_cast %30 : vector<1x16x32xf32> to vector<16x32xf32>
    %cst_36 = arith.constant dense<0.000000e+00> : vector<32x32xf32>
    %32 = tpu.matmul %29, %31, %cst_36 {dimension_numbers = #tpu.dot_dimension_numbers<[1], [0], [0], [1], [0, 0, 1, 1], [], []>} : vector<32x16xf32>, vector<16x32xf32>, vector<32x32xf32> -> vector<32x32xf32>
    %33 = arith.addf %28, %32 : vector<32x32xf32>
    %c4 = arith.constant 4 : index
    %c0_37 = arith.constant 0 : index
    %34 = vector.load %arg12[%c4, %c0_37] : memref<40x16xf32, #tpu.memory_space<vmem>>, vector<32x16xf32>
    %c4_38 = arith.constant 4 : index
    %c0_39 = arith.constant 0 : index
    %c0_40 = arith.constant 0 : index
    %35 = vector.load %arg4[%c4_38, %c0_39, %c0_40] : memref<5x16x32xf32, #tpu.memory_space<vmem>>, vector<1x16x32xf32>
    %36 = vector.shape_cast %35 : vector<1x16x32xf32> to vector<16x32xf32>
    %cst_41 = arith.constant dense<0.000000e+00> : vector<32x32xf32>
    %37 = tpu.matmul %34, %36, %cst_41 {dimension_numbers = #tpu.dot_dimension_numbers<[1], [0], [0], [1], [0, 0, 1, 1], [], []>} : vector<32x16xf32>, vector<16x32xf32>, vector<32x32xf32> -> vector<32x32xf32>
    %38 = arith.addf %33, %37 : vector<32x32xf32>
    %c0_42 = arith.constant 0 : index
    %c0_43 = arith.constant 0 : index
    %39 = vector.load %arg5[%c0_42, %c0_43] : memref<1x32xf32, #tpu.memory_space<vmem>>, vector<1x32xf32>
    %40 = vector.broadcast %39 : vector<1x32xf32> to vector<32x32xf32>
    %41 = arith.addf %38, %40 : vector<32x32xf32>
    %cst_44 = arith.constant 0.000000e+00 : f32
    %42 = vector.broadcast %cst_44 : f32 to vector<32x32xf32>
    %43 = arith.maximumf %41, %42 : vector<32x32xf32>
    %c0_45 = arith.constant 0 : index
    %c0_46 = arith.constant 0 : index
    %44 = vector.load %arg13[%c0_45, %c0_46] : memref<32x32xf32, #tpu.memory_space<vmem>>, vector<32x32xf32>
    tpu.vector_store %arg13[%c0_45, %c0_46], %43 {strides = array<i32>} : memref<32x32xf32, #tpu.memory_space<vmem>>, vector<32x32xf32>,
    %c0_47 = arith.constant 0 : index
    %c0_48 = arith.constant 0 : index
    %45 = tpu.strided_load %arg13[%c0_47, %c0_48] {strides = array<i32: 16, 1>} : memref<32x32xf32, #tpu.memory_space<vmem>>, vector<2x32xf32>
    %c0_49 = arith.constant 0 : index
    %c0_50 = arith.constant 0 : index
    %c0_51 = arith.constant 0 : index
    %46 = vector.load %arg6[%c0_49, %c0_50, %c0_51] : memref<11x32x128xf32, #tpu.memory_space<vmem>>, vector<1x32x128xf32>
    %47 = vector.shape_cast %46 : vector<1x32x128xf32> to vector<32x128xf32>
    %cst_52 = arith.constant dense<0.000000e+00> : vector<2x128xf32>
    %48 = tpu.matmul %45, %47, %cst_52 {dimension_numbers = #tpu.dot_dimension_numbers<[1], [0], [0], [1], [0, 0, 1, 1], [], []>} : vector<2x32xf32>, vector<32x128xf32>, vector<2x128xf32> -> vector<2x128xf32>
    %c1_53 = arith.constant 1 : index
    %c0_54 = arith.constant 0 : index
    %49 = tpu.strided_load %arg13[%c1_53, %c0_54] {strides = array<i32: 16, 1>} : memref<32x32xf32, #tpu.memory_space<vmem>>, vector<2x32xf32>
    %c1_55 = arith.constant 1 : index
    %c0_56 = arith.constant 0 : index
    %c0_57 = arith.constant 0 : index
    %50 = vector.load %arg6[%c1_55, %c0_56, %c0_57] : memref<11x32x128xf32, #tpu.memory_space<vmem>>, vector<1x32x128xf32>
    %51 = vector.shape_cast %50 : vector<1x32x128xf32> to vector<32x128xf32>
    %cst_58 = arith.constant dense<0.000000e+00> : vector<2x128xf32>
    %52 = tpu.matmul %49, %51, %cst_58 {dimension_numbers = #tpu.dot_dimension_numbers<[1], [0], [0], [1], [0, 0, 1, 1], [], []>} : vector<2x32xf32>, vector<32x128xf32>, vector<2x128xf32> -> vector<2x128xf32>
    %53 = arith.addf %48, %52 : vector<2x128xf32>
    %c2_59 = arith.constant 2 : index
    %c0_60 = arith.constant 0 : index
    %54 = tpu.strided_load %arg13[%c2_59, %c0_60] {strides = array<i32: 16, 1>} : memref<32x32xf32, #tpu.memory_space<vmem>>, vector<2x32xf32>
    %c2_61 = arith.constant 2 : index
    %c0_62 = arith.constant 0 : index
    %c0_63 = arith.constant 0 : index
    %55 = vector.load %arg6[%c2_61, %c0_62, %c0_63] : memref<11x32x128xf32, #tpu.memory_space<vmem>>, vector<1x32x128xf32>
    %56 = vector.shape_cast %55 : vector<1x32x128xf32> to vector<32x128xf32>
    %cst_64 = arith.constant dense<0.000000e+00> : vector<2x128xf32>
    %57 = tpu.matmul %54, %56, %cst_64 {dimension_numbers = #tpu.dot_dimension_numbers<[1], [0], [0], [1], [0, 0, 1, 1], [], []>} : vector<2x32xf32>, vector<32x128xf32>, vector<2x128xf32> -> vector<2x128xf32>
    %58 = arith.addf %53, %57 : vector<2x128xf32>
    %c3_65 = arith.constant 3 : index
    %c0_66 = arith.constant 0 : index
    %59 = tpu.strided_load %arg13[%c3_65, %c0_66] {strides = array<i32: 16, 1>} : memref<32x32xf32, #tpu.memory_space<vmem>>, vector<2x32xf32>
    %c3_67 = arith.constant 3 : index
    %c0_68 = arith.constant 0 : index
    %c0_69 = arith.constant 0 : index
    %60 = vector.load %arg6[%c3_67, %c0_68, %c0_69] : memref<11x32x128xf32, #tpu.memory_space<vmem>>, vector<1x32x128xf32>
    %61 = vector.shape_cast %60 : vector<1x32x128xf32> to vector<32x128xf32>
    %cst_70 = arith.constant dense<0.000000e+00> : vector<2x128xf32>
    %62 = tpu.matmul %59, %61, %cst_70 {dimension_numbers = #tpu.dot_dimension_numbers<[1], [0], [0], [1], [0, 0, 1, 1], [], []>} : vector<2x32xf32>, vector<32x128xf32>, vector<2x128xf32> -> vector<2x128xf32>
    %63 = arith.addf %58, %62 : vector<2x128xf32>
    %c4_71 = arith.constant 4 : index
    %c0_72 = arith.constant 0 : index
    %64 = tpu.strided_load %arg13[%c4_71, %c0_72] {strides = array<i32: 16, 1>} : memref<32x32xf32, #tpu.memory_space<vmem>>, vector<2x32xf32>
    %c4_73 = arith.constant 4 : index
    %c0_74 = arith.constant 0 : index
    %c0_75 = arith.constant 0 : index
    %65 = vector.load %arg6[%c4_73, %c0_74, %c0_75] : memref<11x32x128xf32, #tpu.memory_space<vmem>>, vector<1x32x128xf32>
    %66 = vector.shape_cast %65 : vector<1x32x128xf32> to vector<32x128xf32>
    %cst_76 = arith.constant dense<0.000000e+00> : vector<2x128xf32>
    %67 = tpu.matmul %64, %66, %cst_76 {dimension_numbers = #tpu.dot_dimension_numbers<[1], [0], [0], [1], [0, 0, 1, 1], [], []>} : vector<2x32xf32>, vector<32x128xf32>, vector<2x128xf32> -> vector<2x128xf32>
    %68 = arith.addf %63, %67 : vector<2x128xf32>
    %c5 = arith.constant 5 : index
    %c0_77 = arith.constant 0 : index
    %69 = tpu.strided_load %arg13[%c5, %c0_77] {strides = array<i32: 16, 1>} : memref<32x32xf32, #tpu.memory_space<vmem>>, vector<2x32xf32>
    %c5_78 = arith.constant 5 : index
    %c0_79 = arith.constant 0 : index
    %c0_80 = arith.constant 0 : index
    %70 = vector.load %arg6[%c5_78, %c0_79, %c0_80] : memref<11x32x128xf32, #tpu.memory_space<vmem>>, vector<1x32x128xf32>
    %71 = vector.shape_cast %70 : vector<1x32x128xf32> to vector<32x128xf32>
    %cst_81 = arith.constant dense<0.000000e+00> : vector<2x128xf32>
    %72 = tpu.matmul %69, %71, %cst_81 {dimension_numbers = #tpu.dot_dimension_numbers<[1], [0], [0], [1], [0, 0, 1, 1], [], []>} : vector<2x32xf32>, vector<32x128xf32>, vector<2x128xf32> -> vector<2x128xf32>
    %73 = arith.addf %68, %72 : vector<2x128xf32>
    %c6 = arith.constant 6 : index
    %c0_82 = arith.constant 0 : index
    %74 = tpu.strided_load %arg13[%c6, %c0_82] {strides = array<i32: 16, 1>} : memref<32x32xf32, #tpu.memory_space<vmem>>, vector<2x32xf32>
    %c6_83 = arith.constant 6 : index
    %c0_84 = arith.constant 0 : index
    %c0_85 = arith.constant 0 : index
    %75 = vector.load %arg6[%c6_83, %c0_84, %c0_85] : memref<11x32x128xf32, #tpu.memory_space<vmem>>, vector<1x32x128xf32>
    %76 = vector.shape_cast %75 : vector<1x32x128xf32> to vector<32x128xf32>
    %cst_86 = arith.constant dense<0.000000e+00> : vector<2x128xf32>
    %77 = tpu.matmul %74, %76, %cst_86 {dimension_numbers = #tpu.dot_dimension_numbers<[1], [0], [0], [1], [0, 0, 1, 1], [], []>} : vector<2x32xf32>, vector<32x128xf32>, vector<2x128xf32> -> vector<2x128xf32>
    %78 = arith.addf %73, %77 : vector<2x128xf32>
    %c7 = arith.constant 7 : index
    %c0_87 = arith.constant 0 : index
    %79 = tpu.strided_load %arg13[%c7, %c0_87] {strides = array<i32: 16, 1>} : memref<32x32xf32, #tpu.memory_space<vmem>>, vector<2x32xf32>
    %c7_88 = arith.constant 7 : index
    %c0_89 = arith.constant 0 : index
    %c0_90 = arith.constant 0 : index
    %80 = vector.load %arg6[%c7_88, %c0_89, %c0_90] : memref<11x32x128xf32, #tpu.memory_space<vmem>>, vector<1x32x128xf32>
    %81 = vector.shape_cast %80 : vector<1x32x128xf32> to vector<32x128xf32>
    %cst_91 = arith.constant dense<0.000000e+00> : vector<2x128xf32>
    %82 = tpu.matmul %79, %81, %cst_91 {dimension_numbers = #tpu.dot_dimension_numbers<[1], [0], [0], [1], [0, 0, 1, 1], [], []>} : vector<2x32xf32>, vector<32x128xf32>, vector<2x128xf32> -> vector<2x128xf32>
    %83 = arith.addf %78, %82 : vector<2x128xf32>
    %c8 = arith.constant 8 : index
    %c0_92 = arith.constant 0 : index
    %84 = tpu.strided_load %arg13[%c8, %c0_92] {strides = array<i32: 16, 1>} : memref<32x32xf32, #tpu.memory_space<vmem>>, vector<2x32xf32>
    %c8_93 = arith.constant 8 : index
    %c0_94 = arith.constant 0 : index
    %c0_95 = arith.constant 0 : index
    %85 = vector.load %arg6[%c8_93, %c0_94, %c0_95] : memref<11x32x128xf32, #tpu.memory_space<vmem>>, vector<1x32x128xf32>
    %86 = vector.shape_cast %85 : vector<1x32x128xf32> to vector<32x128xf32>
    %cst_96 = arith.constant dense<0.000000e+00> : vector<2x128xf32>
    %87 = tpu.matmul %84, %86, %cst_96 {dimension_numbers = #tpu.dot_dimension_numbers<[1], [0], [0], [1], [0, 0, 1, 1], [], []>} : vector<2x32xf32>, vector<32x128xf32>, vector<2x128xf32> -> vector<2x128xf32>
    %88 = arith.addf %83, %87 : vector<2x128xf32>
    %c9 = arith.constant 9 : index
    %c0_97 = arith.constant 0 : index
    %89 = tpu.strided_load %arg13[%c9, %c0_97] {strides = array<i32: 16, 1>} : memref<32x32xf32, #tpu.memory_space<vmem>>, vector<2x32xf32>
    %c9_98 = arith.constant 9 : index
    %c0_99 = arith.constant 0 : index
    %c0_100 = arith.constant 0 : index
    %90 = vector.load %arg6[%c9_98, %c0_99, %c0_100] : memref<11x32x128xf32, #tpu.memory_space<vmem>>, vector<1x32x128xf32>
    %91 = vector.shape_cast %90 : vector<1x32x128xf32> to vector<32x128xf32>
    %cst_101 = arith.constant dense<0.000000e+00> : vector<2x128xf32>
    %92 = tpu.matmul %89, %91, %cst_101 {dimension_numbers = #tpu.dot_dimension_numbers<[1], [0], [0], [1], [0, 0, 1, 1], [], []>} : vector<2x32xf32>, vector<32x128xf32>, vector<2x128xf32> -> vector<2x128xf32>
    %93 = arith.addf %88, %92 : vector<2x128xf32>
    %c10 = arith.constant 10 : index
    %c0_102 = arith.constant 0 : index
    %94 = tpu.strided_load %arg13[%c10, %c0_102] {strides = array<i32: 16, 1>} : memref<32x32xf32, #tpu.memory_space<vmem>>, vector<2x32xf32>
    %c10_103 = arith.constant 10 : index
    %c0_104 = arith.constant 0 : index
    %c0_105 = arith.constant 0 : index
    %95 = vector.load %arg6[%c10_103, %c0_104, %c0_105] : memref<11x32x128xf32, #tpu.memory_space<vmem>>, vector<1x32x128xf32>
    %96 = vector.shape_cast %95 : vector<1x32x128xf32> to vector<32x128xf32>
    %cst_106 = arith.constant dense<0.000000e+00> : vector<2x128xf32>
    %97 = tpu.matmul %94, %96, %cst_106 {dimension_numbers = #tpu.dot_dimension_numbers<[1], [0], [0], [1], [0, 0, 1, 1], [], []>} : vector<2x32xf32>, vector<32x128xf32>, vector<2x128xf32> -> vector<2x128xf32>
    %98 = arith.addf %93, %97 : vector<2x128xf32>
    %c0_107 = arith.constant 0 : index
    %c0_108 = arith.constant 0 : index
    %99 = vector.load %arg7[%c0_107, %c0_108] : memref<1x128xf32, #tpu.memory_space<vmem>>, vector<1x128xf32>
    %100 = vector.broadcast %99 : vector<1x128xf32> to vector<2x128xf32>
    %101 = arith.addf %98, %100 : vector<2x128xf32>
    %cst_109 = arith.constant 0.000000e+00 : f32
    %102 = vector.broadcast %cst_109 : f32 to vector<2x128xf32>
    %103 = arith.maximumf %101, %102 : vector<2x128xf32>
    %c0_110 = arith.constant 0 : index
    %c0_111 = arith.constant 0 : index
    %104 = vector.load %arg8[%c0_110, %c0_111] : memref<128x128xf32, #tpu.memory_space<vmem>>, vector<128x128xf32>
    %cst_112 = arith.constant dense<0.000000e+00> : vector<2x128xf32>
    %105 = tpu.matmul %103, %104, %cst_112 {dimension_numbers = #tpu.dot_dimension_numbers<[1], [0], [0], [1], [0, 0, 1, 1], [], []>} : vector<2x128xf32>, vector<128x128xf32>, vector<2x128xf32> -> vector<2x128xf32>
    %c0_113 = arith.constant 0 : index
    %c0_114 = arith.constant 0 : index
    %106 = vector.load %arg9[%c0_113, %c0_114] : memref<1x128xf32, #tpu.memory_space<vmem>>, vector<1x128xf32>
    %107 = vector.broadcast %106 : vector<1x128xf32> to vector<2x128xf32>
    %108 = arith.addf %105, %107 : vector<2x128xf32>
    %c0_115 = arith.constant 0 : index
    %c0_116 = arith.constant 0 : index
    %109 = vector.load %arg10[%c0_115, %c0_116] : memref<2x128xf32, #tpu.memory_space<vmem>>, vector<2x128xf32>
    tpu.vector_store %arg10[%c0_115, %c0_116], %108 {strides = array<i32>} : memref<2x128xf32, #tpu.memory_space<vmem>>, vector<2x128xf32>,
    return
  }
  func.func @transform_0(%arg0: i32) -> (i32, i32) {
    %c0_i32 = arith.constant 0 : i32
    %c0_i32_0 = arith.constant 0 : i32
    return %arg0, %c0_i32 : i32, i32
  }
  func.func @transform_1(%arg0: i32) -> (i32, i32) {
    %c0_i32 = arith.constant 0 : i32
    %c0_i32_0 = arith.constant 0 : i32
    %c0_i32_1 = arith.constant 0 : i32
    return %c0_i32, %c0_i32_0 : i32, i32
  }
  func.func @transform_2(%arg0: i32) -> (i32, i32) {
    %c0_i32 = arith.constant 0 : i32
    %c0_i32_0 = arith.constant 0 : i32
    %c0_i32_1 = arith.constant 0 : i32
    return %c0_i32, %c0_i32_0 : i32, i32
  }
  func.func @transform_3(%arg0: i32) -> (i32, i32, i32) {
    %c0_i32 = arith.constant 0 : i32
    %c0_i32_0 = arith.constant 0 : i32
    %c0_i32_1 = arith.constant 0 : i32
    %c0_i32_2 = arith.constant 0 : i32
    return %c0_i32, %c0_i32_0, %c0_i32_1 : i32, i32, i32
  }
  func.func @transform_4(%arg0: i32) -> (i32, i32) {
    %c0_i32 = arith.constant 0 : i32
    %c0_i32_0 = arith.constant 0 : i32
    %c0_i32_1 = arith.constant 0 : i32
    return %c0_i32, %c0_i32_0 : i32, i32
  }
  func.func @transform_5(%arg0: i32) -> (i32, i32, i32) {
    %c0_i32 = arith.constant 0 : i32
    %c0_i32_0 = arith.constant 0 : i32
    %c0_i32_1 = arith.constant 0 : i32
    %c0_i32_2 = arith.constant 0 : i32
    return %c0_i32, %c0_i32_0, %c0_i32_1 : i32, i32, i32
  }
  func.func @transform_6(%arg0: i32) -> (i32, i32) {
    %c0_i32 = arith.constant 0 : i32
    %c0_i32_0 = arith.constant 0 : i32
    %c0_i32_1 = arith.constant 0 : i32
    return %c0_i32, %c0_i32_0 : i32, i32
  }
  func.func @transform_7(%arg0: i32) -> (i32, i32) {
    %c0_i32 = arith.constant 0 : i32
    %c0_i32_0 = arith.constant 0 : i32
    %c0_i32_1 = arith.constant 0 : i32
    return %c0_i32, %c0_i32_0 : i32, i32
  }
  func.func @transform_8(%arg0: i32) -> (i32, i32) {
    %c0_i32 = arith.constant 0 : i32
    %c0_i32_0 = arith.constant 0 : i32
    %c0_i32_1 = arith.constant 0 : i32
    return %c0_i32, %c0_i32_0 : i32, i32
  }
  func.func @transform_9(%arg0: i32) -> (i32, i32) {
    %c0_i32 = arith.constant 0 : i32
    %c0_i32_0 = arith.constant 0 : i32
    return %arg0, %c0_i32 : i32, i32
  }
}

</mosaic_0001>

<llo_original>
// kernel: dgcnn_forward.2
$region0: #{dgcnn_forward.2}
  #allocation0 [shape = 'u32[]', space=smem, size = 0x4, offset = 0x4, fixed_abs, tag = 'smem constant byte address 0x4 - core index']
  #allocation1 [shape = 'u32[144,128]{1,0:T(1,128)}', space=vmem, size = 0x12000, scoped, tag = 'internal scratch']
  #allocation2 [shape = 'bf16[128,128]{1,0:T(8,128)(2,1)}', space=vmem, size = 0x8000, scoped, tag = 'scratch operand']
  #allocation3 [shape = 'bf16[128,32]{1,0:T(8,128)(2,1)}', space=vmem, size = 0x8000, scoped, tag = 'scratch operand']
  #allocation4 [shape = 's32[1]{0}', space=sflag, size = 0x4, scoped, tag = 'scratch operand']
  #allocation5 [shape = 's32[]', space=sflag, size = 0x4, offset = 0, fixed_abs, tag = 'sflag constant byte address 0x0 - dummy sync flag']
  %s0 = inlined_call_operand.vmem [shape: f32[128,32], index: 0, kind: input, shape index: {}]
  %s1 = inlined_call_operand.vmem [shape: f32[128,1], index: 1, kind: input, shape index: {}]
  %s2 = inlined_call_operand.vmem [shape: f32[4,32,32], index: 2, kind: input, shape index: {}]
  %s3 = inlined_call_operand.vmem [shape: f32[4,1,32], index: 3, kind: input, shape index: {}]
  %s4 = inlined_call_operand.vmem [shape: bf16[128,128], index: 4, kind: input, shape index: {}]
  %s5 = inlined_call_operand.vmem [shape: f32[128,128], index: 5, kind: output, shape index: {}]
  %s6 = sld [smem:[#allocation0]]
  $region119: #{dgcnn_forward.2} parent=0
    _
  %s8 = ssub.s32 1, %s6
  %s9 = scalar_select 0, %s8, %s6
  loop: start=0, step=1, limit=6
  $region2: #{dgcnn_forward.2} parent=0 // loop_pre_header
    _
  $region3: #{dgcnn_forward.2} parent=0 // loop_header
    %s11 = sphi 0, %s15
    %p12 = scmp.ge.s32.totalorder %s11, 6
    %s19 = sphi 0, %s19
    %s21 = sphi 0, %s19
    %s22 = sphi 0, %s21
    %s36 = sphi 0, %s22
    %s40 = sphi 0, %s40
    %s42 = sphi 0, %s40
    %s43 = sphi 0, %s42
    %s57 = sphi 0, %s43
    %s63 = sphi 0, %s65
    %s66 = sphi 0, %s63
    %s67 = sphi 0, %s66
    %s83 = sphi 0, %s67
    %s89 = sphi 0, %s91
    %s92 = sphi 0, %s89
    %s93 = sphi 0, %s92
    %s109 = sphi 0, %s93
    %s113 = sphi 0, %s113
    %s115 = sphi 0, %s113
    %s116 = sphi 0, %s115
    %s130 = sphi 0, %s116
  $region4: #{dgcnn_forward.2} parent=0 // loop_header_branch
    %14 = sbr.rel (%p12) target = $region8
  $region5: #{dgcnn_forward.2} parent=0 // loop_body
    %s16 = ssub.s32 %s11, 1
    %s17 = ssub.s32 %s11, 2
    %s18 = sadd.s32 %s11, 1
    %s20 = sadd.s32 %s19, 1
    %p23 = scmp.eq.s32.totalorder %s11, 3
    %p24 = scmp.ne.s32.totalorder %s19, %s21
    %p25 = scmp.eq.s32.totalorder %s11, 0
    %p26 = por %p24, %p25
    %p27 = scmp.ne.s32.totalorder %s19, %s21
    %p28 = scmp.eq.s32.totalorder %s16, 3
    %p29 = por %p27, %p28
    %p30 = scmp.ne.s32.totalorder %s21, %s22
    %p31 = scmp.eq.s32.totalorder %s16, 0
    %p32 = por %p30, %p31
    %p33 = scmp.ne.s32.totalorder %s21, %s22
    %p34 = scmp.eq.s32.totalorder %s17, 3
    %p35 = por %p33, %p34
    %p37 = scmp.ne.s32.totalorder %s22, %s36
    %p38 = scmp.eq.s32.totalorder %s17, 0
    %p39 = por %p37, %p38
    %s41 = sadd.s32 %s40, 1
    %p44 = scmp.eq.s32.totalorder %s11, 3
    %p45 = scmp.ne.s32.totalorder %s40, %s42
    %p46 = scmp.eq.s32.totalorder %s11, 0
    %p47 = por %p45, %p46
    %p48 = scmp.ne.s32.totalorder %s40, %s42
    %p49 = scmp.eq.s32.totalorder %s16, 3
    %p50 = por %p48, %p49
    %p51 = scmp.ne.s32.totalorder %s42, %s43
    %p52 = scmp.eq.s32.totalorder %s16, 0
    %p53 = por %p51, %p52
    %p54 = scmp.ne.s32.totalorder %s42, %s43
    %p55 = scmp.eq.s32.totalorder %s17, 3
    %p56 = por %p54, %p55
    %p58 = scmp.ne.s32.totalorder %s43, %s57
    %p59 = scmp.eq.s32.totalorder %s17, 0
    %p60 = por %p58, %p59
    %s61 = ssub.s32 %s11, %s18
    %p62 = scmp.eq.s32.totalorder %s61, 0
    %s64 = sadd.s32 %s63, 1
    %s65 = scalar_select %p62, %s63, %s64
    %p68 = pneg %p62
    %p69 = scmp.eq.s32.totalorder %s11, 3
    %p70 = por %p68, %p69
    %p71 = scmp.ne.s32.totalorder %s63, %s66
    %p72 = scmp.eq.s32.totalorder %s11, 0
    %p73 = por %p71, %p72
    %p74 = scmp.ne.s32.totalorder %s63, %s66
    %p75 = scmp.eq.s32.totalorder %s16, 3
    %p76 = por %p74, %p75
    %p77 = scmp.ne.s32.totalorder %s66, %s67
    %p78 = scmp.eq.s32.totalorder %s16, 0
    %p79 = por %p77, %p78
    %p80 = scmp.ne.s32.totalorder %s66, %s67
    %p81 = scmp.eq.s32.totalorder %s17, 3
    %p82 = por %p80, %p81
    %p84 = scmp.ne.s32.totalorder %s67, %s83
    %p85 = scmp.eq.s32.totalorder %s17, 0
    %p86 = por %p84, %p85
    %s87 = ssub.s32 %s11, %s18
    %p88 = scmp.eq.s32.totalorder %s87, 0
    %s90 = sadd.s32 %s89, 1
    %s91 = scalar_select %p88, %s89, %s90
    %p94 = pneg %p88
    %p95 = scmp.eq.s32.totalorder %s11, 3
    %p96 = por %p94, %p95
    %p97 = scmp.ne.s32.totalorder %s89, %s92
    %p98 = scmp.eq.s32.totalorder %s11, 0
    %p99 = por %p97, %p98
    %p100 = scmp.ne.s32.totalorder %s89, %s92
    %p101 = scmp.eq.s32.totalorder %s16, 3
    %p102 = por %p100, %p101
    %p103 = scmp.ne.s32.totalorder %s92, %s93
    %p104 = scmp.eq.s32.totalorder %s16, 0
    %p105 = por %p103, %p104
    %p106 = scmp.ne.s32.totalorder %s92, %s93
    %p107 = scmp.eq.s32.totalorder %s17, 3
    %p108 = por %p106, %p107
    %p110 = scmp.ne.s32.totalorder %s93, %s109
    %p111 = scmp.eq.s32.totalorder %s17, 0
    %p112 = por %p110, %p111
    %s114 = sadd.s32 %s113, 1
    %p117 = scmp.eq.s32.totalorder %s11, 3
    %p118 = scmp.ne.s32.totalorder %s113, %s115
    %p119 = scmp.eq.s32.totalorder %s11, 0
    %p120 = por %p118, %p119
    %p121 = scmp.ne.s32.totalorder %s113, %s115
    %p122 = scmp.eq.s32.totalorder %s16, 3
    %p123 = por %p121, %p122
    %p124 = scmp.ne.s32.totalorder %s115, %s116
    %p125 = scmp.eq.s32.totalorder %s16, 0
    %p126 = por %p124, %p125
    %p127 = scmp.ne.s32.totalorder %s115, %s116
    %p128 = scmp.eq.s32.totalorder %s17, 3
    %p129 = por %p127, %p128
    %p131 = scmp.ne.s32.totalorder %s116, %s130
    %p132 = scmp.eq.s32.totalorder %s17, 0
    %p133 = por %p131, %p132
    %p134 = scmp.le.s32.totalorder 1, %s11
    %p135 = scmp.lt.s32.totalorder %s11, 5
    %p136 = pnand %p134, %p135
    %p137 = pneg %p136
    // Predicated region
    $region9: #{dgcnn_forward.2} parent=5 // pred_check
      _
    $region10: #{dgcnn_forward.2} parent=5 // pred_check_branch
      %139 = sbr.rel (%p136) target = $region12
    $region11: #{dgcnn_forward.2} parent=5 // pred_region
      %s140 = ssub.s32 %s11, 1
      // Predicated region
      $region13: #{dgcnn_forward.2} parent=11 // pred_check
        %p141 = pneg %p32
      $region14: #{dgcnn_forward.2} parent=11 // pred_check_branch
        %143 = sbr.rel (%p141) target = $region16
      $region15: #{dgcnn_forward.2} parent=11 // pred_region
        _
      $region16: #{dgcnn_forward.2} parent=11 // pred_fallthru
        _
      // Predicated region
      $region17: #{dgcnn_forward.2} parent=11 // pred_check
        %p144 = pneg %p53
      $region18: #{dgcnn_forward.2} parent=11 // pred_check_branch
        %146 = sbr.rel (%p144) target = $region20
      $region19: #{dgcnn_forward.2} parent=11 // pred_region
        _
      $region20: #{dgcnn_forward.2} parent=11 // pred_fallthru
        _
    $region12: #{dgcnn_forward.2} parent=5 // pred_fallthru
      _
    %p147 = scmp.lt.s32.totalorder %s11, 4
    // Predicated region
    $region21: #{dgcnn_forward.2} parent=5 // pred_check
      %p148 = pneg %p147
    $region22: #{dgcnn_forward.2} parent=5 // pred_check_branch
      %150 = sbr.rel (%p148) target = $region24
    $region23: #{dgcnn_forward.2} parent=5 // pred_region
      // Predicated region
      $region25: #{dgcnn_forward.2} parent=23 // pred_check
        %p151 = pneg %p73
      $region26: #{dgcnn_forward.2} parent=23 // pred_check_branch
        %153 = sbr.rel (%p151) target = $region28
      $region27: #{dgcnn_forward.2} parent=23 // pred_region
        %p154 = scmp.lt.s32.totalorder %s11, 3
        %s155 = scalar_select %p154, %s11, 3
        %s156 = smul.addr %s155, 4
        %s157 = smul.addr %s156, 8
        %s158 = scalar_lea.vmem %s2, %s157
      $region28: #{dgcnn_forward.2} parent=23 // pred_fallthru
        _
      // Predicated region
      $region29: #{dgcnn_forward.2} parent=23 // pred_check
        %p159 = pneg %p99
      $region30: #{dgcnn_forward.2} parent=23 // pred_check_branch
        %161 = sbr.rel (%p159) target = $region32
      $region31: #{dgcnn_forward.2} parent=23 // pred_region
        %p162 = scmp.lt.s32.totalorder %s11, 3
        %s163 = scalar_select %p162, %s11, 3
        %s164 = scalar_lea.vmem %s3, %s163
      $region32: #{dgcnn_forward.2} parent=23 // pred_fallthru
        _
    $region24: #{dgcnn_forward.2} parent=5 // pred_fallthru
      _
    %p165 = scmp.le.s32.totalorder 1, %s11
    %p166 = scmp.lt.s32.totalorder %s11, 5
    %p167 = pnand %p165, %p166
    %p168 = pneg %p167
    // Predicated region
    $region33: #{dgcnn_forward.2} parent=5 // pred_check
      _
    $region34: #{dgcnn_forward.2} parent=5 // pred_check_branch
      %170 = sbr.rel (%p167) target = $region36
    $region35: #{dgcnn_forward.2} parent=5 // pred_region
      %s171 = ssub.s32 %s11, 1
      %p172 = pneg %p32
      %p173 = pneg %p29
      %p174 = pneg %p53
      %p175 = pneg %p50
      %p176 = scmp.lt.s32.totalorder %s16, 3
      %s177 = scalar_select %p176, %s16, 3
      %s178 = smul.addr %s177, 4
      %s179 = smul.addr %s178, 8
      %s180 = scalar_lea.vmem %s2, %s179
      %p181 = pneg %p79
      %p182 = pneg %p76
      %p183 = scmp.lt.s32.totalorder %s16, 3
      %s184 = scalar_select %p183, %s16, 3
      %s185 = scalar_lea.vmem %s3, %s184
      %p186 = pneg %p105
      %p187 = pneg %p102
      %p188 = pneg %p126
      %p189 = pneg %p123
      %p190 = scmp.lt.s32.totalorder %s16, 3
      %s191 = scalar_select %p190, %s16, 3
      %s192 = smul.addr %s191, 4
      %s193 = smul.addr %s192, 8
      %s194 = scalar_lea.vmem %s2, %s193
      %p195 = scmp.lt.s32.totalorder %s16, 3
      %s196 = scalar_select %p195, %s16, 3
      %s197 = scalar_lea.vmem %s3, %s196
      %p199 = scmp.eq.s32.totalorder %s16, 0
      // Predicated region
      $region37: #{dgcnn_forward.2} parent=35 // pred_check
        %p200 = pneg %p199
      $region38: #{dgcnn_forward.2} parent=35 // pred_check_branch
        %202 = sbr.rel (%p200) target = $region40
      $region39: #{dgcnn_forward.2} parent=35 // pred_region
        %p204 = scmp.lt.u32.totalorder 64, 8
        %p205 = pneg %p204
        // Predicated region
        $region41: #{dgcnn_forward.2} parent=39 // pred_check
          _
        $region42: #{dgcnn_forward.2} parent=39 // pred_check_branch
          %207 = sbr.rel (%p204) target = $region44
        $region43: #{dgcnn_forward.2} parent=39 // pred_region
          %s223 = sand.u32 64, 7
          %p224 = scmp.eq.s32.totalorder %s223, 0
          // Predicated region
          $region56: #{dgcnn_forward.2} parent=43 // pred_check
            %p225 = pneg %p224
          $region57: #{dgcnn_forward.2} parent=43 // pred_check_branch
            %227 = sbr.rel (%p225) target = $region59
          $region58: #{dgcnn_forward.2} parent=43 // pred_region
            loop: start=0, step=1, limit=1
            $region60: #{dgcnn_forward.2} parent=58 // loop_pre_header
              _
            $region61: #{dgcnn_forward.2} parent=58 // loop_header
              %s229 = sphi 0, %s233
              %p230 = scmp.ge.s32.totalorder %s229, 1
              %s234 = sphi %s4, %s4
              %s235 = sphi [#allocation2], [#allocation2]
            $region62: #{dgcnn_forward.2} parent=58 // loop_header_branch
              %232 = sbr.rel (%p230) target = $region66
            $region63: #{dgcnn_forward.2} parent=58 // loop_body
              %v236 = vld [vmem:[%s234] sm:$0xff]
              %237 = vst [vmem:[%s235] sm:$0xff] %v236
              %v238 = vld [vmem:[%s234 + $0x8] sm:$0xff]
              %239 = vst [vmem:[%s235 + $0x8] sm:$0xff] %v238
              %v240 = vld [vmem:[%s234 + $0x10] sm:$0xff]
              %241 = vst [vmem:[%s235 + $0x10] sm:$0xff] %v240
              %v242 = vld [vmem:[%s234 + $0x18] sm:$0xff]
              %243 = vst [vmem:[%s235 + $0x18] sm:$0xff] %v242
              %v244 = vld [vmem:[%s234 + $0x20] sm:$0xff]
              %245 = vst [vmem:[%s235 + $0x20] sm:$0xff] %v244
              %v246 = vld [vmem:[%s234 + $0x28] sm:$0xff]
              %247 = vst [vmem:[%s235 + $0x28] sm:$0xff] %v246
              %v248 = vld [vmem:[%s234 + $0x30] sm:$0xff]
              %249 = vst [vmem:[%s235 + $0x30] sm:$0xff] %v248
              %v250 = vld [vmem:[%s234 + $0x38] sm:$0xff]
              %251 = vst [vmem:[%s235 + $0x38] sm:$0xff] %v250
            $region64: #{dgcnn_forward.2} parent=58 // loop_footer
              %s233 = sadd.s32 1, %s229
            $region65: #{dgcnn_forward.2} parent=58 // loop_footer_branch
              %228 = sbr.rel target = $region61
            $region66: #{dgcnn_forward.2} parent=58 // loop_exit
              _
          $region59: #{dgcnn_forward.2} parent=43 // pred_fallthru
            _
          %p252 = pneg %p224
          // Predicated region
          $region67: #{dgcnn_forward.2} parent=43 // pred_check
            _
          $region68: #{dgcnn_forward.2} parent=43 // pred_check_branch
            %254 = sbr.rel (%p224) target = $region70
          $region69: #{dgcnn_forward.2} parent=43 // pred_region
            %s255 = sand.u32 64, 7
          $region70: #{dgcnn_forward.2} parent=43 // pred_fallthru
            _
        $region44: #{dgcnn_forward.2} parent=39 // pred_fallthru
          _
        // Predicated region
        $region45: #{dgcnn_forward.2} parent=39 // pred_check
          %p208 = pneg %p204
        $region46: #{dgcnn_forward.2} parent=39 // pred_check_branch
          %210 = sbr.rel (%p208) target = $region48
        $region47: #{dgcnn_forward.2} parent=39 // pred_region
          %s211 = sshll.u32 1, 64
          %s212 = ssub.s32 %s211, 1
          loop: start=0, step=1, limit=1
          $region49: #{dgcnn_forward.2} parent=47 // loop_pre_header
            _
          $region50: #{dgcnn_forward.2} parent=47 // loop_header
            %s214 = sphi 0, %s218
            %p215 = scmp.ge.s32.totalorder %s214, 1
            %s219 = sphi %s4, %s4
            %s220 = sphi [#allocation2], [#allocation2]
          $region51: #{dgcnn_forward.2} parent=47 // loop_header_branch
            %217 = sbr.rel (%p215) target = $region55
          $region52: #{dgcnn_forward.2} parent=47 // loop_body
            %v221 = vld [vmem:[%s219] sm:%s212]
            %222 = vst [vmem:[%s220] sm:%s212] %v221
          $region53: #{dgcnn_forward.2} parent=47 // loop_footer
            %s218 = sadd.s32 1, %s214
          $region54: #{dgcnn_forward.2} parent=47 // loop_footer_branch
            %213 = sbr.rel target = $region50
          $region55: #{dgcnn_forward.2} parent=47 // loop_exit
            _
        $region48: #{dgcnn_forward.2} parent=39 // pred_fallthru
          _
        // Predicated region
        $region71: #{dgcnn_forward.2} parent=39 // pred_check
          _
        $region72: #{dgcnn_forward.2} parent=39 // pred_check_branch
          %258 = sbr.rel (0) target = $region74
        $region73: #{dgcnn_forward.2} parent=39 // pred_region
          %259 = vsyncadd [#allocation4], 1024
        $region74: #{dgcnn_forward.2} parent=39 // pred_fallthru
          _
        %s260 = smul.u32 4, 16
        %s261 = smul.u32 %s260, 1
        %s262 = sshll.u32 %s261, 4
        %263 = dma.done [#allocation4], %s262
      $region40: #{dgcnn_forward.2} parent=35 // pred_fallthru
        _
      %v264 = vld [vmem:[%s1] sm:$0xff]
      %v265 = vld [vmem:[%s1 + $0x8] sm:$0xff]
      %v266 = vld [vmem:[%s1 + $0x10] sm:$0xff]
      %v267 = vld [vmem:[%s1 + $0x18] sm:$0xff]
      %v268 = vld [vmem:[%s1 + $0x20] sm:$0xff]
      %v269 = vld [vmem:[%s1 + $0x28] sm:$0xff]
      %v270 = vld [vmem:[%s1 + $0x30] sm:$0xff]
      %v271 = vld [vmem:[%s1 + $0x38] sm:$0xff]
      %v272 = vld [vmem:[%s1 + $0x40] sm:$0xff]
      %v273 = vld [vmem:[%s1 + $0x48] sm:$0xff]
      %v274 = vld [vmem:[%s1 + $0x50] sm:$0xff]
      %v275 = vld [vmem:[%s1 + $0x58] sm:$0xff]
      %v276 = vld [vmem:[%s1 + $0x60] sm:$0xff]
      %v277 = vld [vmem:[%s1 + $0x68] sm:$0xff]
      %v278 = vld [vmem:[%s1 + $0x70] sm:$0xff]
      %v279 = vld [vmem:[%s1 + $0x78] sm:$0xff]
      // Predicated region
      $region75: #{dgcnn_forward.2} parent=35 // pred_check
        %p280 = pneg %p199
      $region76: #{dgcnn_forward.2} parent=35 // pred_check_branch
        %282 = sbr.rel (%p280) target = $region78
      $region77: #{dgcnn_forward.2} parent=35 // pred_region
        %v283 = vld [vmem:[%s0] sm:$0xff]
        %v284 = vld [vmem:[%s0 + $0x8] sm:$0xff]
        %v285 = vld [vmem:[%s0 + $0x10] sm:$0xff]
        %v286 = vld [vmem:[%s0 + $0x18] sm:$0xff]
        %v287 = vld [vmem:[%s0 + $0x20] sm:$0xff]
        %v288 = vld [vmem:[%s0 + $0x28] sm:$0xff]
        %v289 = vld [vmem:[%s0 + $0x30] sm:$0xff]
        %v290 = vld [vmem:[%s0 + $0x38] sm:$0xff]
        %v291 = vld [vmem:[%s0 + $0x40] sm:$0xff]
        %v292 = vld [vmem:[%s0 + $0x48] sm:$0xff]
        %v293 = vld [vmem:[%s0 + $0x50] sm:$0xff]
        %v294 = vld [vmem:[%s0 + $0x58] sm:$0xff]
        %v295 = vld [vmem:[%s0 + $0x60] sm:$0xff]
        %v296 = vld [vmem:[%s0 + $0x68] sm:$0xff]
        %v297 = vld [vmem:[%s0 + $0x70] sm:$0xff]
        %v298 = vld [vmem:[%s0 + $0x78] sm:$0xff]
        %300 = vset.pattern.permute.xlu0 0
        %301 = vperm.xlu0 %300, %v264
        %v302 = vpop.permute.xlu0 %301
        %305 = vset.pattern.permute.xlu0 0
        %306 = vperm.xlu0 %305, %v265
        %v307 = vpop.permute.xlu0 %306
        %310 = vset.pattern.permute.xlu0 0
        %311 = vperm.xlu0 %310, %v266
        %v312 = vpop.permute.xlu0 %311
        %315 = vset.pattern.permute.xlu0 0
        %316 = vperm.xlu0 %315, %v267
        %v317 = vpop.permute.xlu0 %316
        %320 = vset.pattern.permute.xlu0 0
        %321 = vperm.xlu0 %320, %v268
        %v322 = vpop.permute.xlu0 %321
        %325 = vset.pattern.permute.xlu0 0
        %326 = vperm.xlu0 %325, %v269
        %v327 = vpop.permute.xlu0 %326
        %330 = vset.pattern.permute.xlu0 0
        %331 = vperm.xlu0 %330, %v270
        %v332 = vpop.permute.xlu0 %331
        %335 = vset.pattern.permute.xlu0 0
        %336 = vperm.xlu0 %335, %v271
        %v337 = vpop.permute.xlu0 %336
        %340 = vset.pattern.permute.xlu0 0
        %341 = vperm.xlu0 %340, %v272
        %v342 = vpop.permute.xlu0 %341
        %345 = vset.pattern.permute.xlu0 0
        %346 = vperm.xlu0 %345, %v273
        %v347 = vpop.permute.xlu0 %346
        %350 = vset.pattern.permute.xlu0 0
        %351 = vperm.xlu0 %350, %v274
        %v352 = vpop.permute.xlu0 %351
        %355 = vset.pattern.permute.xlu0 0
        %356 = vperm.xlu0 %355, %v275
        %v357 = vpop.permute.xlu0 %356
        %360 = vset.pattern.permute.xlu0 0
        %361 = vperm.xlu0 %360, %v276
        %v362 = vpop.permute.xlu0 %361
        %365 = vset.pattern.permute.xlu0 0
        %366 = vperm.xlu0 %365, %v277
        %v367 = vpop.permute.xlu0 %366
        %370 = vset.pattern.permute.xlu0 0
        %371 = vperm.xlu0 %370, %v278
        %v372 = vpop.permute.xlu0 %371
        %375 = vset.pattern.permute.xlu0 0
        %376 = vperm.xlu0 %375, %v279
        %v377 = vpop.permute.xlu0 %376
        %v379 = vmul.f32 %v283, %v302
        %v380 = vmul.f32 %v284, %v307
        %v381 = vmul.f32 %v285, %v312
        %v382 = vmul.f32 %v286, %v317
        %v383 = vmul.f32 %v287, %v322
        %v384 = vmul.f32 %v288, %v327
        %v385 = vmul.f32 %v289, %v332
        %v386 = vmul.f32 %v290, %v337
        %v387 = vmul.f32 %v291, %v342
        %v388 = vmul.f32 %v292, %v347
        %v389 = vmul.f32 %v293, %v352
        %v390 = vmul.f32 %v294, %v357
        %v391 = vmul.f32 %v295, %v362
        %v392 = vmul.f32 %v296, %v367
        %v393 = vmul.f32 %v297, %v372
        %v394 = vmul.f32 %v298, %v377
        %v395 = vpack.c.bf16 %v380, %v379
        %v396 = vpack.c.bf16 %v382, %v381
        %v397 = vpack.c.bf16 %v384, %v383
        %v398 = vpack.c.bf16 %v386, %v385
        %v399 = vpack.c.bf16 %v388, %v387
        %v400 = vpack.c.bf16 %v390, %v389
        %v401 = vpack.c.bf16 %v392, %v391
        %v402 = vpack.c.bf16 %v394, %v393
        %v411 = vunpack.c.l.b16 %v395
        %v412 = vunpack.c.h.b16 %v395
        %v413 = vunpack.c.l.b16 %v396
        %v414 = vunpack.c.h.b16 %v396
        %v415 = vunpack.c.l.b16 %v397
        %v416 = vunpack.c.h.b16 %v397
        %v417 = vunpack.c.l.b16 %v398
        %v418 = vunpack.c.h.b16 %v398
        %v419 = vunpack.c.l.b16 %v399
        %v420 = vunpack.c.h.b16 %v399
        %v421 = vunpack.c.l.b16 %v400
        %v422 = vunpack.c.h.b16 %v400
        %v423 = vunpack.c.l.b16 %v401
        %v424 = vunpack.c.h.b16 %v401
        %v425 = vunpack.c.l.b16 %v402
        %v426 = vunpack.c.h.b16 %v402
        %v427 = vpack.c.b16 %v411, %v411
        %v428 = vpack.c.b16 %v412, %v412
        %v429 = vpack.c.b16 %v413, %v413
        %v430 = vpack.c.b16 %v414, %v414
        %v431 = vpack.c.b16 %v415, %v415
        %v432 = vpack.c.b16 %v416, %v416
        %v433 = vpack.c.b16 %v417, %v417
        %v434 = vpack.c.b16 %v418, %v418
        %v435 = vpack.c.b16 %v419, %v419
        %v436 = vpack.c.b16 %v420, %v420
        %v437 = vpack.c.b16 %v421, %v421
        %v438 = vpack.c.b16 %v422, %v422
        %v439 = vpack.c.b16 %v423, %v423
        %v440 = vpack.c.b16 %v424, %v424
        %v441 = vpack.c.b16 %v425, %v425
        %v442 = vpack.c.b16 %v426, %v426
        %vm459 = vcmask 257024
        %460 = vst.msk [vmem:[#allocation3] sm:$0xf] %vm459, %v427
        %461 = vst.msk [vmem:[#allocation3 + $0x4] sm:$0xf] %vm459, %v428
        %462 = vst.msk [vmem:[#allocation3 + $0x8] sm:$0xf] %vm459, %v429
        %463 = vst.msk [vmem:[#allocation3 + $0xc] sm:$0xf] %vm459, %v430
        %464 = vst.msk [vmem:[#allocation3 + $0x10] sm:$0xf] %vm459, %v431
        %465 = vst.msk [vmem:[#allocation3 + $0x14] sm:$0xf] %vm459, %v432
        %466 = vst.msk [vmem:[#allocation3 + $0x18] sm:$0xf] %vm459, %v433
        %467 = vst.msk [vmem:[#allocation3 + $0x1c] sm:$0xf] %vm459, %v434
        %468 = vst.msk [vmem:[#allocation3 + $0x20] sm:$0xf] %vm459, %v435
        %469 = vst.msk [vmem:[#allocation3 + $0x24] sm:$0xf] %vm459, %v436
        %470 = vst.msk [vmem:[#allocation3 + $0x28] sm:$0xf] %vm459, %v437
        %471 = vst.msk [vmem:[#allocation3 + $0x2c] sm:$0xf] %vm459, %v438
        %472 = vst.msk [vmem:[#allocation3 + $0x30] sm:$0xf] %vm459, %v439
        %473 = vst.msk [vmem:[#allocation3 + $0x34] sm:$0xf] %vm459, %v440
        %474 = vst.msk [vmem:[#allocation3 + $0x38] sm:$0xf] %vm459, %v441
        %475 = vst.msk [vmem:[#allocation3 + $0x3c] sm:$0xf] %vm459, %v442
      $region78: #{dgcnn_forward.2} parent=35 // pred_fallthru
        _
      %p476 = scmp.eq.s32.totalorder %s16, 1
      // Predicated region
      $region79: #{dgcnn_forward.2} parent=35 // pred_check
        %p477 = pneg %p476
      $region80: #{dgcnn_forward.2} parent=35 // pred_check_branch
        %479 = sbr.rel (%p477) target = $region82
      $region81: #{dgcnn_forward.2} parent=35 // pred_region
        %v480 = vld [vmem:[%s5] sm:$0xff]
        %v481 = vld [vmem:[%s5 + $0x8] sm:$0xff]
        %v482 = vld [vmem:[%s5 + $0x10] sm:$0xff]
        %v483 = vld [vmem:[%s5 + $0x18] sm:$0xff]
        %v484 = vld [vmem:[%s5 + $0x20] sm:$0xff]
        %v485 = vld [vmem:[%s5 + $0x28] sm:$0xff]
        %v486 = vld [vmem:[%s5 + $0x30] sm:$0xff]
        %v487 = vld [vmem:[%s5 + $0x38] sm:$0xff]
        %v488 = vld [vmem:[%s5 + $0x40] sm:$0xff]
        %v489 = vld [vmem:[%s5 + $0x48] sm:$0xff]
        %v490 = vld [vmem:[%s5 + $0x50] sm:$0xff]
        %v491 = vld [vmem:[%s5 + $0x58] sm:$0xff]
        %v492 = vld [vmem:[%s5 + $0x60] sm:$0xff]
        %v493 = vld [vmem:[%s5 + $0x68] sm:$0xff]
        %v494 = vld [vmem:[%s5 + $0x70] sm:$0xff]
        %v495 = vld [vmem:[%s5 + $0x78] sm:$0xff]
        %v496 = vld [vmem:[%s194] sm:$0xff]
        %v497 = vld [vmem:[%s194 + $0x8] sm:$0xff]
        %v498 = vld [vmem:[%s194 + $0x10] sm:$0xff]
        %v499 = vld [vmem:[%s194 + $0x18] sm:$0xff]
        %vm500 = vcmask 261120
        %v502 = vsel %vm500, %v480, 0
        %v505 = vsel %vm500, %v481, 0
        %v508 = vsel %vm500, %v482, 0
        %v511 = vsel %vm500, %v483, 0
        %v514 = vsel %vm500, %v484, 0
        %v517 = vsel %vm500, %v485, 0
        %v520 = vsel %vm500, %v486, 0
        %v523 = vsel %vm500, %v487, 0
        %v526 = vsel %vm500, %v488, 0
        %v529 = vsel %vm500, %v489, 0
        %v532 = vsel %vm500, %v490, 0
        %v535 = vsel %vm500, %v491, 0
        %v538 = vsel %vm500, %v492, 0
        %v541 = vsel %vm500, %v493, 0
        %v544 = vsel %vm500, %v494, 0
        %v547 = vsel %vm500, %v495, 0
        %549 = vmatprep.subr.mxu0 0.0
        %550 = vmatpush1.msra.mxu0 0.0
        %551 = vmatprep.subr.mxu0 0.0
        %552 = vmatpush1.msra.mxu0 0.0
        %553 = vmatprep.subr.mxu0 0.0
        %554 = vmatpush1.msra.mxu0 0.0
        %555 = vmatprep.subr.mxu0 0.0
        %556 = vmatpush1.msra.mxu0 0.0
        %557 = vmatprep.subr.mxu0 0.0
        %558 = vmatpush1.msra.mxu0 0.0
        %559 = vmatprep.subr.mxu0 0.0
        %560 = vmatpush1.msra.mxu0 0.0
        %561 = vmatprep.subr.mxu0 0.0
        %562 = vmatpush1.msra.mxu0 0.0
        %563 = vmatprep.subr.mxu0 0.0
        %564 = vmatpush1.msra.mxu0 0.0
        %565 = vmatprep.subr.mxu0 0.0
        %566 = vmatpush1.msra.mxu0 0.0
        %567 = vmatprep.subr.mxu0 0.0
        %568 = vmatpush1.msra.mxu0 0.0
        %569 = vmatprep.subr.mxu0 0.0
        %570 = vmatpush1.msra.mxu0 0.0
        %571 = vmatprep.subr.mxu0 0.0
        %572 = vmatpush1.msra.mxu0 0.0
        %573 = vmatprep.subr.mxu0 0.0
        %574 = vmatpush1.msra.mxu0 %v499
        %575 = vmatprep.subr.mxu0 0.0
        %576 = vmatpush1.msra.mxu0 %v498
        %577 = vmatprep.subr.mxu0 0.0
        %578 = vmatpush1.msra.mxu0 %v497
        %579 = vmatprep.subr.mxu0 0.0
        %580 = vmatpush1.msra.mxu0 %v496
        %581 = vmatprep.subr.mxu0 0.0
        %582 = vmatpush2.msra.mxu0 0.0
        %583 = vmatprep.subr.mxu0 0.0
        %584 = vmatpush2.msra.mxu0 0.0
        %585 = vmatprep.subr.mxu0 0.0
        %586 = vmatpush2.msra.mxu0 0.0
        %587 = vmatprep.subr.mxu0 0.0
        %588 = vmatpush2.msra.mxu0 0.0
        %589 = vmatprep.subr.mxu0 0.0
        %590 = vmatpush2.msra.mxu0 0.0
        %591 = vmatprep.subr.mxu0 0.0
        %592 = vmatpush2.msra.mxu0 0.0
        %593 = vmatprep.subr.mxu0 0.0
        %594 = vmatpush2.msra.mxu0 0.0
        %595 = vmatprep.subr.mxu0 0.0
        %596 = vmatpush2.msra.mxu0 0.0
        %597 = vmatprep.subr.mxu0 0.0
        %598 = vmatpush2.msra.mxu0 0.0
        %599 = vmatprep.subr.mxu0 0.0
        %600 = vmatpush2.msra.mxu0 0.0
        %601 = vmatprep.subr.mxu0 0.0
        %602 = vmatpush2.msra.mxu0 0.0
        %603 = vmatprep.subr.mxu0 0.0
        %604 = vmatpush2.msra.mxu0 0.0
        %605 = vmatprep.subr.mxu0 0.0
        %606 = vmatpush2.msra.mxu0 0.0
        %607 = vmatprep.subr.mxu0 0.0
        %608 = vmatpush2.msra.mxu0 0.0
        %609 = vmatprep.subr.mxu0 0.0
        %610 = vmatpush2.msra.mxu0 0.0
        %611 = vmatprep.subr.mxu0 0.0
        %612 = vmatpush2.msra.mxu0 0.0
        %613 = vmatprep.mubr.f32.mxu0 0.0
        %614 = vmatmul.mubr.f32.gmra.mxu0 %v502
        %v615 = vpop.f32.mrf.mxu0
        %v616 = vadd.f32 0.0, %v615
        %v617 = vpop.f32.mrf.mxu0
        %618 = vmatprep.mubr.f32.mxu0 0.0
        %619 = vmatmul.mubr.f32.gmra.mxu0 %v505
        %v620 = vpop.f32.mrf.mxu0
        %v621 = vadd.f32 0.0, %v620
        %v622 = vpop.f32.mrf.mxu0
        %623 = vmatprep.mubr.f32.mxu0 0.0
        %624 = vmatmul.mubr.f32.gmra.mxu0 %v508
        %v625 = vpop.f32.mrf.mxu0
        %v626 = vadd.f32 0.0, %v625
        %v627 = vpop.f32.mrf.mxu0
        %628 = vmatprep.mubr.f32.mxu0 0.0
        %629 = vmatmul.mubr.f32.gmra.mxu0 %v511
        %v630 = vpop.f32.mrf.mxu0
        %v631 = vadd.f32 0.0, %v630
        %v632 = vpop.f32.mrf.mxu0
        %633 = vmatprep.mubr.f32.mxu0 0.0
        %634 = vmatmul.mubr.f32.gmra.mxu0 %v514
        %v635 = vpop.f32.mrf.mxu0
        %v636 = vadd.f32 0.0, %v635
        %v637 = vpop.f32.mrf.mxu0
        %638 = vmatprep.mubr.f32.mxu0 0.0
        %639 = vmatmul.mubr.f32.gmra.mxu0 %v517
        %v640 = vpop.f32.mrf.mxu0
        %v641 = vadd.f32 0.0, %v640
        %v642 = vpop.f32.mrf.mxu0
        %643 = vmatprep.mubr.f32.mxu0 0.0
        %644 = vmatmul.mubr.f32.gmra.mxu0 %v520
        %v645 = vpop.f32.mrf.mxu0
        %v646 = vadd.f32 0.0, %v645
        %v647 = vpop.f32.mrf.mxu0
        %648 = vmatprep.mubr.f32.mxu0 0.0
        %649 = vmatmul.mubr.f32.gmra.mxu0 %v523
        %v650 = vpop.f32.mrf.mxu0
        %v651 = vadd.f32 0.0, %v650
        %v652 = vpop.f32.mrf.mxu0
        %653 = vmatprep.mubr.f32.mxu0 0.0
        %654 = vmatmul.mubr.f32.gmra.mxu0 %v526
        %v655 = vpop.f32.mrf.mxu0
        %v656 = vadd.f32 0.0, %v655
        %v657 = vpop.f32.mrf.mxu0
        %658 = vmatprep.mubr.f32.mxu0 0.0
        %659 = vmatmul.mubr.f32.gmra.mxu0 %v529
        %v660 = vpop.f32.mrf.mxu0
        %v661 = vadd.f32 0.0, %v660
        %v662 = vpop.f32.mrf.mxu0
        %663 = vmatprep.mubr.f32.mxu0 0.0
        %664 = vmatmul.mubr.f32.gmra.mxu0 %v532
        %v665 = vpop.f32.mrf.mxu0
        %v666 = vadd.f32 0.0, %v665
        %v667 = vpop.f32.mrf.mxu0
        %668 = vmatprep.mubr.f32.mxu0 0.0
        %669 = vmatmul.mubr.f32.gmra.mxu0 %v535
        %v670 = vpop.f32.mrf.mxu0
        %v671 = vadd.f32 0.0, %v670
        %v672 = vpop.f32.mrf.mxu0
        %673 = vmatprep.mubr.f32.mxu0 0.0
        %674 = vmatmul.mubr.f32.gmra.mxu0 %v538
        %v675 = vpop.f32.mrf.mxu0
        %v676 = vadd.f32 0.0, %v675
        %v677 = vpop.f32.mrf.mxu0
        %678 = vmatprep.mubr.f32.mxu0 0.0
        %679 = vmatmul.mubr.f32.gmra.mxu0 %v541
        %v680 = vpop.f32.mrf.mxu0
        %v681 = vadd.f32 0.0, %v680
        %v682 = vpop.f32.mrf.mxu0
        %683 = vmatprep.mubr.f32.mxu0 0.0
        %684 = vmatmul.mubr.f32.gmra.mxu0 %v544
        %v685 = vpop.f32.mrf.mxu0
        %v686 = vadd.f32 0.0, %v685
        %v687 = vpop.f32.mrf.mxu0
        %688 = vmatprep.mubr.f32.mxu0 0.0
        %689 = vmatmul.mubr.f32.gmra.mxu0 %v547
        %v690 = vpop.f32.mrf.mxu0
        %v691 = vadd.f32 0.0, %v690
        %v692 = vpop.f32.mrf.mxu0
        %693 = vdwg.mxu0
        %695 = vset.pattern.permute.xlu0 0
        %696 = vperm.xlu0 %695, %v264
        %v697 = vpop.permute.xlu0 %696
        %700 = vset.pattern.permute.xlu0 0
        %701 = vperm.xlu0 %700, %v265
        %v702 = vpop.permute.xlu0 %701
        %705 = vset.pattern.permute.xlu0 0
        %706 = vperm.xlu0 %705, %v266
        %v707 = vpop.permute.xlu0 %706
        %710 = vset.pattern.permute.xlu0 0
        %711 = vperm.xlu0 %710, %v267
        %v712 = vpop.permute.xlu0 %711
        %715 = vset.pattern.permute.xlu0 0
        %716 = vperm.xlu0 %715, %v268
        %v717 = vpop.permute.xlu0 %716
        %720 = vset.pattern.permute.xlu0 0
        %721 = vperm.xlu0 %720, %v269
        %v722 = vpop.permute.xlu0 %721
        %725 = vset.pattern.permute.xlu0 0
        %726 = vperm.xlu0 %725, %v270
        %v727 = vpop.permute.xlu0 %726
        %730 = vset.pattern.permute.xlu0 0
        %731 = vperm.xlu0 %730, %v271
        %v732 = vpop.permute.xlu0 %731
        %735 = vset.pattern.permute.xlu0 0
        %736 = vperm.xlu0 %735, %v272
        %v737 = vpop.permute.xlu0 %736
        %740 = vset.pattern.permute.xlu0 0
        %741 = vperm.xlu0 %740, %v273
        %v742 = vpop.permute.xlu0 %741
        %745 = vset.pattern.permute.xlu0 0
        %746 = vperm.xlu0 %745, %v274
        %v747 = vpop.permute.xlu0 %746
        %750 = vset.pattern.permute.xlu0 0
        %751 = vperm.xlu0 %750, %v275
        %v752 = vpop.permute.xlu0 %751
        %755 = vset.pattern.permute.xlu0 0
        %756 = vperm.xlu0 %755, %v276
        %v757 = vpop.permute.xlu0 %756
        %760 = vset.pattern.permute.xlu0 0
        %761 = vperm.xlu0 %760, %v277
        %v762 = vpop.permute.xlu0 %761
        %765 = vset.pattern.permute.xlu0 0
        %766 = vperm.xlu0 %765, %v278
        %v767 = vpop.permute.xlu0 %766
        %770 = vset.pattern.permute.xlu0 0
        %771 = vperm.xlu0 %770, %v279
        %v772 = vpop.permute.xlu0 %771
        %v774 = vmul.f32 %v616, %v697
        %v775 = vmul.f32 %v621, %v702
        %v776 = vmul.f32 %v626, %v707
        %v777 = vmul.f32 %v631, %v712
        %v778 = vmul.f32 %v636, %v717
        %v779 = vmul.f32 %v641, %v722
        %v780 = vmul.f32 %v646, %v727
        %v781 = vmul.f32 %v651, %v732
        %v782 = vmul.f32 %v656, %v737
        %v783 = vmul.f32 %v661, %v742
        %v784 = vmul.f32 %v666, %v747
        %v785 = vmul.f32 %v671, %v752
        %v786 = vmul.f32 %v676, %v757
        %v787 = vmul.f32 %v681, %v762
        %v788 = vmul.f32 %v686, %v767
        %v789 = vmul.f32 %v691, %v772
        %v790 = vpack.c.bf16 %v775, %v774
        %v791 = vpack.c.bf16 %v777, %v776
        %v792 = vpack.c.bf16 %v779, %v778
        %v793 = vpack.c.bf16 %v781, %v780
        %v794 = vpack.c.bf16 %v783, %v782
        %v795 = vpack.c.bf16 %v785, %v784
        %v796 = vpack.c.bf16 %v787, %v786
        %v797 = vpack.c.bf16 %v789, %v788
        %v806 = vunpack.c.l.b16 %v790
        %v807 = vunpack.c.h.b16 %v790
        %v808 = vunpack.c.l.b16 %v791
        %v809 = vunpack.c.h.b16 %v791
        %v810 = vunpack.c.l.b16 %v792
        %v811 = vunpack.c.h.b16 %v792
        %v812 = vunpack.c.l.b16 %v793
        %v813 = vunpack.c.h.b16 %v793
        %v814 = vunpack.c.l.b16 %v794
        %v815 = vunpack.c.h.b16 %v794
        %v816 = vunpack.c.l.b16 %v795
        %v817 = vunpack.c.h.b16 %v795
        %v818 = vunpack.c.l.b16 %v796
        %v819 = vunpack.c.h.b16 %v796
        %v820 = vunpack.c.l.b16 %v797
        %v821 = vunpack.c.h.b16 %v797
        %v822 = vpack.c.b16 %v806, %v806
        %v823 = vpack.c.b16 %v807, %v807
        %v824 = vpack.c.b16 %v808, %v808
        %v825 = vpack.c.b16 %v809, %v809
        %v826 = vpack.c.b16 %v810, %v810
        %v827 = vpack.c.b16 %v811, %v811
        %v828 = vpack.c.b16 %v812, %v812
        %v829 = vpack.c.b16 %v813, %v813
        %v830 = vpack.c.b16 %v814, %v814
        %v831 = vpack.c.b16 %v815, %v815
        %v832 = vpack.c.b16 %v816, %v816
        %v833 = vpack.c.b16 %v817, %v817
        %v834 = vpack.c.b16 %v818, %v818
        %v835 = vpack.c.b16 %v819, %v819
        %v836 = vpack.c.b16 %v820, %v820
        %v837 = vpack.c.b16 %v821, %v821
        %vm854 = vcmask 257024
        %855 = vst.msk [vmem:[#allocation3] sm:$0xf] %vm854, %v822
        %856 = vst.msk [vmem:[#allocation3 + $0x4] sm:$0xf] %vm854, %v823
        %857 = vst.msk [vmem:[#allocation3 + $0x8] sm:$0xf] %vm854, %v824
        %858 = vst.msk [vmem:[#allocation3 + $0xc] sm:$0xf] %vm854, %v825
        %859 = vst.msk [vmem:[#allocation3 + $0x10] sm:$0xf] %vm854, %v826
        %860 = vst.msk [vmem:[#allocation3 + $0x14] sm:$0xf] %vm854, %v827
        %861 = vst.msk [vmem:[#allocation3 + $0x18] sm:$0xf] %vm854, %v828
        %862 = vst.msk [vmem:[#allocation3 + $0x1c] sm:$0xf] %vm854, %v829
        %863 = vst.msk [vmem:[#allocation3 + $0x20] sm:$0xf] %vm854, %v830
        %864 = vst.msk [vmem:[#allocation3 + $0x24] sm:$0xf] %vm854, %v831
        %865 = vst.msk [vmem:[#allocation3 + $0x28] sm:$0xf] %vm854, %v832
        %866 = vst.msk [vmem:[#allocation3 + $0x2c] sm:$0xf] %vm854, %v833
        %867 = vst.msk [vmem:[#allocation3 + $0x30] sm:$0xf] %vm854, %v834
        %868 = vst.msk [vmem:[#allocation3 + $0x34] sm:$0xf] %vm854, %v835
        %869 = vst.msk [vmem:[#allocation3 + $0x38] sm:$0xf] %vm854, %v836
        %870 = vst.msk [vmem:[#allocation3 + $0x3c] sm:$0xf] %vm854, %v837
      $region82: #{dgcnn_forward.2} parent=35 // pred_fallthru
        _
      %p871 = scmp.eq.s32.totalorder %s16, 2
      // Predicated region
      $region83: #{dgcnn_forward.2} parent=35 // pred_check
        %p872 = pneg %p871
      $region84: #{dgcnn_forward.2} parent=35 // pred_check_branch
        %874 = sbr.rel (%p872) target = $region86
      $region85: #{dgcnn_forward.2} parent=35 // pred_region
        %v875 = vld [vmem:[%s5] sm:$0xff]
        %v876 = vld [vmem:[%s5 + $0x8] sm:$0xff]
        %v877 = vld [vmem:[%s5 + $0x10] sm:$0xff]
        %v878 = vld [vmem:[%s5 + $0x18] sm:$0xff]
        %v879 = vld [vmem:[%s5 + $0x20] sm:$0xff]
        %v880 = vld [vmem:[%s5 + $0x28] sm:$0xff]
        %v881 = vld [vmem:[%s5 + $0x30] sm:$0xff]
        %v882 = vld [vmem:[%s5 + $0x38] sm:$0xff]
        %v883 = vld [vmem:[%s5 + $0x40] sm:$0xff]
        %v884 = vld [vmem:[%s5 + $0x48] sm:$0xff]
        %v885 = vld [vmem:[%s5 + $0x50] sm:$0xff]
        %v886 = vld [vmem:[%s5 + $0x58] sm:$0xff]
        %v887 = vld [vmem:[%s5 + $0x60] sm:$0xff]
        %v888 = vld [vmem:[%s5 + $0x68] sm:$0xff]
        %v889 = vld [vmem:[%s5 + $0x70] sm:$0xff]
        %v890 = vld [vmem:[%s5 + $0x78] sm:$0xff]
        %v891 = vld [vmem:[%s194] sm:$0xff]
        %v892 = vld [vmem:[%s194 + $0x8] sm:$0xff]
        %v893 = vld [vmem:[%s194 + $0x10] sm:$0xff]
        %v894 = vld [vmem:[%s194 + $0x18] sm:$0xff]
        %911 = vrot.lane.b32.xlu0 %v875, 96
        %v912 = vpop.permute.xlu0 %911
        %913 = vrot.lane.b32.xlu0 %v876, 96
        %v914 = vpop.permute.xlu0 %913
        %915 = vrot.lane.b32.xlu0 %v877, 96
        %v916 = vpop.permute.xlu0 %915
        %917 = vrot.lane.b32.xlu0 %v878, 96
        %v918 = vpop.permute.xlu0 %917
        %919 = vrot.lane.b32.xlu0 %v879, 96
        %v920 = vpop.permute.xlu0 %919
        %921 = vrot.lane.b32.xlu0 %v880, 96
        %v922 = vpop.permute.xlu0 %921
        %923 = vrot.lane.b32.xlu0 %v881, 96
        %v924 = vpop.permute.xlu0 %923
        %925 = vrot.lane.b32.xlu0 %v882, 96
        %v926 = vpop.permute.xlu0 %925
        %927 = vrot.lane.b32.xlu0 %v883, 96
        %v928 = vpop.permute.xlu0 %927
        %929 = vrot.lane.b32.xlu0 %v884, 96
        %v930 = vpop.permute.xlu0 %929
        %931 = vrot.lane.b32.xlu0 %v885, 96
        %v932 = vpop.permute.xlu0 %931
        %933 = vrot.lane.b32.xlu0 %v886, 96
        %v934 = vpop.permute.xlu0 %933
        %935 = vrot.lane.b32.xlu0 %v887, 96
        %v936 = vpop.permute.xlu0 %935
        %937 = vrot.lane.b32.xlu0 %v888, 96
        %v938 = vpop.permute.xlu0 %937
        %939 = vrot.lane.b32.xlu0 %v889, 96
        %v940 = vpop.permute.xlu0 %939
        %941 = vrot.lane.b32.xlu0 %v890, 96
        %v942 = vpop.permute.xlu0 %941
        %vm943 = vcmask 261120
        %v944 = vsel %vm943, %v912, 0
        %v946 = vsel %vm943, %v914, 0
        %v948 = vsel %vm943, %v916, 0
        %v950 = vsel %vm943, %v918, 0
        %v952 = vsel %vm943, %v920, 0
        %v954 = vsel %vm943, %v922, 0
        %v956 = vsel %vm943, %v924, 0
        %v958 = vsel %vm943, %v926, 0
        %v960 = vsel %vm943, %v928, 0
        %v962 = vsel %vm943, %v930, 0
        %v964 = vsel %vm943, %v932, 0
        %v966 = vsel %vm943, %v934, 0
        %v968 = vsel %vm943, %v936, 0
        %v970 = vsel %vm943, %v938, 0
        %v972 = vsel %vm943, %v940, 0
        %v974 = vsel %vm943, %v942, 0
        %976 = vmatprep.subr.mxu0 0.0
        %977 = vmatpush1.msra.mxu0 0.0
        %978 = vmatprep.subr.mxu0 0.0
        %979 = vmatpush1.msra.mxu0 0.0
        %980 = vmatprep.subr.mxu0 0.0
        %981 = vmatpush1.msra.mxu0 0.0
        %982 = vmatprep.subr.mxu0 0.0
        %983 = vmatpush1.msra.mxu0 0.0
        %984 = vmatprep.subr.mxu0 0.0
        %985 = vmatpush1.msra.mxu0 0.0
        %986 = vmatprep.subr.mxu0 0.0
        %987 = vmatpush1.msra.mxu0 0.0
        %988 = vmatprep.subr.mxu0 0.0
        %989 = vmatpush1.msra.mxu0 0.0
        %990 = vmatprep.subr.mxu0 0.0
        %991 = vmatpush1.msra.mxu0 0.0
        %992 = vmatprep.subr.mxu0 0.0
        %993 = vmatpush1.msra.mxu0 0.0
        %994 = vmatprep.subr.mxu0 0.0
        %995 = vmatpush1.msra.mxu0 0.0
        %996 = vmatprep.subr.mxu0 0.0
        %997 = vmatpush1.msra.mxu0 0.0
        %998 = vmatprep.subr.mxu0 0.0
        %999 = vmatpush1.msra.mxu0 0.0
        %1000 = vmatprep.subr.mxu0 0.0
        %1001 = vmatpush1.msra.mxu0 %v894
        %1002 = vmatprep.subr.mxu0 0.0
        %1003 = vmatpush1.msra.mxu0 %v893
        %1004 = vmatprep.subr.mxu0 0.0
        %1005 = vmatpush1.msra.mxu0 %v892
        %1006 = vmatprep.subr.mxu0 0.0
        %1007 = vmatpush1.msra.mxu0 %v891
        %1008 = vmatprep.subr.mxu0 0.0
        %1009 = vmatpush2.msra.mxu0 0.0
        %1010 = vmatprep.subr.mxu0 0.0
        %1011 = vmatpush2.msra.mxu0 0.0
        %1012 = vmatprep.subr.mxu0 0.0
        %1013 = vmatpush2.msra.mxu0 0.0
        %1014 = vmatprep.subr.mxu0 0.0
        %1015 = vmatpush2.msra.mxu0 0.0
        %1016 = vmatprep.subr.mxu0 0.0
        %1017 = vmatpush2.msra.mxu0 0.0
        %1018 = vmatprep.subr.mxu0 0.0
        %1019 = vmatpush2.msra.mxu0 0.0
        %1020 = vmatprep.subr.mxu0 0.0
        %1021 = vmatpush2.msra.mxu0 0.0
        %1022 = vmatprep.subr.mxu0 0.0
        %1023 = vmatpush2.msra.mxu0 0.0
        %1024 = vmatprep.subr.mxu0 0.0
        %1025 = vmatpush2.msra.mxu0 0.0
        %1026 = vmatprep.subr.mxu0 0.0
        %1027 = vmatpush2.msra.mxu0 0.0
        %1028 = vmatprep.subr.mxu0 0.0
        %1029 = vmatpush2.msra.mxu0 0.0
        %1030 = vmatprep.subr.mxu0 0.0
        %1031 = vmatpush2.msra.mxu0 0.0
        %1032 = vmatprep.subr.mxu0 0.0
        %1033 = vmatpush2.msra.mxu0 0.0
        %1034 = vmatprep.subr.mxu0 0.0
        %1035 = vmatpush2.msra.mxu0 0.0
        %1036 = vmatprep.subr.mxu0 0.0
        %1037 = vmatpush2.msra.mxu0 0.0
        %1038 = vmatprep.subr.mxu0 0.0
        %1039 = vmatpush2.msra.mxu0 0.0
        %1040 = vmatprep.mubr.f32.mxu0 0.0
        %1041 = vmatmul.mubr.f32.gmra.mxu0 %v944
        %v1042 = vpop.f32.mrf.mxu0
        %v1043 = vadd.f32 0.0, %v1042
        %v1044 = vpop.f32.mrf.mxu0
        %1045 = vmatprep.mubr.f32.mxu0 0.0
        %1046 = vmatmul.mubr.f32.gmra.mxu0 %v946
        %v1047 = vpop.f32.mrf.mxu0
        %v1048 = vadd.f32 0.0, %v1047
        %v1049 = vpop.f32.mrf.mxu0
        %1050 = vmatprep.mubr.f32.mxu0 0.0
        %1051 = vmatmul.mubr.f32.gmra.mxu0 %v948
        %v1052 = vpop.f32.mrf.mxu0
        %v1053 = vadd.f32 0.0, %v1052
        %v1054 = vpop.f32.mrf.mxu0
        %1055 = vmatprep.mubr.f32.mxu0 0.0
        %1056 = vmatmul.mubr.f32.gmra.mxu0 %v950
        %v1057 = vpop.f32.mrf.mxu0
        %v1058 = vadd.f32 0.0, %v1057
        %v1059 = vpop.f32.mrf.mxu0
        %1060 = vmatprep.mubr.f32.mxu0 0.0
        %1061 = vmatmul.mubr.f32.gmra.mxu0 %v952
        %v1062 = vpop.f32.mrf.mxu0
        %v1063 = vadd.f32 0.0, %v1062
        %v1064 = vpop.f32.mrf.mxu0
        %1065 = vmatprep.mubr.f32.mxu0 0.0
        %1066 = vmatmul.mubr.f32.gmra.mxu0 %v954
        %v1067 = vpop.f32.mrf.mxu0
        %v1068 = vadd.f32 0.0, %v1067
        %v1069 = vpop.f32.mrf.mxu0
        %1070 = vmatprep.mubr.f32.mxu0 0.0
        %1071 = vmatmul.mubr.f32.gmra.mxu0 %v956
        %v1072 = vpop.f32.mrf.mxu0
        %v1073 = vadd.f32 0.0, %v1072
        %v1074 = vpop.f32.mrf.mxu0
        %1075 = vmatprep.mubr.f32.mxu0 0.0
        %1076 = vmatmul.mubr.f32.gmra.mxu0 %v958
        %v1077 = vpop.f32.mrf.mxu0
        %v1078 = vadd.f32 0.0, %v1077
        %v1079 = vpop.f32.mrf.mxu0
        %1080 = vmatprep.mubr.f32.mxu0 0.0
        %1081 = vmatmul.mubr.f32.gmra.mxu0 %v960
        %v1082 = vpop.f32.mrf.mxu0
        %v1083 = vadd.f32 0.0, %v1082
        %v1084 = vpop.f32.mrf.mxu0
        %1085 = vmatprep.mubr.f32.mxu0 0.0
        %1086 = vmatmul.mubr.f32.gmra.mxu0 %v962
        %v1087 = vpop.f32.mrf.mxu0
        %v1088 = vadd.f32 0.0, %v1087
        %v1089 = vpop.f32.mrf.mxu0
        %1090 = vmatprep.mubr.f32.mxu0 0.0
        %1091 = vmatmul.mubr.f32.gmra.mxu0 %v964
        %v1092 = vpop.f32.mrf.mxu0
        %v1093 = vadd.f32 0.0, %v1092
        %v1094 = vpop.f32.mrf.mxu0
        %1095 = vmatprep.mubr.f32.mxu0 0.0
        %1096 = vmatmul.mubr.f32.gmra.mxu0 %v966
        %v1097 = vpop.f32.mrf.mxu0
        %v1098 = vadd.f32 0.0, %v1097
        %v1099 = vpop.f32.mrf.mxu0
        %1100 = vmatprep.mubr.f32.mxu0 0.0
        %1101 = vmatmul.mubr.f32.gmra.mxu0 %v968
        %v1102 = vpop.f32.mrf.mxu0
        %v1103 = vadd.f32 0.0, %v1102
        %v1104 = vpop.f32.mrf.mxu0
        %1105 = vmatprep.mubr.f32.mxu0 0.0
        %1106 = vmatmul.mubr.f32.gmra.mxu0 %v970
        %v1107 = vpop.f32.mrf.mxu0
        %v1108 = vadd.f32 0.0, %v1107
        %v1109 = vpop.f32.mrf.mxu0
        %1110 = vmatprep.mubr.f32.mxu0 0.0
        %1111 = vmatmul.mubr.f32.gmra.mxu0 %v972
        %v1112 = vpop.f32.mrf.mxu0
        %v1113 = vadd.f32 0.0, %v1112
        %v1114 = vpop.f32.mrf.mxu0
        %1115 = vmatprep.mubr.f32.mxu0 0.0
        %1116 = vmatmul.mubr.f32.gmra.mxu0 %v974
        %v1117 = vpop.f32.mrf.mxu0
        %v1118 = vadd.f32 0.0, %v1117
        %v1119 = vpop.f32.mrf.mxu0
        %1120 = vdwg.mxu0
        %1122 = vset.pattern.permute.xlu0 0
        %1123 = vperm.xlu0 %1122, %v264
        %v1124 = vpop.permute.xlu0 %1123
        %1127 = vset.pattern.permute.xlu0 0
        %1128 = vperm.xlu0 %1127, %v265
        %v1129 = vpop.permute.xlu0 %1128
        %1132 = vset.pattern.permute.xlu0 0
        %1133 = vperm.xlu0 %1132, %v266
        %v1134 = vpop.permute.xlu0 %1133
        %1137 = vset.pattern.permute.xlu0 0
        %1138 = vperm.xlu0 %1137, %v267
        %v1139 = vpop.permute.xlu0 %1138
        %1142 = vset.pattern.permute.xlu0 0
        %1143 = vperm.xlu0 %1142, %v268
        %v1144 = vpop.permute.xlu0 %1143
        %1147 = vset.pattern.permute.xlu0 0
        %1148 = vperm.xlu0 %1147, %v269
        %v1149 = vpop.permute.xlu0 %1148
        %1152 = vset.pattern.permute.xlu0 0
        %1153 = vperm.xlu0 %1152, %v270
        %v1154 = vpop.permute.xlu0 %1153
        %1157 = vset.pattern.permute.xlu0 0
        %1158 = vperm.xlu0 %1157, %v271
        %v1159 = vpop.permute.xlu0 %1158
        %1162 = vset.pattern.permute.xlu0 0
        %1163 = vperm.xlu0 %1162, %v272
        %v1164 = vpop.permute.xlu0 %1163
        %1167 = vset.pattern.permute.xlu0 0
        %1168 = vperm.xlu0 %1167, %v273
        %v1169 = vpop.permute.xlu0 %1168
        %1172 = vset.pattern.permute.xlu0 0
        %1173 = vperm.xlu0 %1172, %v274
        %v1174 = vpop.permute.xlu0 %1173
        %1177 = vset.pattern.permute.xlu0 0
        %1178 = vperm.xlu0 %1177, %v275
        %v1179 = vpop.permute.xlu0 %1178
        %1182 = vset.pattern.permute.xlu0 0
        %1183 = vperm.xlu0 %1182, %v276
        %v1184 = vpop.permute.xlu0 %1183
        %1187 = vset.pattern.permute.xlu0 0
        %1188 = vperm.xlu0 %1187, %v277
        %v1189 = vpop.permute.xlu0 %1188
        %1192 = vset.pattern.permute.xlu0 0
        %1193 = vperm.xlu0 %1192, %v278
        %v1194 = vpop.permute.xlu0 %1193
        %1197 = vset.pattern.permute.xlu0 0
        %1198 = vperm.xlu0 %1197, %v279
        %v1199 = vpop.permute.xlu0 %1198
        %v1201 = vmul.f32 %v1043, %v1124
        %v1202 = vmul.f32 %v1048, %v1129
        %v1203 = vmul.f32 %v1053, %v1134
        %v1204 = vmul.f32 %v1058, %v1139
        %v1205 = vmul.f32 %v1063, %v1144
        %v1206 = vmul.f32 %v1068, %v1149
        %v1207 = vmul.f32 %v1073, %v1154
        %v1208 = vmul.f32 %v1078, %v1159
        %v1209 = vmul.f32 %v1083, %v1164
        %v1210 = vmul.f32 %v1088, %v1169
        %v1211 = vmul.f32 %v1093, %v1174
        %v1212 = vmul.f32 %v1098, %v1179
        %v1213 = vmul.f32 %v1103, %v1184
        %v1214 = vmul.f32 %v1108, %v1189
        %v1215 = vmul.f32 %v1113, %v1194
        %v1216 = vmul.f32 %v1118, %v1199
        %v1217 = vpack.c.bf16 %v1202, %v1201
        %v1218 = vpack.c.bf16 %v1204, %v1203
        %v1219 = vpack.c.bf16 %v1206, %v1205
        %v1220 = vpack.c.bf16 %v1208, %v1207
        %v1221 = vpack.c.bf16 %v1210, %v1209
        %v1222 = vpack.c.bf16 %v1212, %v1211
        %v1223 = vpack.c.bf16 %v1214, %v1213
        %v1224 = vpack.c.bf16 %v1216, %v1215
        %v1233 = vunpack.c.l.b16 %v1217
        %v1234 = vunpack.c.h.b16 %v1217
        %v1235 = vunpack.c.l.b16 %v1218
        %v1236 = vunpack.c.h.b16 %v1218
        %v1237 = vunpack.c.l.b16 %v1219
        %v1238 = vunpack.c.h.b16 %v1219
        %v1239 = vunpack.c.l.b16 %v1220
        %v1240 = vunpack.c.h.b16 %v1220
        %v1241 = vunpack.c.l.b16 %v1221
        %v1242 = vunpack.c.h.b16 %v1221
        %v1243 = vunpack.c.l.b16 %v1222
        %v1244 = vunpack.c.h.b16 %v1222
        %v1245 = vunpack.c.l.b16 %v1223
        %v1246 = vunpack.c.h.b16 %v1223
        %v1247 = vunpack.c.l.b16 %v1224
        %v1248 = vunpack.c.h.b16 %v1224
        %v1249 = vpack.c.b16 %v1233, %v1233
        %v1250 = vpack.c.b16 %v1234, %v1234
        %v1251 = vpack.c.b16 %v1235, %v1235
        %v1252 = vpack.c.b16 %v1236, %v1236
        %v1253 = vpack.c.b16 %v1237, %v1237
        %v1254 = vpack.c.b16 %v1238, %v1238
        %v1255 = vpack.c.b16 %v1239, %v1239
        %v1256 = vpack.c.b16 %v1240, %v1240
        %v1257 = vpack.c.b16 %v1241, %v1241
        %v1258 = vpack.c.b16 %v1242, %v1242
        %v1259 = vpack.c.b16 %v1243, %v1243
        %v1260 = vpack.c.b16 %v1244, %v1244
        %v1261 = vpack.c.b16 %v1245, %v1245
        %v1262 = vpack.c.b16 %v1246, %v1246
        %v1263 = vpack.c.b16 %v1247, %v1247
        %v1264 = vpack.c.b16 %v1248, %v1248
        %vm1281 = vcmask 257024
        %1282 = vst.msk [vmem:[#allocation3] sm:$0xf] %vm1281, %v1249
        %1283 = vst.msk [vmem:[#allocation3 + $0x4] sm:$0xf] %vm1281, %v1250
        %1284 = vst.msk [vmem:[#allocation3 + $0x8] sm:$0xf] %vm1281, %v1251
        %1285 = vst.msk [vmem:[#allocation3 + $0xc] sm:$0xf] %vm1281, %v1252
        %1286 = vst.msk [vmem:[#allocation3 + $0x10] sm:$0xf] %vm1281, %v1253
        %1287 = vst.msk [vmem:[#allocation3 + $0x14] sm:$0xf] %vm1281, %v1254
        %1288 = vst.msk [vmem:[#allocation3 + $0x18] sm:$0xf] %vm1281, %v1255
        %1289 = vst.msk [vmem:[#allocation3 + $0x1c] sm:$0xf] %vm1281, %v1256
        %1290 = vst.msk [vmem:[#allocation3 + $0x20] sm:$0xf] %vm1281, %v1257
        %1291 = vst.msk [vmem:[#allocation3 + $0x24] sm:$0xf] %vm1281, %v1258
        %1292 = vst.msk [vmem:[#allocation3 + $0x28] sm:$0xf] %vm1281, %v1259
        %1293 = vst.msk [vmem:[#allocation3 + $0x2c] sm:$0xf] %vm1281, %v1260
        %1294 = vst.msk [vmem:[#allocation3 + $0x30] sm:$0xf] %vm1281, %v1261
        %1295 = vst.msk [vmem:[#allocation3 + $0x34] sm:$0xf] %vm1281, %v1262
        %1296 = vst.msk [vmem:[#allocation3 + $0x38] sm:$0xf] %vm1281, %v1263
        %1297 = vst.msk [vmem:[#allocation3 + $0x3c] sm:$0xf] %vm1281, %v1264
      $region86: #{dgcnn_forward.2} parent=35 // pred_fallthru
        _
      %p1298 = scmp.eq.s32.totalorder %s16, 3
      // Predicated region
      $region87: #{dgcnn_forward.2} parent=35 // pred_check
        %p1299 = pneg %p1298
      $region88: #{dgcnn_forward.2} parent=35 // pred_check_branch
        %1301 = sbr.rel (%p1299) target = $region90
      $region89: #{dgcnn_forward.2} parent=35 // pred_region
        %v1302 = vld [vmem:[%s5] sm:$0xff]
        %v1303 = vld [vmem:[%s5 + $0x8] sm:$0xff]
        %v1304 = vld [vmem:[%s5 + $0x10] sm:$0xff]
        %v1305 = vld [vmem:[%s5 + $0x18] sm:$0xff]
        %v1306 = vld [vmem:[%s5 + $0x20] sm:$0xff]
        %v1307 = vld [vmem:[%s5 + $0x28] sm:$0xff]
        %v1308 = vld [vmem:[%s5 + $0x30] sm:$0xff]
        %v1309 = vld [vmem:[%s5 + $0x38] sm:$0xff]
        %v1310 = vld [vmem:[%s5 + $0x40] sm:$0xff]
        %v1311 = vld [vmem:[%s5 + $0x48] sm:$0xff]
        %v1312 = vld [vmem:[%s5 + $0x50] sm:$0xff]
        %v1313 = vld [vmem:[%s5 + $0x58] sm:$0xff]
        %v1314 = vld [vmem:[%s5 + $0x60] sm:$0xff]
        %v1315 = vld [vmem:[%s5 + $0x68] sm:$0xff]
        %v1316 = vld [vmem:[%s5 + $0x70] sm:$0xff]
        %v1317 = vld [vmem:[%s5 + $0x78] sm:$0xff]
        %v1318 = vld [vmem:[%s194] sm:$0xff]
        %v1319 = vld [vmem:[%s194 + $0x8] sm:$0xff]
        %v1320 = vld [vmem:[%s194 + $0x10] sm:$0xff]
        %v1321 = vld [vmem:[%s194 + $0x18] sm:$0xff]
        %1338 = vrot.lane.b32.xlu0 %v1302, 64
        %v1339 = vpop.permute.xlu0 %1338
        %1340 = vrot.lane.b32.xlu0 %v1303, 64
        %v1341 = vpop.permute.xlu0 %1340
        %1342 = vrot.lane.b32.xlu0 %v1304, 64
        %v1343 = vpop.permute.xlu0 %1342
        %1344 = vrot.lane.b32.xlu0 %v1305, 64
        %v1345 = vpop.permute.xlu0 %1344
        %1346 = vrot.lane.b32.xlu0 %v1306, 64
        %v1347 = vpop.permute.xlu0 %1346
        %1348 = vrot.lane.b32.xlu0 %v1307, 64
        %v1349 = vpop.permute.xlu0 %1348
        %1350 = vrot.lane.b32.xlu0 %v1308, 64
        %v1351 = vpop.permute.xlu0 %1350
        %1352 = vrot.lane.b32.xlu0 %v1309, 64
        %v1353 = vpop.permute.xlu0 %1352
        %1354 = vrot.lane.b32.xlu0 %v1310, 64
        %v1355 = vpop.permute.xlu0 %1354
        %1356 = vrot.lane.b32.xlu0 %v1311, 64
        %v1357 = vpop.permute.xlu0 %1356
        %1358 = vrot.lane.b32.xlu0 %v1312, 64
        %v1359 = vpop.permute.xlu0 %1358
        %1360 = vrot.lane.b32.xlu0 %v1313, 64
        %v1361 = vpop.permute.xlu0 %1360
        %1362 = vrot.lane.b32.xlu0 %v1314, 64
        %v1363 = vpop.permute.xlu0 %1362
        %1364 = vrot.lane.b32.xlu0 %v1315, 64
        %v1365 = vpop.permute.xlu0 %1364
        %1366 = vrot.lane.b32.xlu0 %v1316, 64
        %v1367 = vpop.permute.xlu0 %1366
        %1368 = vrot.lane.b32.xlu0 %v1317, 64
        %v1369 = vpop.permute.xlu0 %1368
        %vm1370 = vcmask 261120
        %v1371 = vsel %vm1370, %v1339, 0
        %v1373 = vsel %vm1370, %v1341, 0
        %v1375 = vsel %vm1370, %v1343, 0
        %v1377 = vsel %vm1370, %v1345, 0
        %v1379 = vsel %vm1370, %v1347, 0
        %v1381 = vsel %vm1370, %v1349, 0
        %v1383 = vsel %vm1370, %v1351, 0
        %v1385 = vsel %vm1370, %v1353, 0
        %v1387 = vsel %vm1370, %v1355, 0
        %v1389 = vsel %vm1370, %v1357, 0
        %v1391 = vsel %vm1370, %v1359, 0
        %v1393 = vsel %vm1370, %v1361, 0
        %v1395 = vsel %vm1370, %v1363, 0
        %v1397 = vsel %vm1370, %v1365, 0
        %v1399 = vsel %vm1370, %v1367, 0
        %v1401 = vsel %vm1370, %v1369, 0
        %1403 = vmatprep.subr.mxu0 0.0
        %1404 = vmatpush1.msra.mxu0 0.0
        %1405 = vmatprep.subr.mxu0 0.0
        %1406 = vmatpush1.msra.mxu0 0.0
        %1407 = vmatprep.subr.mxu0 0.0
        %1408 = vmatpush1.msra.mxu0 0.0
        %1409 = vmatprep.subr.mxu0 0.0
        %1410 = vmatpush1.msra.mxu0 0.0
        %1411 = vmatprep.subr.mxu0 0.0
        %1412 = vmatpush1.msra.mxu0 0.0
        %1413 = vmatprep.subr.mxu0 0.0
        %1414 = vmatpush1.msra.mxu0 0.0
        %1415 = vmatprep.subr.mxu0 0.0
        %1416 = vmatpush1.msra.mxu0 0.0
        %1417 = vmatprep.subr.mxu0 0.0
        %1418 = vmatpush1.msra.mxu0 0.0
        %1419 = vmatprep.subr.mxu0 0.0
        %1420 = vmatpush1.msra.mxu0 0.0
        %1421 = vmatprep.subr.mxu0 0.0
        %1422 = vmatpush1.msra.mxu0 0.0
        %1423 = vmatprep.subr.mxu0 0.0
        %1424 = vmatpush1.msra.mxu0 0.0
        %1425 = vmatprep.subr.mxu0 0.0
        %1426 = vmatpush1.msra.mxu0 0.0
        %1427 = vmatprep.subr.mxu0 0.0
        %1428 = vmatpush1.msra.mxu0 %v1321
        %1429 = vmatprep.subr.mxu0 0.0
        %1430 = vmatpush1.msra.mxu0 %v1320
        %1431 = vmatprep.subr.mxu0 0.0
        %1432 = vmatpush1.msra.mxu0 %v1319
        %1433 = vmatprep.subr.mxu0 0.0
        %1434 = vmatpush1.msra.mxu0 %v1318
        %1435 = vmatprep.subr.mxu0 0.0
        %1436 = vmatpush2.msra.mxu0 0.0
        %1437 = vmatprep.subr.mxu0 0.0
        %1438 = vmatpush2.msra.mxu0 0.0
        %1439 = vmatprep.subr.mxu0 0.0
        %1440 = vmatpush2.msra.mxu0 0.0
        %1441 = vmatprep.subr.mxu0 0.0
        %1442 = vmatpush2.msra.mxu0 0.0
        %1443 = vmatprep.subr.mxu0 0.0
        %1444 = vmatpush2.msra.mxu0 0.0
        %1445 = vmatprep.subr.mxu0 0.0
        %1446 = vmatpush2.msra.mxu0 0.0
        %1447 = vmatprep.subr.mxu0 0.0
        %1448 = vmatpush2.msra.mxu0 0.0
        %1449 = vmatprep.subr.mxu0 0.0
        %1450 = vmatpush2.msra.mxu0 0.0
        %1451 = vmatprep.subr.mxu0 0.0
        %1452 = vmatpush2.msra.mxu0 0.0
        %1453 = vmatprep.subr.mxu0 0.0
        %1454 = vmatpush2.msra.mxu0 0.0
        %1455 = vmatprep.subr.mxu0 0.0
        %1456 = vmatpush2.msra.mxu0 0.0
        %1457 = vmatprep.subr.mxu0 0.0
        %1458 = vmatpush2.msra.mxu0 0.0
        %1459 = vmatprep.subr.mxu0 0.0
        %1460 = vmatpush2.msra.mxu0 0.0
        %1461 = vmatprep.subr.mxu0 0.0
        %1462 = vmatpush2.msra.mxu0 0.0
        %1463 = vmatprep.subr.mxu0 0.0
        %1464 = vmatpush2.msra.mxu0 0.0
        %1465 = vmatprep.subr.mxu0 0.0
        %1466 = vmatpush2.msra.mxu0 0.0
        %1467 = vmatprep.mubr.f32.mxu0 0.0
        %1468 = vmatmul.mubr.f32.gmra.mxu0 %v1371
        %v1469 = vpop.f32.mrf.mxu0
        %v1470 = vadd.f32 0.0, %v1469
        %v1471 = vpop.f32.mrf.mxu0
        %1472 = vmatprep.mubr.f32.mxu0 0.0
        %1473 = vmatmul.mubr.f32.gmra.mxu0 %v1373
        %v1474 = vpop.f32.mrf.mxu0
        %v1475 = vadd.f32 0.0, %v1474
        %v1476 = vpop.f32.mrf.mxu0
        %1477 = vmatprep.mubr.f32.mxu0 0.0
        %1478 = vmatmul.mubr.f32.gmra.mxu0 %v1375
        %v1479 = vpop.f32.mrf.mxu0
        %v1480 = vadd.f32 0.0, %v1479
        %v1481 = vpop.f32.mrf.mxu0
        %1482 = vmatprep.mubr.f32.mxu0 0.0
        %1483 = vmatmul.mubr.f32.gmra.mxu0 %v1377
        %v1484 = vpop.f32.mrf.mxu0
        %v1485 = vadd.f32 0.0, %v1484
        %v1486 = vpop.f32.mrf.mxu0
        %1487 = vmatprep.mubr.f32.mxu0 0.0
        %1488 = vmatmul.mubr.f32.gmra.mxu0 %v1379
        %v1489 = vpop.f32.mrf.mxu0
        %v1490 = vadd.f32 0.0, %v1489
        %v1491 = vpop.f32.mrf.mxu0
        %1492 = vmatprep.mubr.f32.mxu0 0.0
        %1493 = vmatmul.mubr.f32.gmra.mxu0 %v1381
        %v1494 = vpop.f32.mrf.mxu0
        %v1495 = vadd.f32 0.0, %v1494
        %v1496 = vpop.f32.mrf.mxu0
        %1497 = vmatprep.mubr.f32.mxu0 0.0
        %1498 = vmatmul.mubr.f32.gmra.mxu0 %v1383
        %v1499 = vpop.f32.mrf.mxu0
        %v1500 = vadd.f32 0.0, %v1499
        %v1501 = vpop.f32.mrf.mxu0
        %1502 = vmatprep.mubr.f32.mxu0 0.0
        %1503 = vmatmul.mubr.f32.gmra.mxu0 %v1385
        %v1504 = vpop.f32.mrf.mxu0
        %v1505 = vadd.f32 0.0, %v1504
        %v1506 = vpop.f32.mrf.mxu0
        %1507 = vmatprep.mubr.f32.mxu0 0.0
        %1508 = vmatmul.mubr.f32.gmra.mxu0 %v1387
        %v1509 = vpop.f32.mrf.mxu0
        %v1510 = vadd.f32 0.0, %v1509
        %v1511 = vpop.f32.mrf.mxu0
        %1512 = vmatprep.mubr.f32.mxu0 0.0
        %1513 = vmatmul.mubr.f32.gmra.mxu0 %v1389
        %v1514 = vpop.f32.mrf.mxu0
        %v1515 = vadd.f32 0.0, %v1514
        %v1516 = vpop.f32.mrf.mxu0
        %1517 = vmatprep.mubr.f32.mxu0 0.0
        %1518 = vmatmul.mubr.f32.gmra.mxu0 %v1391
        %v1519 = vpop.f32.mrf.mxu0
        %v1520 = vadd.f32 0.0, %v1519
        %v1521 = vpop.f32.mrf.mxu0
        %1522 = vmatprep.mubr.f32.mxu0 0.0
        %1523 = vmatmul.mubr.f32.gmra.mxu0 %v1393
        %v1524 = vpop.f32.mrf.mxu0
        %v1525 = vadd.f32 0.0, %v1524
        %v1526 = vpop.f32.mrf.mxu0
        %1527 = vmatprep.mubr.f32.mxu0 0.0
        %1528 = vmatmul.mubr.f32.gmra.mxu0 %v1395
        %v1529 = vpop.f32.mrf.mxu0
        %v1530 = vadd.f32 0.0, %v1529
        %v1531 = vpop.f32.mrf.mxu0
        %1532 = vmatprep.mubr.f32.mxu0 0.0
        %1533 = vmatmul.mubr.f32.gmra.mxu0 %v1397
        %v1534 = vpop.f32.mrf.mxu0
        %v1535 = vadd.f32 0.0, %v1534
        %v1536 = vpop.f32.mrf.mxu0
        %1537 = vmatprep.mubr.f32.mxu0 0.0
        %1538 = vmatmul.mubr.f32.gmra.mxu0 %v1399
        %v1539 = vpop.f32.mrf.mxu0
        %v1540 = vadd.f32 0.0, %v1539
        %v1541 = vpop.f32.mrf.mxu0
        %1542 = vmatprep.mubr.f32.mxu0 0.0
        %1543 = vmatmul.mubr.f32.gmra.mxu0 %v1401
        %v1544 = vpop.f32.mrf.mxu0
        %v1545 = vadd.f32 0.0, %v1544
        %v1546 = vpop.f32.mrf.mxu0
        %1547 = vdwg.mxu0
        %1549 = vset.pattern.permute.xlu0 0
        %1550 = vperm.xlu0 %1549, %v264
        %v1551 = vpop.permute.xlu0 %1550
        %1554 = vset.pattern.permute.xlu0 0
        %1555 = vperm.xlu0 %1554, %v265
        %v1556 = vpop.permute.xlu0 %1555
        %1559 = vset.pattern.permute.xlu0 0
        %1560 = vperm.xlu0 %1559, %v266
        %v1561 = vpop.permute.xlu0 %1560
        %1564 = vset.pattern.permute.xlu0 0
        %1565 = vperm.xlu0 %1564, %v267
        %v1566 = vpop.permute.xlu0 %1565
        %1569 = vset.pattern.permute.xlu0 0
        %1570 = vperm.xlu0 %1569, %v268
        %v1571 = vpop.permute.xlu0 %1570
        %1574 = vset.pattern.permute.xlu0 0
        %1575 = vperm.xlu0 %1574, %v269
        %v1576 = vpop.permute.xlu0 %1575
        %1579 = vset.pattern.permute.xlu0 0
        %1580 = vperm.xlu0 %1579, %v270
        %v1581 = vpop.permute.xlu0 %1580
        %1584 = vset.pattern.permute.xlu0 0
        %1585 = vperm.xlu0 %1584, %v271
        %v1586 = vpop.permute.xlu0 %1585
        %1589 = vset.pattern.permute.xlu0 0
        %1590 = vperm.xlu0 %1589, %v272
        %v1591 = vpop.permute.xlu0 %1590
        %1594 = vset.pattern.permute.xlu0 0
        %1595 = vperm.xlu0 %1594, %v273
        %v1596 = vpop.permute.xlu0 %1595
        %1599 = vset.pattern.permute.xlu0 0
        %1600 = vperm.xlu0 %1599, %v274
        %v1601 = vpop.permute.xlu0 %1600
        %1604 = vset.pattern.permute.xlu0 0
        %1605 = vperm.xlu0 %1604, %v275
        %v1606 = vpop.permute.xlu0 %1605
        %1609 = vset.pattern.permute.xlu0 0
        %1610 = vperm.xlu0 %1609, %v276
        %v1611 = vpop.permute.xlu0 %1610
        %1614 = vset.pattern.permute.xlu0 0
        %1615 = vperm.xlu0 %1614, %v277
        %v1616 = vpop.permute.xlu0 %1615
        %1619 = vset.pattern.permute.xlu0 0
        %1620 = vperm.xlu0 %1619, %v278
        %v1621 = vpop.permute.xlu0 %1620
        %1624 = vset.pattern.permute.xlu0 0
        %1625 = vperm.xlu0 %1624, %v279
        %v1626 = vpop.permute.xlu0 %1625
        %v1628 = vmul.f32 %v1470, %v1551
        %v1629 = vmul.f32 %v1475, %v1556
        %v1630 = vmul.f32 %v1480, %v1561
        %v1631 = vmul.f32 %v1485, %v1566
        %v1632 = vmul.f32 %v1490, %v1571
        %v1633 = vmul.f32 %v1495, %v1576
        %v1634 = vmul.f32 %v1500, %v1581
        %v1635 = vmul.f32 %v1505, %v1586
        %v1636 = vmul.f32 %v1510, %v1591
        %v1637 = vmul.f32 %v1515, %v1596
        %v1638 = vmul.f32 %v1520, %v1601
        %v1639 = vmul.f32 %v1525, %v1606
        %v1640 = vmul.f32 %v1530, %v1611
        %v1641 = vmul.f32 %v1535, %v1616
        %v1642 = vmul.f32 %v1540, %v1621
        %v1643 = vmul.f32 %v1545, %v1626
        %v1644 = vpack.c.bf16 %v1629, %v1628
        %v1645 = vpack.c.bf16 %v1631, %v1630
        %v1646 = vpack.c.bf16 %v1633, %v1632
        %v1647 = vpack.c.bf16 %v1635, %v1634
        %v1648 = vpack.c.bf16 %v1637, %v1636
        %v1649 = vpack.c.bf16 %v1639, %v1638
        %v1650 = vpack.c.bf16 %v1641, %v1640
        %v1651 = vpack.c.bf16 %v1643, %v1642
        %v1660 = vunpack.c.l.b16 %v1644
        %v1661 = vunpack.c.h.b16 %v1644
        %v1662 = vunpack.c.l.b16 %v1645
        %v1663 = vunpack.c.h.b16 %v1645
        %v1664 = vunpack.c.l.b16 %v1646
        %v1665 = vunpack.c.h.b16 %v1646
        %v1666 = vunpack.c.l.b16 %v1647
        %v1667 = vunpack.c.h.b16 %v1647
        %v1668 = vunpack.c.l.b16 %v1648
        %v1669 = vunpack.c.h.b16 %v1648
        %v1670 = vunpack.c.l.b16 %v1649
        %v1671 = vunpack.c.h.b16 %v1649
        %v1672 = vunpack.c.l.b16 %v1650
        %v1673 = vunpack.c.h.b16 %v1650
        %v1674 = vunpack.c.l.b16 %v1651
        %v1675 = vunpack.c.h.b16 %v1651
        %v1676 = vpack.c.b16 %v1660, %v1660
        %v1677 = vpack.c.b16 %v1661, %v1661
        %v1678 = vpack.c.b16 %v1662, %v1662
        %v1679 = vpack.c.b16 %v1663, %v1663
        %v1680 = vpack.c.b16 %v1664, %v1664
        %v1681 = vpack.c.b16 %v1665, %v1665
        %v1682 = vpack.c.b16 %v1666, %v1666
        %v1683 = vpack.c.b16 %v1667, %v1667
        %v1684 = vpack.c.b16 %v1668, %v1668
        %v1685 = vpack.c.b16 %v1669, %v1669
        %v1686 = vpack.c.b16 %v1670, %v1670
        %v1687 = vpack.c.b16 %v1671, %v1671
        %v1688 = vpack.c.b16 %v1672, %v1672
        %v1689 = vpack.c.b16 %v1673, %v1673
        %v1690 = vpack.c.b16 %v1674, %v1674
        %v1691 = vpack.c.b16 %v1675, %v1675
        %vm1708 = vcmask 257024
        %1709 = vst.msk [vmem:[#allocation3] sm:$0xf] %vm1708, %v1676
        %1710 = vst.msk [vmem:[#allocation3 + $0x4] sm:$0xf] %vm1708, %v1677
        %1711 = vst.msk [vmem:[#allocation3 + $0x8] sm:$0xf] %vm1708, %v1678
        %1712 = vst.msk [vmem:[#allocation3 + $0xc] sm:$0xf] %vm1708, %v1679
        %1713 = vst.msk [vmem:[#allocation3 + $0x10] sm:$0xf] %vm1708, %v1680
        %1714 = vst.msk [vmem:[#allocation3 + $0x14] sm:$0xf] %vm1708, %v1681
        %1715 = vst.msk [vmem:[#allocation3 + $0x18] sm:$0xf] %vm1708, %v1682
        %1716 = vst.msk [vmem:[#allocation3 + $0x1c] sm:$0xf] %vm1708, %v1683
        %1717 = vst.msk [vmem:[#allocation3 + $0x20] sm:$0xf] %vm1708, %v1684
        %1718 = vst.msk [vmem:[#allocation3 + $0x24] sm:$0xf] %vm1708, %v1685
        %1719 = vst.msk [vmem:[#allocation3 + $0x28] sm:$0xf] %vm1708, %v1686
        %1720 = vst.msk [vmem:[#allocation3 + $0x2c] sm:$0xf] %vm1708, %v1687
        %1721 = vst.msk [vmem:[#allocation3 + $0x30] sm:$0xf] %vm1708, %v1688
        %1722 = vst.msk [vmem:[#allocation3 + $0x34] sm:$0xf] %vm1708, %v1689
        %1723 = vst.msk [vmem:[#allocation3 + $0x38] sm:$0xf] %vm1708, %v1690
        %1724 = vst.msk [vmem:[#allocation3 + $0x3c] sm:$0xf] %vm1708, %v1691
      $region90: #{dgcnn_forward.2} parent=35 // pred_fallthru
        _
      %v1725 = vld [vmem:[#allocation2] sm:$0xf]
      %v1726 = vld [vmem:[#allocation2 + $0x4] sm:$0xf]
      %v1727 = vld [vmem:[#allocation2 + $0x8] sm:$0xf]
      %v1728 = vld [vmem:[#allocation2 + $0xc] sm:$0xf]
      %v1729 = vld [vmem:[#allocation2 + $0x10] sm:$0xf]
      %v1730 = vld [vmem:[#allocation2 + $0x14] sm:$0xf]
      %v1731 = vld [vmem:[#allocation2 + $0x18] sm:$0xf]
      %v1732 = vld [vmem:[#allocation2 + $0x1c] sm:$0xf]
      %v1733 = vld [vmem:[#allocation2 + $0x20] sm:$0xf]
      %v1734 = vld [vmem:[#allocation2 + $0x24] sm:$0xf]
      %v1735 = vld [vmem:[#allocation2 + $0x28] sm:$0xf]
      %v1736 = vld [vmem:[#allocation2 + $0x2c] sm:$0xf]
      %v1737 = vld [vmem:[#allocation2 + $0x30] sm:$0xf]
      %v1738 = vld [vmem:[#allocation2 + $0x34] sm:$0xf]
      %v1739 = vld [vmem:[#allocation2 + $0x38] sm:$0xf]
      %v1740 = vld [vmem:[#allocation2 + $0x3c] sm:$0xf]
      %v1741 = vld [vmem:[#allocation3] sm:$0xf]
      %v1742 = vld [vmem:[#allocation3 + $0x4] sm:$0xf]
      %v1743 = vld [vmem:[#allocation3 + $0x8] sm:$0xf]
      %v1744 = vld [vmem:[#allocation3 + $0xc] sm:$0xf]
      %v1745 = vld [vmem:[#allocation3 + $0x10] sm:$0xf]
      %v1746 = vld [vmem:[#allocation3 + $0x14] sm:$0xf]
      %v1747 = vld [vmem:[#allocation3 + $0x18] sm:$0xf]
      %v1748 = vld [vmem:[#allocation3 + $0x1c] sm:$0xf]
      %v1749 = vld [vmem:[#allocation3 + $0x20] sm:$0xf]
      %v1750 = vld [vmem:[#allocation3 + $0x24] sm:$0xf]
      %v1751 = vld [vmem:[#allocation3 + $0x28] sm:$0xf]
      %v1752 = vld [vmem:[#allocation3 + $0x2c] sm:$0xf]
      %v1753 = vld [vmem:[#allocation3 + $0x30] sm:$0xf]
      %v1754 = vld [vmem:[#allocation3 + $0x34] sm:$0xf]
      %v1755 = vld [vmem:[#allocation3 + $0x38] sm:$0xf]
      %v1756 = vld [vmem:[#allocation3 + $0x3c] sm:$0xf]
      %v1773 = vunpack.c.l.b16 %v1725
      %v1774 = vunpack.c.l.b16 %v1726
      %v1775 = vunpack.c.l.b16 %v1727
      %v1776 = vunpack.c.l.b16 %v1728
      %v1777 = vunpack.c.l.b16 %v1729
      %v1778 = vunpack.c.l.b16 %v1730
      %v1779 = vunpack.c.l.b16 %v1731
      %v1780 = vunpack.c.l.b16 %v1732
      %v1781 = vunpack.c.l.b16 %v1733
      %v1782 = vunpack.c.l.b16 %v1734
      %v1783 = vunpack.c.l.b16 %v1735
      %v1784 = vunpack.c.l.b16 %v1736
      %v1785 = vunpack.c.l.b16 %v1737
      %v1786 = vunpack.c.l.b16 %v1738
      %v1787 = vunpack.c.l.b16 %v1739
      %v1788 = vunpack.c.l.b16 %v1740
      %v1789 = vpack.c.b16 %v1774, %v1773
      %v1790 = vpack.c.b16 %v1776, %v1775
      %v1791 = vpack.c.b16 %v1778, %v1777
      %v1792 = vpack.c.b16 %v1780, %v1779
      %v1793 = vpack.c.b16 %v1782, %v1781
      %v1794 = vpack.c.b16 %v1784, %v1783
      %v1795 = vpack.c.b16 %v1786, %v1785
      %v1796 = vpack.c.b16 %v1788, %v1787
      %v1821 = vunpack.c.l.b16 %v1741
      %v1822 = vunpack.c.l.b16 %v1742
      %v1823 = vunpack.c.l.b16 %v1743
      %v1824 = vunpack.c.l.b16 %v1744
      %v1825 = vunpack.c.l.b16 %v1745
      %v1826 = vunpack.c.l.b16 %v1746
      %v1827 = vunpack.c.l.b16 %v1747
      %v1828 = vunpack.c.l.b16 %v1748
      %v1829 = vunpack.c.l.b16 %v1749
      %v1830 = vunpack.c.l.b16 %v1750
      %v1831 = vunpack.c.l.b16 %v1751
      %v1832 = vunpack.c.l.b16 %v1752
      %v1833 = vunpack.c.l.b16 %v1753
      %v1834 = vunpack.c.l.b16 %v1754
      %v1835 = vunpack.c.l.b16 %v1755
      %v1836 = vunpack.c.l.b16 %v1756
      %v1837 = vpack.c.b16 %v1822, %v1821
      %v1838 = vpack.c.b16 %v1824, %v1823
      %v1839 = vpack.c.b16 %v1826, %v1825
      %v1840 = vpack.c.b16 %v1828, %v1827
      %v1841 = vpack.c.b16 %v1830, %v1829
      %v1842 = vpack.c.b16 %v1832, %v1831
      %v1843 = vpack.c.b16 %v1834, %v1833
      %v1844 = vpack.c.b16 %v1836, %v1835
      %1853 = vmatprep.subr.bf16.mxu0 0
      %1854 = vmatpush1.bf16.msra.mxu0 %v1844
      %1855 = vmatprep.subr.bf16.mxu0 0
      %1856 = vmatpush1.bf16.msra.mxu0 %v1843
      %1857 = vmatprep.subr.bf16.mxu0 0
      %1858 = vmatpush1.bf16.msra.mxu0 %v1842
      %1859 = vmatprep.subr.bf16.mxu0 0
      %1860 = vmatpush1.bf16.msra.mxu0 %v1841
      %1861 = vmatprep.subr.bf16.mxu0 0
      %1862 = vmatpush1.bf16.msra.mxu0 %v1840
      %1863 = vmatprep.subr.bf16.mxu0 0
      %1864 = vmatpush1.bf16.msra.mxu0 %v1839
      %1865 = vmatprep.subr.bf16.mxu0 0
      %1866 = vmatpush1.bf16.msra.mxu0 %v1838
      %1867 = vmatprep.subr.bf16.mxu0 0
      %1868 = vmatpush1.bf16.msra.mxu0 %v1837
      %1869 = vmatprep.subr.bf16.mxu0 0
      %1870 = vmatpush2.bf16.msra.mxu0 0
      %1871 = vmatprep.subr.bf16.mxu0 0
      %1872 = vmatpush2.bf16.msra.mxu0 0
      %1873 = vmatprep.subr.bf16.mxu0 0
      %1874 = vmatpush2.bf16.msra.mxu0 0
      %1875 = vmatprep.subr.bf16.mxu0 0
      %1876 = vmatpush2.bf16.msra.mxu0 0
      %1877 = vmatprep.subr.bf16.mxu0 0
      %1878 = vmatpush2.bf16.msra.mxu0 0
      %1879 = vmatprep.subr.bf16.mxu0 0
      %1880 = vmatpush2.bf16.msra.mxu0 0
      %1881 = vmatprep.subr.bf16.mxu0 0
      %1882 = vmatpush2.bf16.msra.mxu0 0
      %1883 = vmatprep.subr.bf16.mxu0 0
      %1884 = vmatpush2.bf16.msra.mxu0 0
      %1885 = vmatprep.mubr.bf16.mxu0 0
      %1886 = vmatmul.mubr.bf16.gmra.mxu0 %v1789
      %v1887 = vpop.f32.mrf.mxu0
      %v1888 = vadd.f32 0.0, %v1887
      %v1889 = vpop.f32.mrf.mxu0
      %v1890 = vpop.f32.mrf.mxu0
      %v1891 = vadd.f32 0.0, %v1890
      %v1892 = vpop.f32.mrf.mxu0
      %1893 = vmatprep.mubr.bf16.mxu0 0
      %1894 = vmatmul.mubr.bf16.gmra.mxu0 %v1790
      %v1895 = vpop.f32.mrf.mxu0
      %v1896 = vadd.f32 0.0, %v1895
      %v1897 = vpop.f32.mrf.mxu0
      %v1898 = vpop.f32.mrf.mxu0
      %v1899 = vadd.f32 0.0, %v1898
      %v1900 = vpop.f32.mrf.mxu0
      %1901 = vmatprep.mubr.bf16.mxu0 0
      %1902 = vmatmul.mubr.bf16.gmra.mxu0 %v1791
      %v1903 = vpop.f32.mrf.mxu0
      %v1904 = vadd.f32 0.0, %v1903
      %v1905 = vpop.f32.mrf.mxu0
      %v1906 = vpop.f32.mrf.mxu0
      %v1907 = vadd.f32 0.0, %v1906
      %v1908 = vpop.f32.mrf.mxu0
      %1909 = vmatprep.mubr.bf16.mxu0 0
      %1910 = vmatmul.mubr.bf16.gmra.mxu0 %v1792
      %v1911 = vpop.f32.mrf.mxu0
      %v1912 = vadd.f32 0.0, %v1911
      %v1913 = vpop.f32.mrf.mxu0
      %v1914 = vpop.f32.mrf.mxu0
      %v1915 = vadd.f32 0.0, %v1914
      %v1916 = vpop.f32.mrf.mxu0
      %1917 = vmatprep.mubr.bf16.mxu0 0
      %1918 = vmatmul.mubr.bf16.gmra.mxu0 %v1793
      %v1919 = vpop.f32.mrf.mxu0
      %v1920 = vadd.f32 0.0, %v1919
      %v1921 = vpop.f32.mrf.mxu0
      %v1922 = vpop.f32.mrf.mxu0
      %v1923 = vadd.f32 0.0, %v1922
      %v1924 = vpop.f32.mrf.mxu0
      %1925 = vmatprep.mubr.bf16.mxu0 0
      %1926 = vmatmul.mubr.bf16.gmra.mxu0 %v1794
      %v1927 = vpop.f32.mrf.mxu0
      %v1928 = vadd.f32 0.0, %v1927
      %v1929 = vpop.f32.mrf.mxu0
      %v1930 = vpop.f32.mrf.mxu0
      %v1931 = vadd.f32 0.0, %v1930
      %v1932 = vpop.f32.mrf.mxu0
      %1933 = vmatprep.mubr.bf16.mxu0 0
      %1934 = vmatmul.mubr.bf16.gmra.mxu0 %v1795
      %v1935 = vpop.f32.mrf.mxu0
      %v1936 = vadd.f32 0.0, %v1935
      %v1937 = vpop.f32.mrf.mxu0
      %v1938 = vpop.f32.mrf.mxu0
      %v1939 = vadd.f32 0.0, %v1938
      %v1940 = vpop.f32.mrf.mxu0
      %1941 = vmatprep.mubr.bf16.mxu0 0
      %1942 = vmatmul.mubr.bf16.gmra.mxu0 %v1796
      %v1943 = vpop.f32.mrf.mxu0
      %v1944 = vadd.f32 0.0, %v1943
      %v1945 = vpop.f32.mrf.mxu0
      %v1946 = vpop.f32.mrf.mxu0
      %v1947 = vadd.f32 0.0, %v1946
      %v1948 = vpop.f32.mrf.mxu0
      %1949 = vdwg.mxu0
      %1951 = vset.pattern.permute.xlu0 0
      %1952 = vperm.xlu0 %1951, %v264
      %v1953 = vpop.permute.xlu0 %1952
      %1956 = vset.pattern.permute.xlu0 0
      %1957 = vperm.xlu0 %1956, %v265
      %v1958 = vpop.permute.xlu0 %1957
      %1961 = vset.pattern.permute.xlu0 0
      %1962 = vperm.xlu0 %1961, %v266
      %v1963 = vpop.permute.xlu0 %1962
      %1966 = vset.pattern.permute.xlu0 0
      %1967 = vperm.xlu0 %1966, %v267
      %v1968 = vpop.permute.xlu0 %1967
      %1971 = vset.pattern.permute.xlu0 0
      %1972 = vperm.xlu0 %1971, %v268
      %v1973 = vpop.permute.xlu0 %1972
      %1976 = vset.pattern.permute.xlu0 0
      %1977 = vperm.xlu0 %1976, %v269
      %v1978 = vpop.permute.xlu0 %1977
      %1981 = vset.pattern.permute.xlu0 0
      %1982 = vperm.xlu0 %1981, %v270
      %v1983 = vpop.permute.xlu0 %1982
      %1986 = vset.pattern.permute.xlu0 0
      %1987 = vperm.xlu0 %1986, %v271
      %v1988 = vpop.permute.xlu0 %1987
      %1991 = vset.pattern.permute.xlu0 0
      %1992 = vperm.xlu0 %1991, %v272
      %v1993 = vpop.permute.xlu0 %1992
      %1996 = vset.pattern.permute.xlu0 0
      %1997 = vperm.xlu0 %1996, %v273
      %v1998 = vpop.permute.xlu0 %1997
      %2001 = vset.pattern.permute.xlu0 0
      %2002 = vperm.xlu0 %2001, %v274
      %v2003 = vpop.permute.xlu0 %2002
      %2006 = vset.pattern.permute.xlu0 0
      %2007 = vperm.xlu0 %2006, %v275
      %v2008 = vpop.permute.xlu0 %2007
      %2011 = vset.pattern.permute.xlu0 0
      %2012 = vperm.xlu0 %2011, %v276
      %v2013 = vpop.permute.xlu0 %2012
      %2016 = vset.pattern.permute.xlu0 0
      %2017 = vperm.xlu0 %2016, %v277
      %v2018 = vpop.permute.xlu0 %2017
      %2021 = vset.pattern.permute.xlu0 0
      %2022 = vperm.xlu0 %2021, %v278
      %v2023 = vpop.permute.xlu0 %2022
      %2026 = vset.pattern.permute.xlu0 0
      %2027 = vperm.xlu0 %2026, %v279
      %v2028 = vpop.permute.xlu0 %2027
      %v2030 = vmul.f32 %v1953, %v1888
      %v2031 = vmul.f32 %v1958, %v1891
      %v2032 = vmul.f32 %v1963, %v1896
      %v2033 = vmul.f32 %v1968, %v1899
      %v2034 = vmul.f32 %v1973, %v1904
      %v2035 = vmul.f32 %v1978, %v1907
      %v2036 = vmul.f32 %v1983, %v1912
      %v2037 = vmul.f32 %v1988, %v1915
      %v2038 = vmul.f32 %v1993, %v1920
      %v2039 = vmul.f32 %v1998, %v1923
      %v2040 = vmul.f32 %v2003, %v1928
      %v2041 = vmul.f32 %v2008, %v1931
      %v2042 = vmul.f32 %v2013, %v1936
      %v2043 = vmul.f32 %v2018, %v1939
      %v2044 = vmul.f32 %v2023, %v1944
      %v2045 = vmul.f32 %v2028, %v1947
      %v2046 = vld [vmem:[%s197] sm:$0x1]
      %v2048 = vlaneseq
      %v2049 = vshrl.u32 %v2048, 7
      %v2050 = vsub.s32 0, %v2049
      %v2051 = vrot.slane %v2046, %v2050
      %v2053 = vadd.f32 %v2030, %v2051
      %v2054 = vadd.f32 %v2031, %v2051
      %v2055 = vadd.f32 %v2032, %v2051
      %v2056 = vadd.f32 %v2033, %v2051
      %v2057 = vadd.f32 %v2034, %v2051
      %v2058 = vadd.f32 %v2035, %v2051
      %v2059 = vadd.f32 %v2036, %v2051
      %v2060 = vadd.f32 %v2037, %v2051
      %v2061 = vadd.f32 %v2038, %v2051
      %v2062 = vadd.f32 %v2039, %v2051
      %v2063 = vadd.f32 %v2040, %v2051
      %v2064 = vadd.f32 %v2041, %v2051
      %v2065 = vadd.f32 %v2042, %v2051
      %v2066 = vadd.f32 %v2043, %v2051
      %v2067 = vadd.f32 %v2044, %v2051
      %v2068 = vadd.f32 %v2045, %v2051
      %v2069 = vtanh.pop %v2053
      %v2070 = vtanh.pop %v2054
      %v2071 = vtanh.pop %v2055
      %v2072 = vtanh.pop %v2056
      %v2073 = vtanh.pop %v2057
      %v2074 = vtanh.pop %v2058
      %v2075 = vtanh.pop %v2059
      %v2076 = vtanh.pop %v2060
      %v2077 = vtanh.pop %v2061
      %v2078 = vtanh.pop %v2062
      %v2079 = vtanh.pop %v2063
      %v2080 = vtanh.pop %v2064
      %v2081 = vtanh.pop %v2065
      %v2082 = vtanh.pop %v2066
      %v2083 = vtanh.pop %v2067
      %v2084 = vtanh.pop %v2068
      // Predicated region
      $region91: #{dgcnn_forward.2} parent=35 // pred_check
        %p2085 = pneg %p199
      $region92: #{dgcnn_forward.2} parent=35 // pred_check_branch
        %2087 = sbr.rel (%p2085) target = $region94
      $region93: #{dgcnn_forward.2} parent=35 // pred_region
        %vm2088 = vcmask 261120
        %2089 = vst.msk [vmem:[%s5] sm:$0xff] %vm2088, %v2069
        %2090 = vst.msk [vmem:[%s5 + $0x8] sm:$0xff] %vm2088, %v2070
        %2091 = vst.msk [vmem:[%s5 + $0x10] sm:$0xff] %vm2088, %v2071
        %2092 = vst.msk [vmem:[%s5 + $0x18] sm:$0xff] %vm2088, %v2072
        %2093 = vst.msk [vmem:[%s5 + $0x20] sm:$0xff] %vm2088, %v2073
        %2094 = vst.msk [vmem:[%s5 + $0x28] sm:$0xff] %vm2088, %v2074
        %2095 = vst.msk [vmem:[%s5 + $0x30] sm:$0xff] %vm2088, %v2075
        %2096 = vst.msk [vmem:[%s5 + $0x38] sm:$0xff] %vm2088, %v2076
        %2097 = vst.msk [vmem:[%s5 + $0x40] sm:$0xff] %vm2088, %v2077
        %2098 = vst.msk [vmem:[%s5 + $0x48] sm:$0xff] %vm2088, %v2078
        %2099 = vst.msk [vmem:[%s5 + $0x50] sm:$0xff] %vm2088, %v2079
        %2100 = vst.msk [vmem:[%s5 + $0x58] sm:$0xff] %vm2088, %v2080
        %2101 = vst.msk [vmem:[%s5 + $0x60] sm:$0xff] %vm2088, %v2081
        %2102 = vst.msk [vmem:[%s5 + $0x68] sm:$0xff] %vm2088, %v2082
        %2103 = vst.msk [vmem:[%s5 + $0x70] sm:$0xff] %vm2088, %v2083
        %2104 = vst.msk [vmem:[%s5 + $0x78] sm:$0xff] %vm2088, %v2084
      $region94: #{dgcnn_forward.2} parent=35 // pred_fallthru
        _
      // Predicated region
      $region95: #{dgcnn_forward.2} parent=35 // pred_check
        %p2105 = pneg %p476
      $region96: #{dgcnn_forward.2} parent=35 // pred_check_branch
        %2107 = sbr.rel (%p2105) target = $region98
      $region97: #{dgcnn_forward.2} parent=35 // pred_region
        %2124 = vrot.lane.b32.xlu0 %v2069, 32
        %v2125 = vpop.permute.xlu0 %2124
        %2126 = vrot.lane.b32.xlu0 %v2070, 32
        %v2127 = vpop.permute.xlu0 %2126
        %2128 = vrot.lane.b32.xlu0 %v2071, 32
        %v2129 = vpop.permute.xlu0 %2128
        %2130 = vrot.lane.b32.xlu0 %v2072, 32
        %v2131 = vpop.permute.xlu0 %2130
        %2132 = vrot.lane.b32.xlu0 %v2073, 32
        %v2133 = vpop.permute.xlu0 %2132
        %2134 = vrot.lane.b32.xlu0 %v2074, 32
        %v2135 = vpop.permute.xlu0 %2134
        %2136 = vrot.lane.b32.xlu0 %v2075, 32
        %v2137 = vpop.permute.xlu0 %2136
        %2138 = vrot.lane.b32.xlu0 %v2076, 32
        %v2139 = vpop.permute.xlu0 %2138
        %2140 = vrot.lane.b32.xlu0 %v2077, 32
        %v2141 = vpop.permute.xlu0 %2140
        %2142 = vrot.lane.b32.xlu0 %v2078, 32
        %v2143 = vpop.permute.xlu0 %2142
        %2144 = vrot.lane.b32.xlu0 %v2079, 32
        %v2145 = vpop.permute.xlu0 %2144
        %2146 = vrot.lane.b32.xlu0 %v2080, 32
        %v2147 = vpop.permute.xlu0 %2146
        %2148 = vrot.lane.b32.xlu0 %v2081, 32
        %v2149 = vpop.permute.xlu0 %2148
        %2150 = vrot.lane.b32.xlu0 %v2082, 32
        %v2151 = vpop.permute.xlu0 %2150
        %2152 = vrot.lane.b32.xlu0 %v2083, 32
        %v2153 = vpop.permute.xlu0 %2152
        %2154 = vrot.lane.b32.xlu0 %v2084, 32
        %v2155 = vpop.permute.xlu0 %2154
        %vm2172 = vcmask 523520
        %2173 = vst.msk [vmem:[%s5] sm:$0xff] %vm2172, %v2125
        %2174 = vst.msk [vmem:[%s5 + $0x8] sm:$0xff] %vm2172, %v2127
        %2175 = vst.msk [vmem:[%s5 + $0x10] sm:$0xff] %vm2172, %v2129
        %2176 = vst.msk [vmem:[%s5 + $0x18] sm:$0xff] %vm2172, %v2131
        %2177 = vst.msk [vmem:[%s5 + $0x20] sm:$0xff] %vm2172, %v2133
        %2178 = vst.msk [vmem:[%s5 + $0x28] sm:$0xff] %vm2172, %v2135
        %2179 = vst.msk [vmem:[%s5 + $0x30] sm:$0xff] %vm2172, %v2137
        %2180 = vst.msk [vmem:[%s5 + $0x38] sm:$0xff] %vm2172, %v2139
        %2181 = vst.msk [vmem:[%s5 + $0x40] sm:$0xff] %vm2172, %v2141
        %2182 = vst.msk [vmem:[%s5 + $0x48] sm:$0xff] %vm2172, %v2143
        %2183 = vst.msk [vmem:[%s5 + $0x50] sm:$0xff] %vm2172, %v2145
        %2184 = vst.msk [vmem:[%s5 + $0x58] sm:$0xff] %vm2172, %v2147
        %2185 = vst.msk [vmem:[%s5 + $0x60] sm:$0xff] %vm2172, %v2149
        %2186 = vst.msk [vmem:[%s5 + $0x68] sm:$0xff] %vm2172, %v2151
        %2187 = vst.msk [vmem:[%s5 + $0x70] sm:$0xff] %vm2172, %v2153
        %2188 = vst.msk [vmem:[%s5 + $0x78] sm:$0xff] %vm2172, %v2155
      $region98: #{dgcnn_forward.2} parent=35 // pred_fallthru
        _
      // Predicated region
      $region99: #{dgcnn_forward.2} parent=35 // pred_check
        %p2189 = pneg %p871
      $region100: #{dgcnn_forward.2} parent=35 // pred_check_branch
        %2191 = sbr.rel (%p2189) target = $region102
      $region101: #{dgcnn_forward.2} parent=35 // pred_region
        %2208 = vrot.lane.b32.xlu0 %v2069, 64
        %v2209 = vpop.permute.xlu0 %2208
        %2210 = vrot.lane.b32.xlu0 %v2070, 64
        %v2211 = vpop.permute.xlu0 %2210
        %2212 = vrot.lane.b32.xlu0 %v2071, 64
        %v2213 = vpop.permute.xlu0 %2212
        %2214 = vrot.lane.b32.xlu0 %v2072, 64
        %v2215 = vpop.permute.xlu0 %2214
        %2216 = vrot.lane.b32.xlu0 %v2073, 64
        %v2217 = vpop.permute.xlu0 %2216
        %2218 = vrot.lane.b32.xlu0 %v2074, 64
        %v2219 = vpop.permute.xlu0 %2218
        %2220 = vrot.lane.b32.xlu0 %v2075, 64
        %v2221 = vpop.permute.xlu0 %2220
        %2222 = vrot.lane.b32.xlu0 %v2076, 64
        %v2223 = vpop.permute.xlu0 %2222
        %2224 = vrot.lane.b32.xlu0 %v2077, 64
        %v2225 = vpop.permute.xlu0 %2224
        %2226 = vrot.lane.b32.xlu0 %v2078, 64
        %v2227 = vpop.permute.xlu0 %2226
        %2228 = vrot.lane.b32.xlu0 %v2079, 64
        %v2229 = vpop.permute.xlu0 %2228
        %2230 = vrot.lane.b32.xlu0 %v2080, 64
        %v2231 = vpop.permute.xlu0 %2230
        %2232 = vrot.lane.b32.xlu0 %v2081, 64
        %v2233 = vpop.permute.xlu0 %2232
        %2234 = vrot.lane.b32.xlu0 %v2082, 64
        %v2235 = vpop.permute.xlu0 %2234
        %2236 = vrot.lane.b32.xlu0 %v2083, 64
        %v2237 = vpop.permute.xlu0 %2236
        %2238 = vrot.lane.b32.xlu0 %v2084, 64
        %v2239 = vpop.permute.xlu0 %2238
        %vm2256 = vcmask 785920
        %2257 = vst.msk [vmem:[%s5] sm:$0xff] %vm2256, %v2209
        %2258 = vst.msk [vmem:[%s5 + $0x8] sm:$0xff] %vm2256, %v2211
        %2259 = vst.msk [vmem:[%s5 + $0x10] sm:$0xff] %vm2256, %v2213
        %2260 = vst.msk [vmem:[%s5 + $0x18] sm:$0xff] %vm2256, %v2215
        %2261 = vst.msk [vmem:[%s5 + $0x20] sm:$0xff] %vm2256, %v2217
        %2262 = vst.msk [vmem:[%s5 + $0x28] sm:$0xff] %vm2256, %v2219
        %2263 = vst.msk [vmem:[%s5 + $0x30] sm:$0xff] %vm2256, %v2221
        %2264 = vst.msk [vmem:[%s5 + $0x38] sm:$0xff] %vm2256, %v2223
        %2265 = vst.msk [vmem:[%s5 + $0x40] sm:$0xff] %vm2256, %v2225
        %2266 = vst.msk [vmem:[%s5 + $0x48] sm:$0xff] %vm2256, %v2227
        %2267 = vst.msk [vmem:[%s5 + $0x50] sm:$0xff] %vm2256, %v2229
        %2268 = vst.msk [vmem:[%s5 + $0x58] sm:$0xff] %vm2256, %v2231
        %2269 = vst.msk [vmem:[%s5 + $0x60] sm:$0xff] %vm2256, %v2233
        %2270 = vst.msk [vmem:[%s5 + $0x68] sm:$0xff] %vm2256, %v2235
        %2271 = vst.msk [vmem:[%s5 + $0x70] sm:$0xff] %vm2256, %v2237
        %2272 = vst.msk [vmem:[%s5 + $0x78] sm:$0xff] %vm2256, %v2239
      $region102: #{dgcnn_forward.2} parent=35 // pred_fallthru
        _
      // Predicated region
      $region103: #{dgcnn_forward.2} parent=35 // pred_check
        %p2273 = pneg %p1298
      $region104: #{dgcnn_forward.2} parent=35 // pred_check_branch
        %2275 = sbr.rel (%p2273) target = $region106
      $region105: #{dgcnn_forward.2} parent=35 // pred_region
        %2292 = vrot.lane.b32.xlu0 %v2069, 96
        %v2293 = vpop.permute.xlu0 %2292
        %2294 = vrot.lane.b32.xlu0 %v2070, 96
        %v2295 = vpop.permute.xlu0 %2294
        %2296 = vrot.lane.b32.xlu0 %v2071, 96
        %v2297 = vpop.permute.xlu0 %2296
        %2298 = vrot.lane.b32.xlu0 %v2072, 96
        %v2299 = vpop.permute.xlu0 %2298
        %2300 = vrot.lane.b32.xlu0 %v2073, 96
        %v2301 = vpop.permute.xlu0 %2300
        %2302 = vrot.lane.b32.xlu0 %v2074, 96
        %v2303 = vpop.permute.xlu0 %2302
        %2304 = vrot.lane.b32.xlu0 %v2075, 96
        %v2305 = vpop.permute.xlu0 %2304
        %2306 = vrot.lane.b32.xlu0 %v2076, 96
        %v2307 = vpop.permute.xlu0 %2306
        %2308 = vrot.lane.b32.xlu0 %v2077, 96
        %v2309 = vpop.permute.xlu0 %2308
        %2310 = vrot.lane.b32.xlu0 %v2078, 96
        %v2311 = vpop.permute.xlu0 %2310
        %2312 = vrot.lane.b32.xlu0 %v2079, 96
        %v2313 = vpop.permute.xlu0 %2312
        %2314 = vrot.lane.b32.xlu0 %v2080, 96
        %v2315 = vpop.permute.xlu0 %2314
        %2316 = vrot.lane.b32.xlu0 %v2081, 96
        %v2317 = vpop.permute.xlu0 %2316
        %2318 = vrot.lane.b32.xlu0 %v2082, 96
        %v2319 = vpop.permute.xlu0 %2318
        %2320 = vrot.lane.b32.xlu0 %v2083, 96
        %v2321 = vpop.permute.xlu0 %2320
        %2322 = vrot.lane.b32.xlu0 %v2084, 96
        %v2323 = vpop.permute.xlu0 %2322
        %vm2340 = vcmask 1048320
        %2341 = vst.msk [vmem:[%s5] sm:$0xff] %vm2340, %v2293
        %2342 = vst.msk [vmem:[%s5 + $0x8] sm:$0xff] %vm2340, %v2295
        %2343 = vst.msk [vmem:[%s5 + $0x10] sm:$0xff] %vm2340, %v2297
        %2344 = vst.msk [vmem:[%s5 + $0x18] sm:$0xff] %vm2340, %v2299
        %2345 = vst.msk [vmem:[%s5 + $0x20] sm:$0xff] %vm2340, %v2301
        %2346 = vst.msk [vmem:[%s5 + $0x28] sm:$0xff] %vm2340, %v2303
        %2347 = vst.msk [vmem:[%s5 + $0x30] sm:$0xff] %vm2340, %v2305
        %2348 = vst.msk [vmem:[%s5 + $0x38] sm:$0xff] %vm2340, %v2307
        %2349 = vst.msk [vmem:[%s5 + $0x40] sm:$0xff] %vm2340, %v2309
        %2350 = vst.msk [vmem:[%s5 + $0x48] sm:$0xff] %vm2340, %v2311
        %2351 = vst.msk [vmem:[%s5 + $0x50] sm:$0xff] %vm2340, %v2313
        %2352 = vst.msk [vmem:[%s5 + $0x58] sm:$0xff] %vm2340, %v2315
        %2353 = vst.msk [vmem:[%s5 + $0x60] sm:$0xff] %vm2340, %v2317
        %2354 = vst.msk [vmem:[%s5 + $0x68] sm:$0xff] %vm2340, %v2319
        %2355 = vst.msk [vmem:[%s5 + $0x70] sm:$0xff] %vm2340, %v2321
        %2356 = vst.msk [vmem:[%s5 + $0x78] sm:$0xff] %vm2340, %v2323
      $region106: #{dgcnn_forward.2} parent=35 // pred_fallthru
        _
      // Predicated region
      $region107: #{dgcnn_forward.2} parent=35 // pred_check
        %p2357 = pneg %p123
      $region108: #{dgcnn_forward.2} parent=35 // pred_check_branch
        %2359 = sbr.rel (%p2357) target = $region110
      $region109: #{dgcnn_forward.2} parent=35 // pred_region
        _
      $region110: #{dgcnn_forward.2} parent=35 // pred_fallthru
        _
      // Predicated region
      $region111: #{dgcnn_forward.2} parent=35 // pred_check
        %p2360 = pneg %p123
      $region112: #{dgcnn_forward.2} parent=35 // pred_check_branch
        %2362 = sbr.rel (%p2360) target = $region114
      $region113: #{dgcnn_forward.2} parent=35 // pred_region
        _
      $region114: #{dgcnn_forward.2} parent=35 // pred_fallthru
        _
    $region36: #{dgcnn_forward.2} parent=5 // pred_fallthru
      _
    %p2363 = scmp.le.s32.totalorder 2, %s11
    // Predicated region
    $region115: #{dgcnn_forward.2} parent=5 // pred_check
      %p2364 = pneg %p2363
    $region116: #{dgcnn_forward.2} parent=5 // pred_check_branch
      %2366 = sbr.rel (%p2364) target = $region118
    $region117: #{dgcnn_forward.2} parent=5 // pred_region
      %s2367 = ssub.s32 %s11, 2
    $region118: #{dgcnn_forward.2} parent=5 // pred_fallthru
      _
  $region6: #{dgcnn_forward.2} parent=0 // loop_footer
    %s15 = sadd.s32 1, %s11
  $region7: #{dgcnn_forward.2} parent=0 // loop_footer_branch
    %10 = sbr.rel target = $region3
  $region8: #{dgcnn_forward.2} parent=0 // loop_exit
    _
  %2368 = vsyncmov [#allocation4]
  %s2369 = vpop.sfrf %2368
  %p2370 = scmp.eq.s32.totalorder %s2369, 0
  %p2371 = pneg %p2370
  %2373 = shalt.err (%p2371)

// kernel: dgcnn_forward.3
$region0: #{dgcnn_forward.3}
  #allocation0 [shape = 'u32[]', space=smem, size = 0x4, offset = 0x4, fixed_abs, tag = 'smem constant byte address 0x4 - core index']
  #allocation1 [shape = 'u32[144,128]{1,0:T(1,128)}', space=vmem, size = 0x12000, scoped, tag = 'internal scratch']
  #allocation2 [shape = 'f32[64,16]{1,0:T(8,128)}', space=vmem, size = 0x8000, scoped, tag = 'scratch operand']
  #allocation3 [shape = 'f32[40,16]{1,0:T(8,128)}', space=vmem, size = 0x5000, scoped, tag = 'scratch operand']
  #allocation4 [shape = 'f32[32,32]{1,0:T(8,128)}', space=vmem, size = 0x4000, scoped, tag = 'scratch operand']
  %s0 = inlined_call_operand.vmem [shape: f32[64,128], index: 0, kind: input, shape index: {}]
  %s1 = inlined_call_operand.vmem [shape: f32[128,16], index: 1, kind: input, shape index: {}]
  %s2 = inlined_call_operand.vmem [shape: f32[1,16], index: 2, kind: input, shape index: {}]
  %s3 = inlined_call_operand.vmem [shape: f32[5,16,32], index: 3, kind: input, shape index: {}]
  %s4 = inlined_call_operand.vmem [shape: f32[1,32], index: 4, kind: input, shape index: {}]
  %s5 = inlined_call_operand.vmem [shape: f32[11,32,128], index: 5, kind: input, shape index: {}]
  %s6 = inlined_call_operand.vmem [shape: f32[1,128], index: 6, kind: input, shape index: {}]
  %s7 = inlined_call_operand.vmem [shape: f32[128,128], index: 7, kind: input, shape index: {}]
  %s8 = inlined_call_operand.vmem [shape: f32[1,128], index: 8, kind: input, shape index: {}]
  %s9 = inlined_call_operand.hbm [shape: f32[2,128], index: 9, kind: output, shape index: {}]
  %s10 = sld [smem:[#allocation0]]
  $region46: #{dgcnn_forward.3} parent=0
    _
  %s12 = ssub.s32 1, %s10
  %s13 = scalar_select 0, %s12, %s10
  $region1: #{dgcnn_forward.3} parent=0
    #allocation5 [shape = 'u8[1024]{0}', space=vmem, size = 0x400, scoped, tag = 'output window, operand 0, single buffered']
    #allocation6 [shape = 's32[1]{0}', space=sflag, size = 0x4, scoped, tag = 'scoped memory for dgcnn_forward.3']
    %14 = vsyncpa [#allocation6], 0
    // Predicated region
    $region2: #{dgcnn_forward.3} parent=1 // pred_check
      _
    $region3: #{dgcnn_forward.3} parent=1 // pred_check_branch
      %16 = sbr.rel (0) target = $region5
    $region4: #{dgcnn_forward.3} parent=1 // pred_region
      _
    $region5: #{dgcnn_forward.3} parent=1 // pred_fallthru
      _
    // Predicated region
    $region6: #{dgcnn_forward.3} parent=1 // pred_check
      _
    $region7: #{dgcnn_forward.3} parent=1 // pred_check_branch
      %18 = sbr.rel (0) target = $region9
    $region8: #{dgcnn_forward.3} parent=1 // pred_region
      _
    $region9: #{dgcnn_forward.3} parent=1 // pred_fallthru
      _
    // Predicated region
    $region10: #{dgcnn_forward.3} parent=1 // pred_check
      _
    $region11: #{dgcnn_forward.3} parent=1 // pred_check_branch
      %20 = sbr.rel (0) target = $region13
    $region12: #{dgcnn_forward.3} parent=1 // pred_region
      _
    $region13: #{dgcnn_forward.3} parent=1 // pred_fallthru
      _
    // Predicated region
    $region14: #{dgcnn_forward.3} parent=1 // pred_check
      _
    $region15: #{dgcnn_forward.3} parent=1 // pred_check_branch
      %22 = sbr.rel (0) target = $region17
    $region16: #{dgcnn_forward.3} parent=1 // pred_region
      _
    $region17: #{dgcnn_forward.3} parent=1 // pred_fallthru
      _
    // Predicated region
    $region18: #{dgcnn_forward.3} parent=1 // pred_check
      _
    $region19: #{dgcnn_forward.3} parent=1 // pred_check_branch
      %24 = sbr.rel (0) target = $region21
    $region20: #{dgcnn_forward.3} parent=1 // pred_region
      _
    $region21: #{dgcnn_forward.3} parent=1 // pred_fallthru
      _
    // Predicated region
    $region22: #{dgcnn_forward.3} parent=1 // pred_check
      _
    $region23: #{dgcnn_forward.3} parent=1 // pred_check_branch
      %26 = sbr.rel (0) target = $region25
    $region24: #{dgcnn_forward.3} parent=1 // pred_region
      _
    $region25: #{dgcnn_forward.3} parent=1 // pred_fallthru
      _
    // Predicated region
    $region26: #{dgcnn_forward.3} parent=1 // pred_check
      _
    $region27: #{dgcnn_forward.3} parent=1 // pred_check_branch
      %28 = sbr.rel (0) target = $region29
    $region28: #{dgcnn_forward.3} parent=1 // pred_region
      _
    $region29: #{dgcnn_forward.3} parent=1 // pred_fallthru
      _
    // Predicated region
    $region30: #{dgcnn_forward.3} parent=1 // pred_check
      _
    $region31: #{dgcnn_forward.3} parent=1 // pred_check_branch
      %30 = sbr.rel (0) target = $region33
    $region32: #{dgcnn_forward.3} parent=1 // pred_region
      _
    $region33: #{dgcnn_forward.3} parent=1 // pred_fallthru
      _
    // Predicated region
    $region34: #{dgcnn_forward.3} parent=1 // pred_check
      _
    $region35: #{dgcnn_forward.3} parent=1 // pred_check_branch
      %32 = sbr.rel (0) target = $region37
    $region36: #{dgcnn_forward.3} parent=1 // pred_region
      _
    $region37: #{dgcnn_forward.3} parent=1 // pred_fallthru
      _
    %v33 = vld [vmem:[%s0] sm:$0xff]
    %v34 = vld [vmem:[%s0 + $0x8] sm:$0xff]
    %v35 = vld [vmem:[%s0 + $0x10] sm:$0xff]
    %v36 = vld [vmem:[%s0 + $0x18] sm:$0xff]
    %v37 = vld [vmem:[%s0 + $0x20] sm:$0xff]
    %v38 = vld [vmem:[%s0 + $0x28] sm:$0xff]
    %v39 = vld [vmem:[%s0 + $0x30] sm:$0xff]
    %v40 = vld [vmem:[%s0 + $0x38] sm:$0xff]
    %v41 = vld [vmem:[%s1] sm:$0xff]
    %v42 = vld [vmem:[%s1 + $0x8] sm:$0xff]
    %v43 = vld [vmem:[%s1 + $0x10] sm:$0xff]
    %v44 = vld [vmem:[%s1 + $0x18] sm:$0xff]
    %v45 = vld [vmem:[%s1 + $0x20] sm:$0xff]
    %v46 = vld [vmem:[%s1 + $0x28] sm:$0xff]
    %v47 = vld [vmem:[%s1 + $0x30] sm:$0xff]
    %v48 = vld [vmem:[%s1 + $0x38] sm:$0xff]
    %v49 = vld [vmem:[%s1 + $0x40] sm:$0xff]
    %v50 = vld [vmem:[%s1 + $0x48] sm:$0xff]
    %v51 = vld [vmem:[%s1 + $0x50] sm:$0xff]
    %v52 = vld [vmem:[%s1 + $0x58] sm:$0xff]
    %v53 = vld [vmem:[%s1 + $0x60] sm:$0xff]
    %v54 = vld [vmem:[%s1 + $0x68] sm:$0xff]
    %v55 = vld [vmem:[%s1 + $0x70] sm:$0xff]
    %v56 = vld [vmem:[%s1 + $0x78] sm:$0xff]
    %v57 = vld [vmem:[%s2] sm:$0x1]
    %v59 = vlaneseq
    %v60 = vshrl.u32 %v59, 7
    %v61 = vsub.s32 0, %v60
    %v62 = vrot.slane %v57, %v61
    %64 = vmatprep.subr.mxu0 0.0
    %65 = vmatpush1.msra.mxu0 %v56
    %66 = vmatprep.subr.mxu0 0.0
    %67 = vmatpush1.msra.mxu0 %v55
    %68 = vmatprep.subr.mxu0 0.0
    %69 = vmatpush1.msra.mxu0 %v54
    %70 = vmatprep.subr.mxu0 0.0
    %71 = vmatpush1.msra.mxu0 %v53
    %72 = vmatprep.subr.mxu0 0.0
    %73 = vmatpush1.msra.mxu0 %v52
    %74 = vmatprep.subr.mxu0 0.0
    %75 = vmatpush1.msra.mxu0 %v51
    %76 = vmatprep.subr.mxu0 0.0
    %77 = vmatpush1.msra.mxu0 %v50
    %78 = vmatprep.subr.mxu0 0.0
    %79 = vmatpush1.msra.mxu0 %v49
    %80 = vmatprep.subr.mxu0 0.0
    %81 = vmatpush1.msra.mxu0 %v48
    %82 = vmatprep.subr.mxu0 0.0
    %83 = vmatpush1.msra.mxu0 %v47
    %84 = vmatprep.subr.mxu0 0.0
    %85 = vmatpush1.msra.mxu0 %v46
    %86 = vmatprep.subr.mxu0 0.0
    %87 = vmatpush1.msra.mxu0 %v45
    %88 = vmatprep.subr.mxu0 0.0
    %89 = vmatpush1.msra.mxu0 %v44
    %90 = vmatprep.subr.mxu0 0.0
    %91 = vmatpush1.msra.mxu0 %v43
    %92 = vmatprep.subr.mxu0 0.0
    %93 = vmatpush1.msra.mxu0 %v42
    %94 = vmatprep.subr.mxu0 0.0
    %95 = vmatpush1.msra.mxu0 %v41
    %96 = vmatprep.subr.mxu0 0.0
    %97 = vmatpush2.msra.mxu0 0.0
    %98 = vmatprep.subr.mxu0 0.0
    %99 = vmatpush2.msra.mxu0 0.0
    %100 = vmatprep.subr.mxu0 0.0
    %101 = vmatpush2.msra.mxu0 0.0
    %102 = vmatprep.subr.mxu0 0.0
    %103 = vmatpush2.msra.mxu0 0.0
    %104 = vmatprep.subr.mxu0 0.0
    %105 = vmatpush2.msra.mxu0 0.0
    %106 = vmatprep.subr.mxu0 0.0
    %107 = vmatpush2.msra.mxu0 0.0
    %108 = vmatprep.subr.mxu0 0.0
    %109 = vmatpush2.msra.mxu0 0.0
    %110 = vmatprep.subr.mxu0 0.0
    %111 = vmatpush2.msra.mxu0 0.0
    %112 = vmatprep.subr.mxu0 0.0
    %113 = vmatpush2.msra.mxu0 0.0
    %114 = vmatprep.subr.mxu0 0.0
    %115 = vmatpush2.msra.mxu0 0.0
    %116 = vmatprep.subr.mxu0 0.0
    %117 = vmatpush2.msra.mxu0 0.0
    %118 = vmatprep.subr.mxu0 0.0
    %119 = vmatpush2.msra.mxu0 0.0
    %120 = vmatprep.subr.mxu0 0.0
    %121 = vmatpush2.msra.mxu0 0.0
    %122 = vmatprep.subr.mxu0 0.0
    %123 = vmatpush2.msra.mxu0 0.0
    %124 = vmatprep.subr.mxu0 0.0
    %125 = vmatpush2.msra.mxu0 0.0
    %126 = vmatprep.subr.mxu0 0.0
    %127 = vmatpush2.msra.mxu0 0.0
    %128 = vmatprep.mubr.f32.mxu0 0.0
    %129 = vmatmul.mubr.f32.gmra.mxu0 %v33
    %v130 = vpop.f32.mrf.mxu0
    %v131 = vadd.f32 %v62, %v130
    %v132 = vpop.f32.mrf.mxu0
    %133 = vmatprep.mubr.f32.mxu0 0.0
    %134 = vmatmul.mubr.f32.gmra.mxu0 %v34
    %v135 = vpop.f32.mrf.mxu0
    %v136 = vadd.f32 %v62, %v135
    %v137 = vpop.f32.mrf.mxu0
    %138 = vmatprep.mubr.f32.mxu0 0.0
    %139 = vmatmul.mubr.f32.gmra.mxu0 %v35
    %v140 = vpop.f32.mrf.mxu0
    %v141 = vadd.f32 %v62, %v140
    %v142 = vpop.f32.mrf.mxu0
    %143 = vmatprep.mubr.f32.mxu0 0.0
    %144 = vmatmul.mubr.f32.gmra.mxu0 %v36
    %v145 = vpop.f32.mrf.mxu0
    %v146 = vadd.f32 %v62, %v145
    %v147 = vpop.f32.mrf.mxu0
    %148 = vmatprep.mubr.f32.mxu0 0.0
    %149 = vmatmul.mubr.f32.gmra.mxu0 %v37
    %v150 = vpop.f32.mrf.mxu0
    %v151 = vadd.f32 %v62, %v150
    %v152 = vpop.f32.mrf.mxu0
    %153 = vmatprep.mubr.f32.mxu0 0.0
    %154 = vmatmul.mubr.f32.gmra.mxu0 %v38
    %v155 = vpop.f32.mrf.mxu0
    %v156 = vadd.f32 %v62, %v155
    %v157 = vpop.f32.mrf.mxu0
    %158 = vmatprep.mubr.f32.mxu0 0.0
    %159 = vmatmul.mubr.f32.gmra.mxu0 %v39
    %v160 = vpop.f32.mrf.mxu0
    %v161 = vadd.f32 %v62, %v160
    %v162 = vpop.f32.mrf.mxu0
    %163 = vmatprep.mubr.f32.mxu0 0.0
    %164 = vmatmul.mubr.f32.gmra.mxu0 %v40
    %v165 = vpop.f32.mrf.mxu0
    %v166 = vadd.f32 %v62, %v165
    %v167 = vpop.f32.mrf.mxu0
    %168 = vdwg.mxu0
    %v169 = vmax.f32 %v131, 0.0
    %v170 = vmax.f32 %v136, 0.0
    %v171 = vmax.f32 %v141, 0.0
    %v172 = vmax.f32 %v146, 0.0
    %v173 = vmax.f32 %v151, 0.0
    %v174 = vmax.f32 %v156, 0.0
    %v175 = vmax.f32 %v161, 0.0
    %v176 = vmax.f32 %v166, 0.0
    %vm177 = vcmask 130048
    %178 = vst.msk [vmem:[#allocation2] sm:$0xff] %vm177, %v169
    %179 = vst.msk [vmem:[#allocation2 + $0x8] sm:$0xff] %vm177, %v170
    %180 = vst.msk [vmem:[#allocation2 + $0x10] sm:$0xff] %vm177, %v171
    %181 = vst.msk [vmem:[#allocation2 + $0x18] sm:$0xff] %vm177, %v172
    %182 = vst.msk [vmem:[#allocation2 + $0x20] sm:$0xff] %vm177, %v173
    %183 = vst.msk [vmem:[#allocation2 + $0x28] sm:$0xff] %vm177, %v174
    %184 = vst.msk [vmem:[#allocation2 + $0x30] sm:$0xff] %vm177, %v175
    %185 = vst.msk [vmem:[#allocation2 + $0x38] sm:$0xff] %vm177, %v176
    %v186 = vld [vmem:[#allocation2] ss:$2 sm:$0xff]
    %s187 = scalar_lea.vmem [#allocation2], 16
    %v188 = vld [vmem:[%s187] ss:$2 sm:$0xff]
    %s189 = scalar_lea.vmem [#allocation2], 32
    %v190 = vld [vmem:[%s189] ss:$2 sm:$0xff]
    %s191 = scalar_lea.vmem [#allocation2], 48
    %v192 = vld [vmem:[%s191] ss:$2 sm:$0xff]
    %s193 = scalar_lea.vmem [#allocation2], 1
    %v194 = vld [vmem:[%s193] ss:$2 sm:$0xff]
    %s195 = scalar_lea.vmem [#allocation2], 17
    %v196 = vld [vmem:[%s195] ss:$2 sm:$0xff]
    %s197 = scalar_lea.vmem [#allocation2], 33
    %v198 = vld [vmem:[%s197] ss:$2 sm:$0xff]
    %s199 = scalar_lea.vmem [#allocation2], 49
    %v200 = vld [vmem:[%s199] ss:$2 sm:$0xff]
    %v201 = vmax.f32 %v186, %v194
    %v202 = vmax.f32 %v188, %v196
    %v203 = vmax.f32 %v190, %v198
    %v204 = vmax.f32 %v192, %v200
    %205 = vst.msk [vmem:[#allocation3] sm:$0xff] %vm177, %v201
    %206 = vst.msk [vmem:[#allocation3 + $0x8] sm:$0xff] %vm177, %v202
    %207 = vst.msk [vmem:[#allocation3 + $0x10] sm:$0xff] %vm177, %v203
    %208 = vst.msk [vmem:[#allocation3 + $0x18] sm:$0xff] %vm177, %v204
    %209 = vst.msk [vmem:[#allocation3 + $0x20] sm:$0xff] %vm177, 0.0
    %v210 = vld [vmem:[#allocation3] sm:$0xff]
    %v211 = vld [vmem:[#allocation3 + $0x8] sm:$0xff]
    %v212 = vld [vmem:[#allocation3 + $0x10] sm:$0xff]
    %v213 = vld [vmem:[#allocation3 + $0x18] sm:$0xff]
    %v214 = vld [vmem:[%s3] sm:$0xff]
    %v215 = vld [vmem:[%s3 + $0x8] sm:$0xff]
    %v216 = vld [vmem:[#allocation3 + $0x1] sm:$0xff]
    %v217 = vld [vmem:[#allocation3 + $0x9] sm:$0xff]
    %v218 = vld [vmem:[#allocation3 + $0x11] sm:$0xff]
    %v219 = vld [vmem:[#allocation3 + $0x19] sm:$0xff]
    %s220 = scalar_lea.vmem %s3, 16
    %v221 = vld [vmem:[%s220] sm:$0xff]
    %v222 = vld [vmem:[%s220 + $0x8] sm:$0xff]
    %v224 = vsel %vm177, %v216, 0
    %v227 = vsel %vm177, %v217, 0
    %v230 = vsel %vm177, %v218, 0
    %v233 = vsel %vm177, %v219, 0
    %235 = vmatprep.subr.mxu0 0.0
    %236 = vmatpush1.msra.mxu0 0.0
    %237 = vmatprep.subr.mxu0 0.0
    %238 = vmatpush1.msra.mxu0 0.0
    %239 = vmatprep.subr.mxu0 0.0
    %240 = vmatpush1.msra.mxu0 0.0
    %241 = vmatprep.subr.mxu0 0.0
    %242 = vmatpush1.msra.mxu0 0.0
    %243 = vmatprep.subr.mxu0 0.0
    %244 = vmatpush1.msra.mxu0 0.0
    %245 = vmatprep.subr.mxu0 0.0
    %246 = vmatpush1.msra.mxu0 0.0
    %247 = vmatprep.subr.mxu0 0.0
    %248 = vmatpush1.msra.mxu0 0.0
    %249 = vmatprep.subr.mxu0 0.0
    %250 = vmatpush1.msra.mxu0 0.0
    %251 = vmatprep.subr.mxu0 0.0
    %252 = vmatpush1.msra.mxu0 0.0
    %253 = vmatprep.subr.mxu0 0.0
    %254 = vmatpush1.msra.mxu0 0.0
    %255 = vmatprep.subr.mxu0 0.0
    %256 = vmatpush1.msra.mxu0 0.0
    %257 = vmatprep.subr.mxu0 0.0
    %258 = vmatpush1.msra.mxu0 0.0
    %259 = vmatprep.subr.mxu0 0.0
    %260 = vmatpush1.msra.mxu0 0.0
    %261 = vmatprep.subr.mxu0 0.0
    %262 = vmatpush1.msra.mxu0 0.0
    %263 = vmatprep.subr.mxu0 0.0
    %264 = vmatpush1.msra.mxu0 %v222
    %265 = vmatprep.subr.mxu0 0.0
    %266 = vmatpush1.msra.mxu0 %v221
    %267 = vmatprep.subr.mxu0 0.0
    %268 = vmatpush2.msra.mxu0 0.0
    %269 = vmatprep.subr.mxu0 0.0
    %270 = vmatpush2.msra.mxu0 0.0
    %271 = vmatprep.subr.mxu0 0.0
    %272 = vmatpush2.msra.mxu0 0.0
    %273 = vmatprep.subr.mxu0 0.0
    %274 = vmatpush2.msra.mxu0 0.0
    %275 = vmatprep.subr.mxu0 0.0
    %276 = vmatpush2.msra.mxu0 0.0
    %277 = vmatprep.subr.mxu0 0.0
    %278 = vmatpush2.msra.mxu0 0.0
    %279 = vmatprep.subr.mxu0 0.0
    %280 = vmatpush2.msra.mxu0 0.0
    %281 = vmatprep.subr.mxu0 0.0
    %282 = vmatpush2.msra.mxu0 0.0
    %283 = vmatprep.subr.mxu0 0.0
    %284 = vmatpush2.msra.mxu0 0.0
    %285 = vmatprep.subr.mxu0 0.0
    %286 = vmatpush2.msra.mxu0 0.0
    %287 = vmatprep.subr.mxu0 0.0
    %288 = vmatpush2.msra.mxu0 0.0
    %289 = vmatprep.subr.mxu0 0.0
    %290 = vmatpush2.msra.mxu0 0.0
    %291 = vmatprep.subr.mxu0 0.0
    %292 = vmatpush2.msra.mxu0 0.0
    %293 = vmatprep.subr.mxu0 0.0
    %294 = vmatpush2.msra.mxu0 0.0
    %295 = vmatprep.subr.mxu0 0.0
    %296 = vmatpush2.msra.mxu0 0.0
    %297 = vmatprep.subr.mxu0 0.0
    %298 = vmatpush2.msra.mxu0 0.0
    %299 = vmatprep.mubr.f32.mxu0 0.0
    %300 = vmatmul.mubr.f32.gmra.mxu0 %v224
    %v301 = vpop.f32.mrf.mxu0
    %v302 = vadd.f32 0.0, %v301
    %v303 = vpop.f32.mrf.mxu0
    %304 = vmatprep.mubr.f32.mxu0 0.0
    %305 = vmatmul.mubr.f32.gmra.mxu0 %v227
    %v306 = vpop.f32.mrf.mxu0
    %v307 = vadd.f32 0.0, %v306
    %v308 = vpop.f32.mrf.mxu0
    %309 = vmatprep.mubr.f32.mxu0 0.0
    %310 = vmatmul.mubr.f32.gmra.mxu0 %v230
    %v311 = vpop.f32.mrf.mxu0
    %v312 = vadd.f32 0.0, %v311
    %v313 = vpop.f32.mrf.mxu0
    %314 = vmatprep.mubr.f32.mxu0 0.0
    %315 = vmatmul.mubr.f32.gmra.mxu0 %v233
    %v316 = vpop.f32.mrf.mxu0
    %v317 = vadd.f32 0.0, %v316
    %v318 = vpop.f32.mrf.mxu0
    %319 = vdwg.mxu0
    %v321 = vsel %vm177, %v210, 0
    %v324 = vsel %vm177, %v211, 0
    %v327 = vsel %vm177, %v212, 0
    %v330 = vsel %vm177, %v213, 0
    %332 = vmatprep.subr.mxu0 0.0
    %333 = vmatpush1.msra.mxu0 0.0
    %334 = vmatprep.subr.mxu0 0.0
    %335 = vmatpush1.msra.mxu0 0.0
    %336 = vmatprep.subr.mxu0 0.0
    %337 = vmatpush1.msra.mxu0 0.0
    %338 = vmatprep.subr.mxu0 0.0
    %339 = vmatpush1.msra.mxu0 0.0
    %340 = vmatprep.subr.mxu0 0.0
    %341 = vmatpush1.msra.mxu0 0.0
    %342 = vmatprep.subr.mxu0 0.0
    %343 = vmatpush1.msra.mxu0 0.0
    %344 = vmatprep.subr.mxu0 0.0
    %345 = vmatpush1.msra.mxu0 0.0
    %346 = vmatprep.subr.mxu0 0.0
    %347 = vmatpush1.msra.mxu0 0.0
    %348 = vmatprep.subr.mxu0 0.0
    %349 = vmatpush1.msra.mxu0 0.0
    %350 = vmatprep.subr.mxu0 0.0
    %351 = vmatpush1.msra.mxu0 0.0
    %352 = vmatprep.subr.mxu0 0.0
    %353 = vmatpush1.msra.mxu0 0.0
    %354 = vmatprep.subr.mxu0 0.0
    %355 = vmatpush1.msra.mxu0 0.0
    %356 = vmatprep.subr.mxu0 0.0
    %357 = vmatpush1.msra.mxu0 0.0
    %358 = vmatprep.subr.mxu0 0.0
    %359 = vmatpush1.msra.mxu0 0.0
    %360 = vmatprep.subr.mxu0 0.0
    %361 = vmatpush1.msra.mxu0 %v215
    %362 = vmatprep.subr.mxu0 0.0
    %363 = vmatpush1.msra.mxu0 %v214
    %364 = vmatprep.subr.mxu0 0.0
    %365 = vmatpush2.msra.mxu0 0.0
    %366 = vmatprep.subr.mxu0 0.0
    %367 = vmatpush2.msra.mxu0 0.0
    %368 = vmatprep.subr.mxu0 0.0
    %369 = vmatpush2.msra.mxu0 0.0
    %370 = vmatprep.subr.mxu0 0.0
    %371 = vmatpush2.msra.mxu0 0.0
    %372 = vmatprep.subr.mxu0 0.0
    %373 = vmatpush2.msra.mxu0 0.0
    %374 = vmatprep.subr.mxu0 0.0
    %375 = vmatpush2.msra.mxu0 0.0
    %376 = vmatprep.subr.mxu0 0.0
    %377 = vmatpush2.msra.mxu0 0.0
    %378 = vmatprep.subr.mxu0 0.0
    %379 = vmatpush2.msra.mxu0 0.0
    %380 = vmatprep.subr.mxu0 0.0
    %381 = vmatpush2.msra.mxu0 0.0
    %382 = vmatprep.subr.mxu0 0.0
    %383 = vmatpush2.msra.mxu0 0.0
    %384 = vmatprep.subr.mxu0 0.0
    %385 = vmatpush2.msra.mxu0 0.0
    %386 = vmatprep.subr.mxu0 0.0
    %387 = vmatpush2.msra.mxu0 0.0
    %388 = vmatprep.subr.mxu0 0.0
    %389 = vmatpush2.msra.mxu0 0.0
    %390 = vmatprep.subr.mxu0 0.0
    %391 = vmatpush2.msra.mxu0 0.0
    %392 = vmatprep.subr.mxu0 0.0
    %393 = vmatpush2.msra.mxu0 0.0
    %394 = vmatprep.subr.mxu0 0.0
    %395 = vmatpush2.msra.mxu0 0.0
    %396 = vmatprep.mubr.f32.mxu0 0.0
    %397 = vmatmul.mubr.f32.gmra.mxu0 %v321
    %v398 = vpop.f32.mrf.mxu0
    %v399 = vadd.f32 %v302, %v398
    %v400 = vpop.f32.mrf.mxu0
    %401 = vmatprep.mubr.f32.mxu0 0.0
    %402 = vmatmul.mubr.f32.gmra.mxu0 %v324
    %v403 = vpop.f32.mrf.mxu0
    %v404 = vadd.f32 %v307, %v403
    %v405 = vpop.f32.mrf.mxu0
    %406 = vmatprep.mubr.f32.mxu0 0.0
    %407 = vmatmul.mubr.f32.gmra.mxu0 %v327
    %v408 = vpop.f32.mrf.mxu0
    %v409 = vadd.f32 %v312, %v408
    %v410 = vpop.f32.mrf.mxu0
    %411 = vmatprep.mubr.f32.mxu0 0.0
    %412 = vmatmul.mubr.f32.gmra.mxu0 %v330
    %v413 = vpop.f32.mrf.mxu0
    %v414 = vadd.f32 %v317, %v413
    %v415 = vpop.f32.mrf.mxu0
    %416 = vdwg.mxu0
    %v417 = vld [vmem:[#allocation3 + $0x2] sm:$0xff]
    %v418 = vld [vmem:[#allocation3 + $0xa] sm:$0xff]
    %v419 = vld [vmem:[#allocation3 + $0x12] sm:$0xff]
    %v420 = vld [vmem:[#allocation3 + $0x1a] sm:$0xff]
    %s421 = scalar_lea.vmem %s3, 32
    %v422 = vld [vmem:[%s421] sm:$0xff]
    %v423 = vld [vmem:[%s421 + $0x8] sm:$0xff]
    %v425 = vsel %vm177, %v417, 0
    %v428 = vsel %vm177, %v418, 0
    %v431 = vsel %vm177, %v419, 0
    %v434 = vsel %vm177, %v420, 0
    %436 = vmatprep.subr.mxu0 0.0
    %437 = vmatpush1.msra.mxu0 0.0
    %438 = vmatprep.subr.mxu0 0.0
    %439 = vmatpush1.msra.mxu0 0.0
    %440 = vmatprep.subr.mxu0 0.0
    %441 = vmatpush1.msra.mxu0 0.0
    %442 = vmatprep.subr.mxu0 0.0
    %443 = vmatpush1.msra.mxu0 0.0
    %444 = vmatprep.subr.mxu0 0.0
    %445 = vmatpush1.msra.mxu0 0.0
    %446 = vmatprep.subr.mxu0 0.0
    %447 = vmatpush1.msra.mxu0 0.0
    %448 = vmatprep.subr.mxu0 0.0
    %449 = vmatpush1.msra.mxu0 0.0
    %450 = vmatprep.subr.mxu0 0.0
    %451 = vmatpush1.msra.mxu0 0.0
    %452 = vmatprep.subr.mxu0 0.0
    %453 = vmatpush1.msra.mxu0 0.0
    %454 = vmatprep.subr.mxu0 0.0
    %455 = vmatpush1.msra.mxu0 0.0
    %456 = vmatprep.subr.mxu0 0.0
    %457 = vmatpush1.msra.mxu0 0.0
    %458 = vmatprep.subr.mxu0 0.0
    %459 = vmatpush1.msra.mxu0 0.0
    %460 = vmatprep.subr.mxu0 0.0
    %461 = vmatpush1.msra.mxu0 0.0
    %462 = vmatprep.subr.mxu0 0.0
    %463 = vmatpush1.msra.mxu0 0.0
    %464 = vmatprep.subr.mxu0 0.0
    %465 = vmatpush1.msra.mxu0 %v423
    %466 = vmatprep.subr.mxu0 0.0
    %467 = vmatpush1.msra.mxu0 %v422
    %468 = vmatprep.subr.mxu0 0.0
    %469 = vmatpush2.msra.mxu0 0.0
    %470 = vmatprep.subr.mxu0 0.0
    %471 = vmatpush2.msra.mxu0 0.0
    %472 = vmatprep.subr.mxu0 0.0
    %473 = vmatpush2.msra.mxu0 0.0
    %474 = vmatprep.subr.mxu0 0.0
    %475 = vmatpush2.msra.mxu0 0.0
    %476 = vmatprep.subr.mxu0 0.0
    %477 = vmatpush2.msra.mxu0 0.0
    %478 = vmatprep.subr.mxu0 0.0
    %479 = vmatpush2.msra.mxu0 0.0
    %480 = vmatprep.subr.mxu0 0.0
    %481 = vmatpush2.msra.mxu0 0.0
    %482 = vmatprep.subr.mxu0 0.0
    %483 = vmatpush2.msra.mxu0 0.0
    %484 = vmatprep.subr.mxu0 0.0
    %485 = vmatpush2.msra.mxu0 0.0
    %486 = vmatprep.subr.mxu0 0.0
    %487 = vmatpush2.msra.mxu0 0.0
    %488 = vmatprep.subr.mxu0 0.0
    %489 = vmatpush2.msra.mxu0 0.0
    %490 = vmatprep.subr.mxu0 0.0
    %491 = vmatpush2.msra.mxu0 0.0
    %492 = vmatprep.subr.mxu0 0.0
    %493 = vmatpush2.msra.mxu0 0.0
    %494 = vmatprep.subr.mxu0 0.0
    %495 = vmatpush2.msra.mxu0 0.0
    %496 = vmatprep.subr.mxu0 0.0
    %497 = vmatpush2.msra.mxu0 0.0
    %498 = vmatprep.subr.mxu0 0.0
    %499 = vmatpush2.msra.mxu0 0.0
    %500 = vmatprep.mubr.f32.mxu0 0.0
    %501 = vmatmul.mubr.f32.gmra.mxu0 %v425
    %v502 = vpop.f32.mrf.mxu0
    %v503 = vadd.f32 0.0, %v502
    %v504 = vpop.f32.mrf.mxu0
    %505 = vmatprep.mubr.f32.mxu0 0.0
    %506 = vmatmul.mubr.f32.gmra.mxu0 %v428
    %v507 = vpop.f32.mrf.mxu0
    %v508 = vadd.f32 0.0, %v507
    %v509 = vpop.f32.mrf.mxu0
    %510 = vmatprep.mubr.f32.mxu0 0.0
    %511 = vmatmul.mubr.f32.gmra.mxu0 %v431
    %v512 = vpop.f32.mrf.mxu0
    %v513 = vadd.f32 0.0, %v512
    %v514 = vpop.f32.mrf.mxu0
    %515 = vmatprep.mubr.f32.mxu0 0.0
    %516 = vmatmul.mubr.f32.gmra.mxu0 %v434
    %v517 = vpop.f32.mrf.mxu0
    %v518 = vadd.f32 0.0, %v517
    %v519 = vpop.f32.mrf.mxu0
    %520 = vdwg.mxu0
    %v521 = vadd.f32 %v399, %v503
    %v522 = vadd.f32 %v404, %v508
    %v523 = vadd.f32 %v409, %v513
    %v524 = vadd.f32 %v414, %v518
    %v525 = vld [vmem:[#allocation3 + $0x3] sm:$0xff]
    %v526 = vld [vmem:[#allocation3 + $0xb] sm:$0xff]
    %v527 = vld [vmem:[#allocation3 + $0x13] sm:$0xff]
    %v528 = vld [vmem:[#allocation3 + $0x1b] sm:$0xff]
    %s529 = scalar_lea.vmem %s3, 48
    %v530 = vld [vmem:[%s529] sm:$0xff]
    %v531 = vld [vmem:[%s529 + $0x8] sm:$0xff]
    %v533 = vsel %vm177, %v525, 0
    %v536 = vsel %vm177, %v526, 0
    %v539 = vsel %vm177, %v527, 0
    %v542 = vsel %vm177, %v528, 0
    %544 = vmatprep.subr.mxu0 0.0
    %545 = vmatpush1.msra.mxu0 0.0
    %546 = vmatprep.subr.mxu0 0.0
    %547 = vmatpush1.msra.mxu0 0.0
    %548 = vmatprep.subr.mxu0 0.0
    %549 = vmatpush1.msra.mxu0 0.0
    %550 = vmatprep.subr.mxu0 0.0
    %551 = vmatpush1.msra.mxu0 0.0
    %552 = vmatprep.subr.mxu0 0.0
    %553 = vmatpush1.msra.mxu0 0.0
    %554 = vmatprep.subr.mxu0 0.0
    %555 = vmatpush1.msra.mxu0 0.0
    %556 = vmatprep.subr.mxu0 0.0
    %557 = vmatpush1.msra.mxu0 0.0
    %558 = vmatprep.subr.mxu0 0.0
    %559 = vmatpush1.msra.mxu0 0.0
    %560 = vmatprep.subr.mxu0 0.0
    %561 = vmatpush1.msra.mxu0 0.0
    %562 = vmatprep.subr.mxu0 0.0
    %563 = vmatpush1.msra.mxu0 0.0
    %564 = vmatprep.subr.mxu0 0.0
    %565 = vmatpush1.msra.mxu0 0.0
    %566 = vmatprep.subr.mxu0 0.0
    %567 = vmatpush1.msra.mxu0 0.0
    %568 = vmatprep.subr.mxu0 0.0
    %569 = vmatpush1.msra.mxu0 0.0
    %570 = vmatprep.subr.mxu0 0.0
    %571 = vmatpush1.msra.mxu0 0.0
    %572 = vmatprep.subr.mxu0 0.0
    %573 = vmatpush1.msra.mxu0 %v531
    %574 = vmatprep.subr.mxu0 0.0
    %575 = vmatpush1.msra.mxu0 %v530
    %576 = vmatprep.subr.mxu0 0.0
    %577 = vmatpush2.msra.mxu0 0.0
    %578 = vmatprep.subr.mxu0 0.0
    %579 = vmatpush2.msra.mxu0 0.0
    %580 = vmatprep.subr.mxu0 0.0
    %581 = vmatpush2.msra.mxu0 0.0
    %582 = vmatprep.subr.mxu0 0.0
    %583 = vmatpush2.msra.mxu0 0.0
    %584 = vmatprep.subr.mxu0 0.0
    %585 = vmatpush2.msra.mxu0 0.0
    %586 = vmatprep.subr.mxu0 0.0
    %587 = vmatpush2.msra.mxu0 0.0
    %588 = vmatprep.subr.mxu0 0.0
    %589 = vmatpush2.msra.mxu0 0.0
    %590 = vmatprep.subr.mxu0 0.0
    %591 = vmatpush2.msra.mxu0 0.0
    %592 = vmatprep.subr.mxu0 0.0
    %593 = vmatpush2.msra.mxu0 0.0
    %594 = vmatprep.subr.mxu0 0.0
    %595 = vmatpush2.msra.mxu0 0.0
    %596 = vmatprep.subr.mxu0 0.0
    %597 = vmatpush2.msra.mxu0 0.0
    %598 = vmatprep.subr.mxu0 0.0
    %599 = vmatpush2.msra.mxu0 0.0
    %600 = vmatprep.subr.mxu0 0.0
    %601 = vmatpush2.msra.mxu0 0.0
    %602 = vmatprep.subr.mxu0 0.0
    %603 = vmatpush2.msra.mxu0 0.0
    %604 = vmatprep.subr.mxu0 0.0
    %605 = vmatpush2.msra.mxu0 0.0
    %606 = vmatprep.subr.mxu0 0.0
    %607 = vmatpush2.msra.mxu0 0.0
    %608 = vmatprep.mubr.f32.mxu0 0.0
    %609 = vmatmul.mubr.f32.gmra.mxu0 %v533
    %v610 = vpop.f32.mrf.mxu0
    %v611 = vadd.f32 0.0, %v610
    %v612 = vpop.f32.mrf.mxu0
    %613 = vmatprep.mubr.f32.mxu0 0.0
    %614 = vmatmul.mubr.f32.gmra.mxu0 %v536
    %v615 = vpop.f32.mrf.mxu0
    %v616 = vadd.f32 0.0, %v615
    %v617 = vpop.f32.mrf.mxu0
    %618 = vmatprep.mubr.f32.mxu0 0.0
    %619 = vmatmul.mubr.f32.gmra.mxu0 %v539
    %v620 = vpop.f32.mrf.mxu0
    %v621 = vadd.f32 0.0, %v620
    %v622 = vpop.f32.mrf.mxu0
    %623 = vmatprep.mubr.f32.mxu0 0.0
    %624 = vmatmul.mubr.f32.gmra.mxu0 %v542
    %v625 = vpop.f32.mrf.mxu0
    %v626 = vadd.f32 0.0, %v625
    %v627 = vpop.f32.mrf.mxu0
    %628 = vdwg.mxu0
    %v629 = vadd.f32 %v521, %v611
    %v630 = vadd.f32 %v522, %v616
    %v631 = vadd.f32 %v523, %v621
    %v632 = vadd.f32 %v524, %v626
    %v633 = vld [vmem:[#allocation3 + $0x4] sm:$0xff]
    %v634 = vld [vmem:[#allocation3 + $0xc] sm:$0xff]
    %v635 = vld [vmem:[#allocation3 + $0x14] sm:$0xff]
    %v636 = vld [vmem:[#allocation3 + $0x1c] sm:$0xff]
    %s637 = scalar_lea.vmem %s3, 64
    %v638 = vld [vmem:[%s637] sm:$0xff]
    %v639 = vld [vmem:[%s637 + $0x8] sm:$0xff]
    %v641 = vsel %vm177, %v633, 0
    %v644 = vsel %vm177, %v634, 0
    %v647 = vsel %vm177, %v635, 0
    %v650 = vsel %vm177, %v636, 0
    %652 = vmatprep.subr.mxu0 0.0
    %653 = vmatpush1.msra.mxu0 0.0
    %654 = vmatprep.subr.mxu0 0.0
    %655 = vmatpush1.msra.mxu0 0.0
    %656 = vmatprep.subr.mxu0 0.0
    %657 = vmatpush1.msra.mxu0 0.0
    %658 = vmatprep.subr.mxu0 0.0
    %659 = vmatpush1.msra.mxu0 0.0
    %660 = vmatprep.subr.mxu0 0.0
    %661 = vmatpush1.msra.mxu0 0.0
    %662 = vmatprep.subr.mxu0 0.0
    %663 = vmatpush1.msra.mxu0 0.0
    %664 = vmatprep.subr.mxu0 0.0
    %665 = vmatpush1.msra.mxu0 0.0
    %666 = vmatprep.subr.mxu0 0.0
    %667 = vmatpush1.msra.mxu0 0.0
    %668 = vmatprep.subr.mxu0 0.0
    %669 = vmatpush1.msra.mxu0 0.0
    %670 = vmatprep.subr.mxu0 0.0
    %671 = vmatpush1.msra.mxu0 0.0
    %672 = vmatprep.subr.mxu0 0.0
    %673 = vmatpush1.msra.mxu0 0.0
    %674 = vmatprep.subr.mxu0 0.0
    %675 = vmatpush1.msra.mxu0 0.0
    %676 = vmatprep.subr.mxu0 0.0
    %677 = vmatpush1.msra.mxu0 0.0
    %678 = vmatprep.subr.mxu0 0.0
    %679 = vmatpush1.msra.mxu0 0.0
    %680 = vmatprep.subr.mxu0 0.0
    %681 = vmatpush1.msra.mxu0 %v639
    %682 = vmatprep.subr.mxu0 0.0
    %683 = vmatpush1.msra.mxu0 %v638
    %684 = vmatprep.subr.mxu0 0.0
    %685 = vmatpush2.msra.mxu0 0.0
    %686 = vmatprep.subr.mxu0 0.0
    %687 = vmatpush2.msra.mxu0 0.0
    %688 = vmatprep.subr.mxu0 0.0
    %689 = vmatpush2.msra.mxu0 0.0
    %690 = vmatprep.subr.mxu0 0.0
    %691 = vmatpush2.msra.mxu0 0.0
    %692 = vmatprep.subr.mxu0 0.0
    %693 = vmatpush2.msra.mxu0 0.0
    %694 = vmatprep.subr.mxu0 0.0
    %695 = vmatpush2.msra.mxu0 0.0
    %696 = vmatprep.subr.mxu0 0.0
    %697 = vmatpush2.msra.mxu0 0.0
    %698 = vmatprep.subr.mxu0 0.0
    %699 = vmatpush2.msra.mxu0 0.0
    %700 = vmatprep.subr.mxu0 0.0
    %701 = vmatpush2.msra.mxu0 0.0
    %702 = vmatprep.subr.mxu0 0.0
    %703 = vmatpush2.msra.mxu0 0.0
    %704 = vmatprep.subr.mxu0 0.0
    %705 = vmatpush2.msra.mxu0 0.0
    %706 = vmatprep.subr.mxu0 0.0
    %707 = vmatpush2.msra.mxu0 0.0
    %708 = vmatprep.subr.mxu0 0.0
    %709 = vmatpush2.msra.mxu0 0.0
    %710 = vmatprep.subr.mxu0 0.0
    %711 = vmatpush2.msra.mxu0 0.0
    %712 = vmatprep.subr.mxu0 0.0
    %713 = vmatpush2.msra.mxu0 0.0
    %714 = vmatprep.subr.mxu0 0.0
    %715 = vmatpush2.msra.mxu0 0.0
    %716 = vmatprep.mubr.f32.mxu0 0.0
    %717 = vmatmul.mubr.f32.gmra.mxu0 %v641
    %v718 = vpop.f32.mrf.mxu0
    %v719 = vadd.f32 0.0, %v718
    %v720 = vpop.f32.mrf.mxu0
    %721 = vmatprep.mubr.f32.mxu0 0.0
    %722 = vmatmul.mubr.f32.gmra.mxu0 %v644
    %v723 = vpop.f32.mrf.mxu0
    %v724 = vadd.f32 0.0, %v723
    %v725 = vpop.f32.mrf.mxu0
    %726 = vmatprep.mubr.f32.mxu0 0.0
    %727 = vmatmul.mubr.f32.gmra.mxu0 %v647
    %v728 = vpop.f32.mrf.mxu0
    %v729 = vadd.f32 0.0, %v728
    %v730 = vpop.f32.mrf.mxu0
    %731 = vmatprep.mubr.f32.mxu0 0.0
    %732 = vmatmul.mubr.f32.gmra.mxu0 %v650
    %v733 = vpop.f32.mrf.mxu0
    %v734 = vadd.f32 0.0, %v733
    %v735 = vpop.f32.mrf.mxu0
    %736 = vdwg.mxu0
    %v737 = vadd.f32 %v629, %v719
    %v738 = vadd.f32 %v630, %v724
    %v739 = vadd.f32 %v631, %v729
    %v740 = vadd.f32 %v632, %v734
    %v741 = vld [vmem:[%s4] sm:$0x1]
    %v743 = vlaneseq
    %v744 = vshrl.u32 %v743, 7
    %v745 = vsub.s32 0, %v744
    %v746 = vrot.slane %v741, %v745
    %v748 = vadd.f32 %v737, %v746
    %v749 = vadd.f32 %v738, %v746
    %v750 = vadd.f32 %v739, %v746
    %v751 = vadd.f32 %v740, %v746
    %v752 = vmax.f32 %v748, 0.0
    %v753 = vmax.f32 %v749, 0.0
    %v754 = vmax.f32 %v750, 0.0
    %v755 = vmax.f32 %v751, 0.0
    %vm756 = vcmask 261120
    %757 = vst.msk [vmem:[#allocation4] sm:$0xff] %vm756, %v752
    %758 = vst.msk [vmem:[#allocation4 + $0x8] sm:$0xff] %vm756, %v753
    %759 = vst.msk [vmem:[#allocation4 + $0x10] sm:$0xff] %vm756, %v754
    %760 = vst.msk [vmem:[#allocation4 + $0x18] sm:$0xff] %vm756, %v755
    %v761 = vld [vmem:[#allocation4] ss:$16 sm:$0x3]
    %v762 = vld [vmem:[%s5] sm:$0xff]
    %v763 = vld [vmem:[%s5 + $0x8] sm:$0xff]
    %v764 = vld [vmem:[%s5 + $0x10] sm:$0xff]
    %v765 = vld [vmem:[%s5 + $0x18] sm:$0xff]
    %s766 = scalar_lea.vmem [#allocation4], 1
    %v767 = vld [vmem:[%s766] ss:$16 sm:$0x3]
    %s768 = scalar_lea.vmem %s5, 32
    %v769 = vld [vmem:[%s768] sm:$0xff]
    %v770 = vld [vmem:[%s768 + $0x8] sm:$0xff]
    %v771 = vld [vmem:[%s768 + $0x10] sm:$0xff]
    %v772 = vld [vmem:[%s768 + $0x18] sm:$0xff]
    %v774 = vsel %vm756, %v767, 0
    %776 = vmatprep.subr.mxu0 0.0
    %777 = vmatpush1.msra.mxu0 0.0
    %778 = vmatprep.subr.mxu0 0.0
    %779 = vmatpush1.msra.mxu0 0.0
    %780 = vmatprep.subr.mxu0 0.0
    %781 = vmatpush1.msra.mxu0 0.0
    %782 = vmatprep.subr.mxu0 0.0
    %783 = vmatpush1.msra.mxu0 0.0
    %784 = vmatprep.subr.mxu0 0.0
    %785 = vmatpush1.msra.mxu0 0.0
    %786 = vmatprep.subr.mxu0 0.0
    %787 = vmatpush1.msra.mxu0 0.0
    %788 = vmatprep.subr.mxu0 0.0
    %789 = vmatpush1.msra.mxu0 0.0
    %790 = vmatprep.subr.mxu0 0.0
    %791 = vmatpush1.msra.mxu0 0.0
    %792 = vmatprep.subr.mxu0 0.0
    %793 = vmatpush1.msra.mxu0 0.0
    %794 = vmatprep.subr.mxu0 0.0
    %795 = vmatpush1.msra.mxu0 0.0
    %796 = vmatprep.subr.mxu0 0.0
    %797 = vmatpush1.msra.mxu0 0.0
    %798 = vmatprep.subr.mxu0 0.0
    %799 = vmatpush1.msra.mxu0 0.0
    %800 = vmatprep.subr.mxu0 0.0
    %801 = vmatpush1.msra.mxu0 %v772
    %802 = vmatprep.subr.mxu0 0.0
    %803 = vmatpush1.msra.mxu0 %v771
    %804 = vmatprep.subr.mxu0 0.0
    %805 = vmatpush1.msra.mxu0 %v770
    %806 = vmatprep.subr.mxu0 0.0
    %807 = vmatpush1.msra.mxu0 %v769
    %808 = vmatprep.subr.mxu0 0.0
    %809 = vmatpush2.msra.mxu0 0.0
    %810 = vmatprep.subr.mxu0 0.0
    %811 = vmatpush2.msra.mxu0 0.0
    %812 = vmatprep.subr.mxu0 0.0
    %813 = vmatpush2.msra.mxu0 0.0
    %814 = vmatprep.subr.mxu0 0.0
    %815 = vmatpush2.msra.mxu0 0.0
    %816 = vmatprep.subr.mxu0 0.0
    %817 = vmatpush2.msra.mxu0 0.0
    %818 = vmatprep.subr.mxu0 0.0
    %819 = vmatpush2.msra.mxu0 0.0
    %820 = vmatprep.subr.mxu0 0.0
    %821 = vmatpush2.msra.mxu0 0.0
    %822 = vmatprep.subr.mxu0 0.0
    %823 = vmatpush2.msra.mxu0 0.0
    %824 = vmatprep.subr.mxu0 0.0
    %825 = vmatpush2.msra.mxu0 0.0
    %826 = vmatprep.subr.mxu0 0.0
    %827 = vmatpush2.msra.mxu0 0.0
    %828 = vmatprep.subr.mxu0 0.0
    %829 = vmatpush2.msra.mxu0 0.0
    %830 = vmatprep.subr.mxu0 0.0
    %831 = vmatpush2.msra.mxu0 0.0
    %832 = vmatprep.subr.mxu0 0.0
    %833 = vmatpush2.msra.mxu0 0.0
    %834 = vmatprep.subr.mxu0 0.0
    %835 = vmatpush2.msra.mxu0 0.0
    %836 = vmatprep.subr.mxu0 0.0
    %837 = vmatpush2.msra.mxu0 0.0
    %838 = vmatprep.subr.mxu0 0.0
    %839 = vmatpush2.msra.mxu0 0.0
    %840 = vmatprep.mubr.f32.mxu0 0.0
    %841 = vmatmul.mubr.f32.gmra.mxu0 %v774
    %v842 = vpop.f32.mrf.mxu0
    %v843 = vadd.f32 0.0, %v842
    %v844 = vpop.f32.mrf.mxu0
    %845 = vdwg.mxu0
    %v847 = vsel %vm756, %v761, 0
    %849 = vmatprep.subr.mxu0 0.0
    %850 = vmatpush1.msra.mxu0 0.0
    %851 = vmatprep.subr.mxu0 0.0
    %852 = vmatpush1.msra.mxu0 0.0
    %853 = vmatprep.subr.mxu0 0.0
    %854 = vmatpush1.msra.mxu0 0.0
    %855 = vmatprep.subr.mxu0 0.0
    %856 = vmatpush1.msra.mxu0 0.0
    %857 = vmatprep.subr.mxu0 0.0
    %858 = vmatpush1.msra.mxu0 0.0
    %859 = vmatprep.subr.mxu0 0.0
    %860 = vmatpush1.msra.mxu0 0.0
    %861 = vmatprep.subr.mxu0 0.0
    %862 = vmatpush1.msra.mxu0 0.0
    %863 = vmatprep.subr.mxu0 0.0
    %864 = vmatpush1.msra.mxu0 0.0
    %865 = vmatprep.subr.mxu0 0.0
    %866 = vmatpush1.msra.mxu0 0.0
    %867 = vmatprep.subr.mxu0 0.0
    %868 = vmatpush1.msra.mxu0 0.0
    %869 = vmatprep.subr.mxu0 0.0
    %870 = vmatpush1.msra.mxu0 0.0
    %871 = vmatprep.subr.mxu0 0.0
    %872 = vmatpush1.msra.mxu0 0.0
    %873 = vmatprep.subr.mxu0 0.0
    %874 = vmatpush1.msra.mxu0 %v765
    %875 = vmatprep.subr.mxu0 0.0
    %876 = vmatpush1.msra.mxu0 %v764
    %877 = vmatprep.subr.mxu0 0.0
    %878 = vmatpush1.msra.mxu0 %v763
    %879 = vmatprep.subr.mxu0 0.0
    %880 = vmatpush1.msra.mxu0 %v762
    %881 = vmatprep.subr.mxu0 0.0
    %882 = vmatpush2.msra.mxu0 0.0
    %883 = vmatprep.subr.mxu0 0.0
    %884 = vmatpush2.msra.mxu0 0.0
    %885 = vmatprep.subr.mxu0 0.0
    %886 = vmatpush2.msra.mxu0 0.0
    %887 = vmatprep.subr.mxu0 0.0
    %888 = vmatpush2.msra.mxu0 0.0
    %889 = vmatprep.subr.mxu0 0.0
    %890 = vmatpush2.msra.mxu0 0.0
    %891 = vmatprep.subr.mxu0 0.0
    %892 = vmatpush2.msra.mxu0 0.0
    %893 = vmatprep.subr.mxu0 0.0
    %894 = vmatpush2.msra.mxu0 0.0
    %895 = vmatprep.subr.mxu0 0.0
    %896 = vmatpush2.msra.mxu0 0.0
    %897 = vmatprep.subr.mxu0 0.0
    %898 = vmatpush2.msra.mxu0 0.0
    %899 = vmatprep.subr.mxu0 0.0
    %900 = vmatpush2.msra.mxu0 0.0
    %901 = vmatprep.subr.mxu0 0.0
    %902 = vmatpush2.msra.mxu0 0.0
    %903 = vmatprep.subr.mxu0 0.0
    %904 = vmatpush2.msra.mxu0 0.0
    %905 = vmatprep.subr.mxu0 0.0
    %906 = vmatpush2.msra.mxu0 0.0
    %907 = vmatprep.subr.mxu0 0.0
    %908 = vmatpush2.msra.mxu0 0.0
    %909 = vmatprep.subr.mxu0 0.0
    %910 = vmatpush2.msra.mxu0 0.0
    %911 = vmatprep.subr.mxu0 0.0
    %912 = vmatpush2.msra.mxu0 0.0
    %913 = vmatprep.mubr.f32.mxu0 0.0
    %914 = vmatmul.mubr.f32.gmra.mxu0 %v847
    %v915 = vpop.f32.mrf.mxu0
    %v916 = vadd.f32 %v843, %v915
    %v917 = vpop.f32.mrf.mxu0
    %918 = vdwg.mxu0
    %s919 = scalar_lea.vmem [#allocation4], 2
    %v920 = vld [vmem:[%s919] ss:$16 sm:$0x3]
    %s921 = scalar_lea.vmem %s5, 64
    %v922 = vld [vmem:[%s921] sm:$0xff]
    %v923 = vld [vmem:[%s921 + $0x8] sm:$0xff]
    %v924 = vld [vmem:[%s921 + $0x10] sm:$0xff]
    %v925 = vld [vmem:[%s921 + $0x18] sm:$0xff]
    %v927 = vsel %vm756, %v920, 0
    %929 = vmatprep.subr.mxu0 0.0
    %930 = vmatpush1.msra.mxu0 0.0
    %931 = vmatprep.subr.mxu0 0.0
    %932 = vmatpush1.msra.mxu0 0.0
    %933 = vmatprep.subr.mxu0 0.0
    %934 = vmatpush1.msra.mxu0 0.0
    %935 = vmatprep.subr.mxu0 0.0
    %936 = vmatpush1.msra.mxu0 0.0
    %937 = vmatprep.subr.mxu0 0.0
    %938 = vmatpush1.msra.mxu0 0.0
    %939 = vmatprep.subr.mxu0 0.0
    %940 = vmatpush1.msra.mxu0 0.0
    %941 = vmatprep.subr.mxu0 0.0
    %942 = vmatpush1.msra.mxu0 0.0
    %943 = vmatprep.subr.mxu0 0.0
    %944 = vmatpush1.msra.mxu0 0.0
    %945 = vmatprep.subr.mxu0 0.0
    %946 = vmatpush1.msra.mxu0 0.0
    %947 = vmatprep.subr.mxu0 0.0
    %948 = vmatpush1.msra.mxu0 0.0
    %949 = vmatprep.subr.mxu0 0.0
    %950 = vmatpush1.msra.mxu0 0.0
    %951 = vmatprep.subr.mxu0 0.0
    %952 = vmatpush1.msra.mxu0 0.0
    %953 = vmatprep.subr.mxu0 0.0
    %954 = vmatpush1.msra.mxu0 %v925
    %955 = vmatprep.subr.mxu0 0.0
    %956 = vmatpush1.msra.mxu0 %v924
    %957 = vmatprep.subr.mxu0 0.0
    %958 = vmatpush1.msra.mxu0 %v923
    %959 = vmatprep.subr.mxu0 0.0
    %960 = vmatpush1.msra.mxu0 %v922
    %961 = vmatprep.subr.mxu0 0.0
    %962 = vmatpush2.msra.mxu0 0.0
    %963 = vmatprep.subr.mxu0 0.0
    %964 = vmatpush2.msra.mxu0 0.0
    %965 = vmatprep.subr.mxu0 0.0
    %966 = vmatpush2.msra.mxu0 0.0
    %967 = vmatprep.subr.mxu0 0.0
    %968 = vmatpush2.msra.mxu0 0.0
    %969 = vmatprep.subr.mxu0 0.0
    %970 = vmatpush2.msra.mxu0 0.0
    %971 = vmatprep.subr.mxu0 0.0
    %972 = vmatpush2.msra.mxu0 0.0
    %973 = vmatprep.subr.mxu0 0.0
    %974 = vmatpush2.msra.mxu0 0.0
    %975 = vmatprep.subr.mxu0 0.0
    %976 = vmatpush2.msra.mxu0 0.0
    %977 = vmatprep.subr.mxu0 0.0
    %978 = vmatpush2.msra.mxu0 0.0
    %979 = vmatprep.subr.mxu0 0.0
    %980 = vmatpush2.msra.mxu0 0.0
    %981 = vmatprep.subr.mxu0 0.0
    %982 = vmatpush2.msra.mxu0 0.0
    %983 = vmatprep.subr.mxu0 0.0
    %984 = vmatpush2.msra.mxu0 0.0
    %985 = vmatprep.subr.mxu0 0.0
    %986 = vmatpush2.msra.mxu0 0.0
    %987 = vmatprep.subr.mxu0 0.0
    %988 = vmatpush2.msra.mxu0 0.0
    %989 = vmatprep.subr.mxu0 0.0
    %990 = vmatpush2.msra.mxu0 0.0
    %991 = vmatprep.subr.mxu0 0.0
    %992 = vmatpush2.msra.mxu0 0.0
    %993 = vmatprep.mubr.f32.mxu0 0.0
    %994 = vmatmul.mubr.f32.gmra.mxu0 %v927
    %v995 = vpop.f32.mrf.mxu0
    %v996 = vadd.f32 0.0, %v995
    %v997 = vpop.f32.mrf.mxu0
    %998 = vdwg.mxu0
    %v999 = vadd.f32 %v916, %v996
    %s1000 = scalar_lea.vmem [#allocation4], 3
    %v1001 = vld [vmem:[%s1000] ss:$16 sm:$0x3]
    %s1002 = scalar_lea.vmem %s5, 96
    %v1003 = vld [vmem:[%s1002] sm:$0xff]
    %v1004 = vld [vmem:[%s1002 + $0x8] sm:$0xff]
    %v1005 = vld [vmem:[%s1002 + $0x10] sm:$0xff]
    %v1006 = vld [vmem:[%s1002 + $0x18] sm:$0xff]
    %v1008 = vsel %vm756, %v1001, 0
    %1010 = vmatprep.subr.mxu0 0.0
    %1011 = vmatpush1.msra.mxu0 0.0
    %1012 = vmatprep.subr.mxu0 0.0
    %1013 = vmatpush1.msra.mxu0 0.0
    %1014 = vmatprep.subr.mxu0 0.0
    %1015 = vmatpush1.msra.mxu0 0.0
    %1016 = vmatprep.subr.mxu0 0.0
    %1017 = vmatpush1.msra.mxu0 0.0
    %1018 = vmatprep.subr.mxu0 0.0
    %1019 = vmatpush1.msra.mxu0 0.0
    %1020 = vmatprep.subr.mxu0 0.0
    %1021 = vmatpush1.msra.mxu0 0.0
    %1022 = vmatprep.subr.mxu0 0.0
    %1023 = vmatpush1.msra.mxu0 0.0
    %1024 = vmatprep.subr.mxu0 0.0
    %1025 = vmatpush1.msra.mxu0 0.0
    %1026 = vmatprep.subr.mxu0 0.0
    %1027 = vmatpush1.msra.mxu0 0.0
    %1028 = vmatprep.subr.mxu0 0.0
    %1029 = vmatpush1.msra.mxu0 0.0
    %1030 = vmatprep.subr.mxu0 0.0
    %1031 = vmatpush1.msra.mxu0 0.0
    %1032 = vmatprep.subr.mxu0 0.0
    %1033 = vmatpush1.msra.mxu0 0.0
    %1034 = vmatprep.subr.mxu0 0.0
    %1035 = vmatpush1.msra.mxu0 %v1006
    %1036 = vmatprep.subr.mxu0 0.0
    %1037 = vmatpush1.msra.mxu0 %v1005
    %1038 = vmatprep.subr.mxu0 0.0
    %1039 = vmatpush1.msra.mxu0 %v1004
    %1040 = vmatprep.subr.mxu0 0.0
    %1041 = vmatpush1.msra.mxu0 %v1003
    %1042 = vmatprep.subr.mxu0 0.0
    %1043 = vmatpush2.msra.mxu0 0.0
    %1044 = vmatprep.subr.mxu0 0.0
    %1045 = vmatpush2.msra.mxu0 0.0
    %1046 = vmatprep.subr.mxu0 0.0
    %1047 = vmatpush2.msra.mxu0 0.0
    %1048 = vmatprep.subr.mxu0 0.0
    %1049 = vmatpush2.msra.mxu0 0.0
    %1050 = vmatprep.subr.mxu0 0.0
    %1051 = vmatpush2.msra.mxu0 0.0
    %1052 = vmatprep.subr.mxu0 0.0
    %1053 = vmatpush2.msra.mxu0 0.0
    %1054 = vmatprep.subr.mxu0 0.0
    %1055 = vmatpush2.msra.mxu0 0.0
    %1056 = vmatprep.subr.mxu0 0.0
    %1057 = vmatpush2.msra.mxu0 0.0
    %1058 = vmatprep.subr.mxu0 0.0
    %1059 = vmatpush2.msra.mxu0 0.0
    %1060 = vmatprep.subr.mxu0 0.0
    %1061 = vmatpush2.msra.mxu0 0.0
    %1062 = vmatprep.subr.mxu0 0.0
    %1063 = vmatpush2.msra.mxu0 0.0
    %1064 = vmatprep.subr.mxu0 0.0
    %1065 = vmatpush2.msra.mxu0 0.0
    %1066 = vmatprep.subr.mxu0 0.0
    %1067 = vmatpush2.msra.mxu0 0.0
    %1068 = vmatprep.subr.mxu0 0.0
    %1069 = vmatpush2.msra.mxu0 0.0
    %1070 = vmatprep.subr.mxu0 0.0
    %1071 = vmatpush2.msra.mxu0 0.0
    %1072 = vmatprep.subr.mxu0 0.0
    %1073 = vmatpush2.msra.mxu0 0.0
    %1074 = vmatprep.mubr.f32.mxu0 0.0
    %1075 = vmatmul.mubr.f32.gmra.mxu0 %v1008
    %v1076 = vpop.f32.mrf.mxu0
    %v1077 = vadd.f32 0.0, %v1076
    %v1078 = vpop.f32.mrf.mxu0
    %1079 = vdwg.mxu0
    %v1080 = vadd.f32 %v999, %v1077
    %s1081 = scalar_lea.vmem [#allocation4], 4
    %v1082 = vld [vmem:[%s1081] ss:$16 sm:$0x3]
    %s1083 = scalar_lea.vmem %s5, 128
    %v1084 = vld [vmem:[%s1083] sm:$0xff]
    %v1085 = vld [vmem:[%s1083 + $0x8] sm:$0xff]
    %v1086 = vld [vmem:[%s1083 + $0x10] sm:$0xff]
    %v1087 = vld [vmem:[%s1083 + $0x18] sm:$0xff]
    %v1089 = vsel %vm756, %v1082, 0
    %1091 = vmatprep.subr.mxu0 0.0
    %1092 = vmatpush1.msra.mxu0 0.0
    %1093 = vmatprep.subr.mxu0 0.0
    %1094 = vmatpush1.msra.mxu0 0.0
    %1095 = vmatprep.subr.mxu0 0.0
    %1096 = vmatpush1.msra.mxu0 0.0
    %1097 = vmatprep.subr.mxu0 0.0
    %1098 = vmatpush1.msra.mxu0 0.0
    %1099 = vmatprep.subr.mxu0 0.0
    %1100 = vmatpush1.msra.mxu0 0.0
    %1101 = vmatprep.subr.mxu0 0.0
    %1102 = vmatpush1.msra.mxu0 0.0
    %1103 = vmatprep.subr.mxu0 0.0
    %1104 = vmatpush1.msra.mxu0 0.0
    %1105 = vmatprep.subr.mxu0 0.0
    %1106 = vmatpush1.msra.mxu0 0.0
    %1107 = vmatprep.subr.mxu0 0.0
    %1108 = vmatpush1.msra.mxu0 0.0
    %1109 = vmatprep.subr.mxu0 0.0
    %1110 = vmatpush1.msra.mxu0 0.0
    %1111 = vmatprep.subr.mxu0 0.0
    %1112 = vmatpush1.msra.mxu0 0.0
    %1113 = vmatprep.subr.mxu0 0.0
    %1114 = vmatpush1.msra.mxu0 0.0
    %1115 = vmatprep.subr.mxu0 0.0
    %1116 = vmatpush1.msra.mxu0 %v1087
    %1117 = vmatprep.subr.mxu0 0.0
    %1118 = vmatpush1.msra.mxu0 %v1086
    %1119 = vmatprep.subr.mxu0 0.0
    %1120 = vmatpush1.msra.mxu0 %v1085
    %1121 = vmatprep.subr.mxu0 0.0
    %1122 = vmatpush1.msra.mxu0 %v1084
    %1123 = vmatprep.subr.mxu0 0.0
    %1124 = vmatpush2.msra.mxu0 0.0
    %1125 = vmatprep.subr.mxu0 0.0
    %1126 = vmatpush2.msra.mxu0 0.0
    %1127 = vmatprep.subr.mxu0 0.0
    %1128 = vmatpush2.msra.mxu0 0.0
    %1129 = vmatprep.subr.mxu0 0.0
    %1130 = vmatpush2.msra.mxu0 0.0
    %1131 = vmatprep.subr.mxu0 0.0
    %1132 = vmatpush2.msra.mxu0 0.0
    %1133 = vmatprep.subr.mxu0 0.0
    %1134 = vmatpush2.msra.mxu0 0.0
    %1135 = vmatprep.subr.mxu0 0.0
    %1136 = vmatpush2.msra.mxu0 0.0
    %1137 = vmatprep.subr.mxu0 0.0
    %1138 = vmatpush2.msra.mxu0 0.0
    %1139 = vmatprep.subr.mxu0 0.0
    %1140 = vmatpush2.msra.mxu0 0.0
    %1141 = vmatprep.subr.mxu0 0.0
    %1142 = vmatpush2.msra.mxu0 0.0
    %1143 = vmatprep.subr.mxu0 0.0
    %1144 = vmatpush2.msra.mxu0 0.0
    %1145 = vmatprep.subr.mxu0 0.0
    %1146 = vmatpush2.msra.mxu0 0.0
    %1147 = vmatprep.subr.mxu0 0.0
    %1148 = vmatpush2.msra.mxu0 0.0
    %1149 = vmatprep.subr.mxu0 0.0
    %1150 = vmatpush2.msra.mxu0 0.0
    %1151 = vmatprep.subr.mxu0 0.0
    %1152 = vmatpush2.msra.mxu0 0.0
    %1153 = vmatprep.subr.mxu0 0.0
    %1154 = vmatpush2.msra.mxu0 0.0
    %1155 = vmatprep.mubr.f32.mxu0 0.0
    %1156 = vmatmul.mubr.f32.gmra.mxu0 %v1089
    %v1157 = vpop.f32.mrf.mxu0
    %v1158 = vadd.f32 0.0, %v1157
    %v1159 = vpop.f32.mrf.mxu0
    %1160 = vdwg.mxu0
    %v1161 = vadd.f32 %v1080, %v1158
    %s1162 = scalar_lea.vmem [#allocation4], 5
    %v1163 = vld [vmem:[%s1162] ss:$16 sm:$0x3]
    %s1164 = scalar_lea.vmem %s5, 160
    %v1165 = vld [vmem:[%s1164] sm:$0xff]
    %v1166 = vld [vmem:[%s1164 + $0x8] sm:$0xff]
    %v1167 = vld [vmem:[%s1164 + $0x10] sm:$0xff]
    %v1168 = vld [vmem:[%s1164 + $0x18] sm:$0xff]
    %v1170 = vsel %vm756, %v1163, 0
    %1172 = vmatprep.subr.mxu0 0.0
    %1173 = vmatpush1.msra.mxu0 0.0
    %1174 = vmatprep.subr.mxu0 0.0
    %1175 = vmatpush1.msra.mxu0 0.0
    %1176 = vmatprep.subr.mxu0 0.0
    %1177 = vmatpush1.msra.mxu0 0.0
    %1178 = vmatprep.subr.mxu0 0.0
    %1179 = vmatpush1.msra.mxu0 0.0
    %1180 = vmatprep.subr.mxu0 0.0
    %1181 = vmatpush1.msra.mxu0 0.0
    %1182 = vmatprep.subr.mxu0 0.0
    %1183 = vmatpush1.msra.mxu0 0.0
    %1184 = vmatprep.subr.mxu0 0.0
    %1185 = vmatpush1.msra.mxu0 0.0
    %1186 = vmatprep.subr.mxu0 0.0
    %1187 = vmatpush1.msra.mxu0 0.0
    %1188 = vmatprep.subr.mxu0 0.0
    %1189 = vmatpush1.msra.mxu0 0.0
    %1190 = vmatprep.subr.mxu0 0.0
    %1191 = vmatpush1.msra.mxu0 0.0
    %1192 = vmatprep.subr.mxu0 0.0
    %1193 = vmatpush1.msra.mxu0 0.0
    %1194 = vmatprep.subr.mxu0 0.0
    %1195 = vmatpush1.msra.mxu0 0.0
    %1196 = vmatprep.subr.mxu0 0.0
    %1197 = vmatpush1.msra.mxu0 %v1168
    %1198 = vmatprep.subr.mxu0 0.0
    %1199 = vmatpush1.msra.mxu0 %v1167
    %1200 = vmatprep.subr.mxu0 0.0
    %1201 = vmatpush1.msra.mxu0 %v1166
    %1202 = vmatprep.subr.mxu0 0.0
    %1203 = vmatpush1.msra.mxu0 %v1165
    %1204 = vmatprep.subr.mxu0 0.0
    %1205 = vmatpush2.msra.mxu0 0.0
    %1206 = vmatprep.subr.mxu0 0.0
    %1207 = vmatpush2.msra.mxu0 0.0
    %1208 = vmatprep.subr.mxu0 0.0
    %1209 = vmatpush2.msra.mxu0 0.0
    %1210 = vmatprep.subr.mxu0 0.0
    %1211 = vmatpush2.msra.mxu0 0.0
    %1212 = vmatprep.subr.mxu0 0.0
    %1213 = vmatpush2.msra.mxu0 0.0
    %1214 = vmatprep.subr.mxu0 0.0
    %1215 = vmatpush2.msra.mxu0 0.0
    %1216 = vmatprep.subr.mxu0 0.0
    %1217 = vmatpush2.msra.mxu0 0.0
    %1218 = vmatprep.subr.mxu0 0.0
    %1219 = vmatpush2.msra.mxu0 0.0
    %1220 = vmatprep.subr.mxu0 0.0
    %1221 = vmatpush2.msra.mxu0 0.0
    %1222 = vmatprep.subr.mxu0 0.0
    %1223 = vmatpush2.msra.mxu0 0.0
    %1224 = vmatprep.subr.mxu0 0.0
    %1225 = vmatpush2.msra.mxu0 0.0
    %1226 = vmatprep.subr.mxu0 0.0
    %1227 = vmatpush2.msra.mxu0 0.0
    %1228 = vmatprep.subr.mxu0 0.0
    %1229 = vmatpush2.msra.mxu0 0.0
    %1230 = vmatprep.subr.mxu0 0.0
    %1231 = vmatpush2.msra.mxu0 0.0
    %1232 = vmatprep.subr.mxu0 0.0
    %1233 = vmatpush2.msra.mxu0 0.0
    %1234 = vmatprep.subr.mxu0 0.0
    %1235 = vmatpush2.msra.mxu0 0.0
    %1236 = vmatprep.mubr.f32.mxu0 0.0
    %1237 = vmatmul.mubr.f32.gmra.mxu0 %v1170
    %v1238 = vpop.f32.mrf.mxu0
    %v1239 = vadd.f32 0.0, %v1238
    %v1240 = vpop.f32.mrf.mxu0
    %1241 = vdwg.mxu0
    %v1242 = vadd.f32 %v1161, %v1239
    %s1243 = scalar_lea.vmem [#allocation4], 6
    %v1244 = vld [vmem:[%s1243] ss:$16 sm:$0x3]
    %s1245 = scalar_lea.vmem %s5, 192
    %v1246 = vld [vmem:[%s1245] sm:$0xff]
    %v1247 = vld [vmem:[%s1245 + $0x8] sm:$0xff]
    %v1248 = vld [vmem:[%s1245 + $0x10] sm:$0xff]
    %v1249 = vld [vmem:[%s1245 + $0x18] sm:$0xff]
    %v1251 = vsel %vm756, %v1244, 0
    %1253 = vmatprep.subr.mxu0 0.0
    %1254 = vmatpush1.msra.mxu0 0.0
    %1255 = vmatprep.subr.mxu0 0.0
    %1256 = vmatpush1.msra.mxu0 0.0
    %1257 = vmatprep.subr.mxu0 0.0
    %1258 = vmatpush1.msra.mxu0 0.0
    %1259 = vmatprep.subr.mxu0 0.0
    %1260 = vmatpush1.msra.mxu0 0.0
    %1261 = vmatprep.subr.mxu0 0.0
    %1262 = vmatpush1.msra.mxu0 0.0
    %1263 = vmatprep.subr.mxu0 0.0
    %1264 = vmatpush1.msra.mxu0 0.0
    %1265 = vmatprep.subr.mxu0 0.0
    %1266 = vmatpush1.msra.mxu0 0.0
    %1267 = vmatprep.subr.mxu0 0.0
    %1268 = vmatpush1.msra.mxu0 0.0
    %1269 = vmatprep.subr.mxu0 0.0
    %1270 = vmatpush1.msra.mxu0 0.0
    %1271 = vmatprep.subr.mxu0 0.0
    %1272 = vmatpush1.msra.mxu0 0.0
    %1273 = vmatprep.subr.mxu0 0.0
    %1274 = vmatpush1.msra.mxu0 0.0
    %1275 = vmatprep.subr.mxu0 0.0
    %1276 = vmatpush1.msra.mxu0 0.0
    %1277 = vmatprep.subr.mxu0 0.0
    %1278 = vmatpush1.msra.mxu0 %v1249
    %1279 = vmatprep.subr.mxu0 0.0
    %1280 = vmatpush1.msra.mxu0 %v1248
    %1281 = vmatprep.subr.mxu0 0.0
    %1282 = vmatpush1.msra.mxu0 %v1247
    %1283 = vmatprep.subr.mxu0 0.0
    %1284 = vmatpush1.msra.mxu0 %v1246
    %1285 = vmatprep.subr.mxu0 0.0
    %1286 = vmatpush2.msra.mxu0 0.0
    %1287 = vmatprep.subr.mxu0 0.0
    %1288 = vmatpush2.msra.mxu0 0.0
    %1289 = vmatprep.subr.mxu0 0.0
    %1290 = vmatpush2.msra.mxu0 0.0
    %1291 = vmatprep.subr.mxu0 0.0
    %1292 = vmatpush2.msra.mxu0 0.0
    %1293 = vmatprep.subr.mxu0 0.0
    %1294 = vmatpush2.msra.mxu0 0.0
    %1295 = vmatprep.subr.mxu0 0.0
    %1296 = vmatpush2.msra.mxu0 0.0
    %1297 = vmatprep.subr.mxu0 0.0
    %1298 = vmatpush2.msra.mxu0 0.0
    %1299 = vmatprep.subr.mxu0 0.0
    %1300 = vmatpush2.msra.mxu0 0.0
    %1301 = vmatprep.subr.mxu0 0.0
    %1302 = vmatpush2.msra.mxu0 0.0
    %1303 = vmatprep.subr.mxu0 0.0
    %1304 = vmatpush2.msra.mxu0 0.0
    %1305 = vmatprep.subr.mxu0 0.0
    %1306 = vmatpush2.msra.mxu0 0.0
    %1307 = vmatprep.subr.mxu0 0.0
    %1308 = vmatpush2.msra.mxu0 0.0
    %1309 = vmatprep.subr.mxu0 0.0
    %1310 = vmatpush2.msra.mxu0 0.0
    %1311 = vmatprep.subr.mxu0 0.0
    %1312 = vmatpush2.msra.mxu0 0.0
    %1313 = vmatprep.subr.mxu0 0.0
    %1314 = vmatpush2.msra.mxu0 0.0
    %1315 = vmatprep.subr.mxu0 0.0
    %1316 = vmatpush2.msra.mxu0 0.0
    %1317 = vmatprep.mubr.f32.mxu0 0.0
    %1318 = vmatmul.mubr.f32.gmra.mxu0 %v1251
    %v1319 = vpop.f32.mrf.mxu0
    %v1320 = vadd.f32 0.0, %v1319
    %v1321 = vpop.f32.mrf.mxu0
    %1322 = vdwg.mxu0
    %v1323 = vadd.f32 %v1242, %v1320
    %s1324 = scalar_lea.vmem [#allocation4], 7
    %v1325 = vld [vmem:[%s1324] ss:$16 sm:$0x3]
    %s1326 = scalar_lea.vmem %s5, 224
    %v1327 = vld [vmem:[%s1326] sm:$0xff]
    %v1328 = vld [vmem:[%s1326 + $0x8] sm:$0xff]
    %v1329 = vld [vmem:[%s1326 + $0x10] sm:$0xff]
    %v1330 = vld [vmem:[%s1326 + $0x18] sm:$0xff]
    %v1332 = vsel %vm756, %v1325, 0
    %1334 = vmatprep.subr.mxu0 0.0
    %1335 = vmatpush1.msra.mxu0 0.0
    %1336 = vmatprep.subr.mxu0 0.0
    %1337 = vmatpush1.msra.mxu0 0.0
    %1338 = vmatprep.subr.mxu0 0.0
    %1339 = vmatpush1.msra.mxu0 0.0
    %1340 = vmatprep.subr.mxu0 0.0
    %1341 = vmatpush1.msra.mxu0 0.0
    %1342 = vmatprep.subr.mxu0 0.0
    %1343 = vmatpush1.msra.mxu0 0.0
    %1344 = vmatprep.subr.mxu0 0.0
    %1345 = vmatpush1.msra.mxu0 0.0
    %1346 = vmatprep.subr.mxu0 0.0
    %1347 = vmatpush1.msra.mxu0 0.0
    %1348 = vmatprep.subr.mxu0 0.0
    %1349 = vmatpush1.msra.mxu0 0.0
    %1350 = vmatprep.subr.mxu0 0.0
    %1351 = vmatpush1.msra.mxu0 0.0
    %1352 = vmatprep.subr.mxu0 0.0
    %1353 = vmatpush1.msra.mxu0 0.0
    %1354 = vmatprep.subr.mxu0 0.0
    %1355 = vmatpush1.msra.mxu0 0.0
    %1356 = vmatprep.subr.mxu0 0.0
    %1357 = vmatpush1.msra.mxu0 0.0
    %1358 = vmatprep.subr.mxu0 0.0
    %1359 = vmatpush1.msra.mxu0 %v1330
    %1360 = vmatprep.subr.mxu0 0.0
    %1361 = vmatpush1.msra.mxu0 %v1329
    %1362 = vmatprep.subr.mxu0 0.0
    %1363 = vmatpush1.msra.mxu0 %v1328
    %1364 = vmatprep.subr.mxu0 0.0
    %1365 = vmatpush1.msra.mxu0 %v1327
    %1366 = vmatprep.subr.mxu0 0.0
    %1367 = vmatpush2.msra.mxu0 0.0
    %1368 = vmatprep.subr.mxu0 0.0
    %1369 = vmatpush2.msra.mxu0 0.0
    %1370 = vmatprep.subr.mxu0 0.0
    %1371 = vmatpush2.msra.mxu0 0.0
    %1372 = vmatprep.subr.mxu0 0.0
    %1373 = vmatpush2.msra.mxu0 0.0
    %1374 = vmatprep.subr.mxu0 0.0
    %1375 = vmatpush2.msra.mxu0 0.0
    %1376 = vmatprep.subr.mxu0 0.0
    %1377 = vmatpush2.msra.mxu0 0.0
    %1378 = vmatprep.subr.mxu0 0.0
    %1379 = vmatpush2.msra.mxu0 0.0
    %1380 = vmatprep.subr.mxu0 0.0
    %1381 = vmatpush2.msra.mxu0 0.0
    %1382 = vmatprep.subr.mxu0 0.0
    %1383 = vmatpush2.msra.mxu0 0.0
    %1384 = vmatprep.subr.mxu0 0.0
    %1385 = vmatpush2.msra.mxu0 0.0
    %1386 = vmatprep.subr.mxu0 0.0
    %1387 = vmatpush2.msra.mxu0 0.0
    %1388 = vmatprep.subr.mxu0 0.0
    %1389 = vmatpush2.msra.mxu0 0.0
    %1390 = vmatprep.subr.mxu0 0.0
    %1391 = vmatpush2.msra.mxu0 0.0
    %1392 = vmatprep.subr.mxu0 0.0
    %1393 = vmatpush2.msra.mxu0 0.0
    %1394 = vmatprep.subr.mxu0 0.0
    %1395 = vmatpush2.msra.mxu0 0.0
    %1396 = vmatprep.subr.mxu0 0.0
    %1397 = vmatpush2.msra.mxu0 0.0
    %1398 = vmatprep.mubr.f32.mxu0 0.0
    %1399 = vmatmul.mubr.f32.gmra.mxu0 %v1332
    %v1400 = vpop.f32.mrf.mxu0
    %v1401 = vadd.f32 0.0, %v1400
    %v1402 = vpop.f32.mrf.mxu0
    %1403 = vdwg.mxu0
    %v1404 = vadd.f32 %v1323, %v1401
    %s1405 = scalar_lea.vmem [#allocation4], 8
    %v1406 = vld [vmem:[%s1405] ss:$16 sm:$0x3]
    %s1407 = scalar_lea.vmem %s5, 256
    %v1408 = vld [vmem:[%s1407] sm:$0xff]
    %v1409 = vld [vmem:[%s1407 + $0x8] sm:$0xff]
    %v1410 = vld [vmem:[%s1407 + $0x10] sm:$0xff]
    %v1411 = vld [vmem:[%s1407 + $0x18] sm:$0xff]
    %v1413 = vsel %vm756, %v1406, 0
    %1415 = vmatprep.subr.mxu0 0.0
    %1416 = vmatpush1.msra.mxu0 0.0
    %1417 = vmatprep.subr.mxu0 0.0
    %1418 = vmatpush1.msra.mxu0 0.0
    %1419 = vmatprep.subr.mxu0 0.0
    %1420 = vmatpush1.msra.mxu0 0.0
    %1421 = vmatprep.subr.mxu0 0.0
    %1422 = vmatpush1.msra.mxu0 0.0
    %1423 = vmatprep.subr.mxu0 0.0
    %1424 = vmatpush1.msra.mxu0 0.0
    %1425 = vmatprep.subr.mxu0 0.0
    %1426 = vmatpush1.msra.mxu0 0.0
    %1427 = vmatprep.subr.mxu0 0.0
    %1428 = vmatpush1.msra.mxu0 0.0
    %1429 = vmatprep.subr.mxu0 0.0
    %1430 = vmatpush1.msra.mxu0 0.0
    %1431 = vmatprep.subr.mxu0 0.0
    %1432 = vmatpush1.msra.mxu0 0.0
    %1433 = vmatprep.subr.mxu0 0.0
    %1434 = vmatpush1.msra.mxu0 0.0
    %1435 = vmatprep.subr.mxu0 0.0
    %1436 = vmatpush1.msra.mxu0 0.0
    %1437 = vmatprep.subr.mxu0 0.0
    %1438 = vmatpush1.msra.mxu0 0.0
    %1439 = vmatprep.subr.mxu0 0.0
    %1440 = vmatpush1.msra.mxu0 %v1411
    %1441 = vmatprep.subr.mxu0 0.0
    %1442 = vmatpush1.msra.mxu0 %v1410
    %1443 = vmatprep.subr.mxu0 0.0
    %1444 = vmatpush1.msra.mxu0 %v1409
    %1445 = vmatprep.subr.mxu0 0.0
    %1446 = vmatpush1.msra.mxu0 %v1408
    %1447 = vmatprep.subr.mxu0 0.0
    %1448 = vmatpush2.msra.mxu0 0.0
    %1449 = vmatprep.subr.mxu0 0.0
    %1450 = vmatpush2.msra.mxu0 0.0
    %1451 = vmatprep.subr.mxu0 0.0
    %1452 = vmatpush2.msra.mxu0 0.0
    %1453 = vmatprep.subr.mxu0 0.0
    %1454 = vmatpush2.msra.mxu0 0.0
    %1455 = vmatprep.subr.mxu0 0.0
    %1456 = vmatpush2.msra.mxu0 0.0
    %1457 = vmatprep.subr.mxu0 0.0
    %1458 = vmatpush2.msra.mxu0 0.0
    %1459 = vmatprep.subr.mxu0 0.0
    %1460 = vmatpush2.msra.mxu0 0.0
    %1461 = vmatprep.subr.mxu0 0.0
    %1462 = vmatpush2.msra.mxu0 0.0
    %1463 = vmatprep.subr.mxu0 0.0
    %1464 = vmatpush2.msra.mxu0 0.0
    %1465 = vmatprep.subr.mxu0 0.0
    %1466 = vmatpush2.msra.mxu0 0.0
    %1467 = vmatprep.subr.mxu0 0.0
    %1468 = vmatpush2.msra.mxu0 0.0
    %1469 = vmatprep.subr.mxu0 0.0
    %1470 = vmatpush2.msra.mxu0 0.0
    %1471 = vmatprep.subr.mxu0 0.0
    %1472 = vmatpush2.msra.mxu0 0.0
    %1473 = vmatprep.subr.mxu0 0.0
    %1474 = vmatpush2.msra.mxu0 0.0
    %1475 = vmatprep.subr.mxu0 0.0
    %1476 = vmatpush2.msra.mxu0 0.0
    %1477 = vmatprep.subr.mxu0 0.0
    %1478 = vmatpush2.msra.mxu0 0.0
    %1479 = vmatprep.mubr.f32.mxu0 0.0
    %1480 = vmatmul.mubr.f32.gmra.mxu0 %v1413
    %v1481 = vpop.f32.mrf.mxu0
    %v1482 = vadd.f32 0.0, %v1481
    %v1483 = vpop.f32.mrf.mxu0
    %1484 = vdwg.mxu0
    %v1485 = vadd.f32 %v1404, %v1482
    %s1486 = scalar_lea.vmem [#allocation4], 9
    %v1487 = vld [vmem:[%s1486] ss:$16 sm:$0x3]
    %s1488 = scalar_lea.vmem %s5, 288
    %v1489 = vld [vmem:[%s1488] sm:$0xff]
    %v1490 = vld [vmem:[%s1488 + $0x8] sm:$0xff]
    %v1491 = vld [vmem:[%s1488 + $0x10] sm:$0xff]
    %v1492 = vld [vmem:[%s1488 + $0x18] sm:$0xff]
    %v1494 = vsel %vm756, %v1487, 0
    %1496 = vmatprep.subr.mxu0 0.0
    %1497 = vmatpush1.msra.mxu0 0.0
    %1498 = vmatprep.subr.mxu0 0.0
    %1499 = vmatpush1.msra.mxu0 0.0
    %1500 = vmatprep.subr.mxu0 0.0
    %1501 = vmatpush1.msra.mxu0 0.0
    %1502 = vmatprep.subr.mxu0 0.0
    %1503 = vmatpush1.msra.mxu0 0.0
    %1504 = vmatprep.subr.mxu0 0.0
    %1505 = vmatpush1.msra.mxu0 0.0
    %1506 = vmatprep.subr.mxu0 0.0
    %1507 = vmatpush1.msra.mxu0 0.0
    %1508 = vmatprep.subr.mxu0 0.0
    %1509 = vmatpush1.msra.mxu0 0.0
    %1510 = vmatprep.subr.mxu0 0.0
    %1511 = vmatpush1.msra.mxu0 0.0
    %1512 = vmatprep.subr.mxu0 0.0
    %1513 = vmatpush1.msra.mxu0 0.0
    %1514 = vmatprep.subr.mxu0 0.0
    %1515 = vmatpush1.msra.mxu0 0.0
    %1516 = vmatprep.subr.mxu0 0.0
    %1517 = vmatpush1.msra.mxu0 0.0
    %1518 = vmatprep.subr.mxu0 0.0
    %1519 = vmatpush1.msra.mxu0 0.0
    %1520 = vmatprep.subr.mxu0 0.0
    %1521 = vmatpush1.msra.mxu0 %v1492
    %1522 = vmatprep.subr.mxu0 0.0
    %1523 = vmatpush1.msra.mxu0 %v1491
    %1524 = vmatprep.subr.mxu0 0.0
    %1525 = vmatpush1.msra.mxu0 %v1490
    %1526 = vmatprep.subr.mxu0 0.0
    %1527 = vmatpush1.msra.mxu0 %v1489
    %1528 = vmatprep.subr.mxu0 0.0
    %1529 = vmatpush2.msra.mxu0 0.0
    %1530 = vmatprep.subr.mxu0 0.0
    %1531 = vmatpush2.msra.mxu0 0.0
    %1532 = vmatprep.subr.mxu0 0.0
    %1533 = vmatpush2.msra.mxu0 0.0
    %1534 = vmatprep.subr.mxu0 0.0
    %1535 = vmatpush2.msra.mxu0 0.0
    %1536 = vmatprep.subr.mxu0 0.0
    %1537 = vmatpush2.msra.mxu0 0.0
    %1538 = vmatprep.subr.mxu0 0.0
    %1539 = vmatpush2.msra.mxu0 0.0
    %1540 = vmatprep.subr.mxu0 0.0
    %1541 = vmatpush2.msra.mxu0 0.0
    %1542 = vmatprep.subr.mxu0 0.0
    %1543 = vmatpush2.msra.mxu0 0.0
    %1544 = vmatprep.subr.mxu0 0.0
    %1545 = vmatpush2.msra.mxu0 0.0
    %1546 = vmatprep.subr.mxu0 0.0
    %1547 = vmatpush2.msra.mxu0 0.0
    %1548 = vmatprep.subr.mxu0 0.0
    %1549 = vmatpush2.msra.mxu0 0.0
    %1550 = vmatprep.subr.mxu0 0.0
    %1551 = vmatpush2.msra.mxu0 0.0
    %1552 = vmatprep.subr.mxu0 0.0
    %1553 = vmatpush2.msra.mxu0 0.0
    %1554 = vmatprep.subr.mxu0 0.0
    %1555 = vmatpush2.msra.mxu0 0.0
    %1556 = vmatprep.subr.mxu0 0.0
    %1557 = vmatpush2.msra.mxu0 0.0
    %1558 = vmatprep.subr.mxu0 0.0
    %1559 = vmatpush2.msra.mxu0 0.0
    %1560 = vmatprep.mubr.f32.mxu0 0.0
    %1561 = vmatmul.mubr.f32.gmra.mxu0 %v1494
    %v1562 = vpop.f32.mrf.mxu0
    %v1563 = vadd.f32 0.0, %v1562
    %v1564 = vpop.f32.mrf.mxu0
    %1565 = vdwg.mxu0
    %v1566 = vadd.f32 %v1485, %v1563
    %s1567 = scalar_lea.vmem [#allocation4], 10
    %v1568 = vld [vmem:[%s1567] ss:$16 sm:$0x3]
    %s1569 = scalar_lea.vmem %s5, 320
    %v1570 = vld [vmem:[%s1569] sm:$0xff]
    %v1571 = vld [vmem:[%s1569 + $0x8] sm:$0xff]
    %v1572 = vld [vmem:[%s1569 + $0x10] sm:$0xff]
    %v1573 = vld [vmem:[%s1569 + $0x18] sm:$0xff]
    %v1575 = vsel %vm756, %v1568, 0
    %1577 = vmatprep.subr.mxu0 0.0
    %1578 = vmatpush1.msra.mxu0 0.0
    %1579 = vmatprep.subr.mxu0 0.0
    %1580 = vmatpush1.msra.mxu0 0.0
    %1581 = vmatprep.subr.mxu0 0.0
    %1582 = vmatpush1.msra.mxu0 0.0
    %1583 = vmatprep.subr.mxu0 0.0
    %1584 = vmatpush1.msra.mxu0 0.0
    %1585 = vmatprep.subr.mxu0 0.0
    %1586 = vmatpush1.msra.mxu0 0.0
    %1587 = vmatprep.subr.mxu0 0.0
    %1588 = vmatpush1.msra.mxu0 0.0
    %1589 = vmatprep.subr.mxu0 0.0
    %1590 = vmatpush1.msra.mxu0 0.0
    %1591 = vmatprep.subr.mxu0 0.0
    %1592 = vmatpush1.msra.mxu0 0.0
    %1593 = vmatprep.subr.mxu0 0.0
    %1594 = vmatpush1.msra.mxu0 0.0
    %1595 = vmatprep.subr.mxu0 0.0
    %1596 = vmatpush1.msra.mxu0 0.0
    %1597 = vmatprep.subr.mxu0 0.0
    %1598 = vmatpush1.msra.mxu0 0.0
    %1599 = vmatprep.subr.mxu0 0.0
    %1600 = vmatpush1.msra.mxu0 0.0
    %1601 = vmatprep.subr.mxu0 0.0
    %1602 = vmatpush1.msra.mxu0 %v1573
    %1603 = vmatprep.subr.mxu0 0.0
    %1604 = vmatpush1.msra.mxu0 %v1572
    %1605 = vmatprep.subr.mxu0 0.0
    %1606 = vmatpush1.msra.mxu0 %v1571
    %1607 = vmatprep.subr.mxu0 0.0
    %1608 = vmatpush1.msra.mxu0 %v1570
    %1609 = vmatprep.subr.mxu0 0.0
    %1610 = vmatpush2.msra.mxu0 0.0
    %1611 = vmatprep.subr.mxu0 0.0
    %1612 = vmatpush2.msra.mxu0 0.0
    %1613 = vmatprep.subr.mxu0 0.0
    %1614 = vmatpush2.msra.mxu0 0.0
    %1615 = vmatprep.subr.mxu0 0.0
    %1616 = vmatpush2.msra.mxu0 0.0
    %1617 = vmatprep.subr.mxu0 0.0
    %1618 = vmatpush2.msra.mxu0 0.0
    %1619 = vmatprep.subr.mxu0 0.0
    %1620 = vmatpush2.msra.mxu0 0.0
    %1621 = vmatprep.subr.mxu0 0.0
    %1622 = vmatpush2.msra.mxu0 0.0
    %1623 = vmatprep.subr.mxu0 0.0
    %1624 = vmatpush2.msra.mxu0 0.0
    %1625 = vmatprep.subr.mxu0 0.0
    %1626 = vmatpush2.msra.mxu0 0.0
    %1627 = vmatprep.subr.mxu0 0.0
    %1628 = vmatpush2.msra.mxu0 0.0
    %1629 = vmatprep.subr.mxu0 0.0
    %1630 = vmatpush2.msra.mxu0 0.0
    %1631 = vmatprep.subr.mxu0 0.0
    %1632 = vmatpush2.msra.mxu0 0.0
    %1633 = vmatprep.subr.mxu0 0.0
    %1634 = vmatpush2.msra.mxu0 0.0
    %1635 = vmatprep.subr.mxu0 0.0
    %1636 = vmatpush2.msra.mxu0 0.0
    %1637 = vmatprep.subr.mxu0 0.0
    %1638 = vmatpush2.msra.mxu0 0.0
    %1639 = vmatprep.subr.mxu0 0.0
    %1640 = vmatpush2.msra.mxu0 0.0
    %1641 = vmatprep.mubr.f32.mxu0 0.0
    %1642 = vmatmul.mubr.f32.gmra.mxu0 %v1575
    %v1643 = vpop.f32.mrf.mxu0
    %v1644 = vadd.f32 0.0, %v1643
    %v1645 = vpop.f32.mrf.mxu0
    %1646 = vdwg.mxu0
    %v1647 = vadd.f32 %v1566, %v1644
    %v1648 = vld [vmem:[%s6] sm:$0x1]
    %v1650 = vlaneseq
    %v1651 = vshrl.u32 %v1650, 7
    %v1652 = vsub.s32 0, %v1651
    %v1653 = vrot.slane %v1648, %v1652
    %v1655 = vadd.f32 %v1647, %v1653
    %v1656 = vmax.f32 %v1655, 0.0
    %v1657 = vld [vmem:[%s7] sm:$0xff]
    %v1658 = vld [vmem:[%s7 + $0x8] sm:$0xff]
    %v1659 = vld [vmem:[%s7 + $0x10] sm:$0xff]
    %v1660 = vld [vmem:[%s7 + $0x18] sm:$0xff]
    %v1661 = vld [vmem:[%s7 + $0x20] sm:$0xff]
    %v1662 = vld [vmem:[%s7 + $0x28] sm:$0xff]
    %v1663 = vld [vmem:[%s7 + $0x30] sm:$0xff]
    %v1664 = vld [vmem:[%s7 + $0x38] sm:$0xff]
    %v1665 = vld [vmem:[%s7 + $0x40] sm:$0xff]
    %v1666 = vld [vmem:[%s7 + $0x48] sm:$0xff]
    %v1667 = vld [vmem:[%s7 + $0x50] sm:$0xff]
    %v1668 = vld [vmem:[%s7 + $0x58] sm:$0xff]
    %v1669 = vld [vmem:[%s7 + $0x60] sm:$0xff]
    %v1670 = vld [vmem:[%s7 + $0x68] sm:$0xff]
    %v1671 = vld [vmem:[%s7 + $0x70] sm:$0xff]
    %v1672 = vld [vmem:[%s7 + $0x78] sm:$0xff]
    %v1673 = vld [vmem:[%s8] sm:$0x1]
    %v1675 = vlaneseq
    %v1676 = vshrl.u32 %v1675, 7
    %v1677 = vsub.s32 0, %v1676
    %v1678 = vrot.slane %v1673, %v1677
    %1680 = vmatprep.subr.mxu0 0.0
    %1681 = vmatpush1.msra.mxu0 %v1672
    %1682 = vmatprep.subr.mxu0 0.0
    %1683 = vmatpush1.msra.mxu0 %v1671
    %1684 = vmatprep.subr.mxu0 0.0
    %1685 = vmatpush1.msra.mxu0 %v1670
    %1686 = vmatprep.subr.mxu0 0.0
    %1687 = vmatpush1.msra.mxu0 %v1669
    %1688 = vmatprep.subr.mxu0 0.0
    %1689 = vmatpush1.msra.mxu0 %v1668
    %1690 = vmatprep.subr.mxu0 0.0
    %1691 = vmatpush1.msra.mxu0 %v1667
    %1692 = vmatprep.subr.mxu0 0.0
    %1693 = vmatpush1.msra.mxu0 %v1666
    %1694 = vmatprep.subr.mxu0 0.0
    %1695 = vmatpush1.msra.mxu0 %v1665
    %1696 = vmatprep.subr.mxu0 0.0
    %1697 = vmatpush1.msra.mxu0 %v1664
    %1698 = vmatprep.subr.mxu0 0.0
    %1699 = vmatpush1.msra.mxu0 %v1663
    %1700 = vmatprep.subr.mxu0 0.0
    %1701 = vmatpush1.msra.mxu0 %v1662
    %1702 = vmatprep.subr.mxu0 0.0
    %1703 = vmatpush1.msra.mxu0 %v1661
    %1704 = vmatprep.subr.mxu0 0.0
    %1705 = vmatpush1.msra.mxu0 %v1660
    %1706 = vmatprep.subr.mxu0 0.0
    %1707 = vmatpush1.msra.mxu0 %v1659
    %1708 = vmatprep.subr.mxu0 0.0
    %1709 = vmatpush1.msra.mxu0 %v1658
    %1710 = vmatprep.subr.mxu0 0.0
    %1711 = vmatpush1.msra.mxu0 %v1657
    %1712 = vmatprep.subr.mxu0 0.0
    %1713 = vmatpush2.msra.mxu0 0.0
    %1714 = vmatprep.subr.mxu0 0.0
    %1715 = vmatpush2.msra.mxu0 0.0
    %1716 = vmatprep.subr.mxu0 0.0
    %1717 = vmatpush2.msra.mxu0 0.0
    %1718 = vmatprep.subr.mxu0 0.0
    %1719 = vmatpush2.msra.mxu0 0.0
    %1720 = vmatprep.subr.mxu0 0.0
    %1721 = vmatpush2.msra.mxu0 0.0
    %1722 = vmatprep.subr.mxu0 0.0
    %1723 = vmatpush2.msra.mxu0 0.0
    %1724 = vmatprep.subr.mxu0 0.0
    %1725 = vmatpush2.msra.mxu0 0.0
    %1726 = vmatprep.subr.mxu0 0.0
    %1727 = vmatpush2.msra.mxu0 0.0
    %1728 = vmatprep.subr.mxu0 0.0
    %1729 = vmatpush2.msra.mxu0 0.0
    %1730 = vmatprep.subr.mxu0 0.0
    %1731 = vmatpush2.msra.mxu0 0.0
    %1732 = vmatprep.subr.mxu0 0.0
    %1733 = vmatpush2.msra.mxu0 0.0
    %1734 = vmatprep.subr.mxu0 0.0
    %1735 = vmatpush2.msra.mxu0 0.0
    %1736 = vmatprep.subr.mxu0 0.0
    %1737 = vmatpush2.msra.mxu0 0.0
    %1738 = vmatprep.subr.mxu0 0.0
    %1739 = vmatpush2.msra.mxu0 0.0
    %1740 = vmatprep.subr.mxu0 0.0
    %1741 = vmatpush2.msra.mxu0 0.0
    %1742 = vmatprep.subr.mxu0 0.0
    %1743 = vmatpush2.msra.mxu0 0.0
    %1744 = vmatprep.mubr.f32.mxu0 0.0
    %1745 = vmatmul.mubr.f32.gmra.mxu0 %v1656
    %v1746 = vpop.f32.mrf.mxu0
    %v1747 = vadd.f32 %v1678, %v1746
    %v1748 = vpop.f32.mrf.mxu0
    %1749 = vdwg.mxu0
    %1750 = vst [vmem:[#allocation5] sm:$0x3] %v1747
    // Predicated region
    $region38: #{dgcnn_forward.3} parent=1 // pred_check
      _
    $region39: #{dgcnn_forward.3} parent=1 // pred_check_branch
      %1752 = sbr.rel (0) target = $region41
    $region40: #{dgcnn_forward.3} parent=1 // pred_region
      %s1754 = ssub.s32 32, 32
      %1755 = vsyncadd [#allocation6], %s1754
      %s1757 = sshll.u32 [#allocation5], 4
      %s1758 = int_to_ptr.vmem [resolvable:$true] %s1757
      %1760 = dma.vmem_to_hbm [thread:$0]  %s1758, 32, %s9, [#allocation6]
    $region41: #{dgcnn_forward.3} parent=1 // pred_fallthru
      _
    // Predicated region
    $region42: #{dgcnn_forward.3} parent=1 // pred_check
      _
    $region43: #{dgcnn_forward.3} parent=1 // pred_check_branch
      %1762 = sbr.rel (0) target = $region45
    $region44: #{dgcnn_forward.3} parent=1 // pred_region
      %1763 = dma.done [#allocation6], 32
    $region45: #{dgcnn_forward.3} parent=1 // pred_fallthru
      _
    %1764 = vsyncpa [#allocation6], 1

</llo_original>
